<compile_context>
chip_gen: v5e
topology: v5e:2x2
jax: 0.10.0
libtpu: 0.0.40
codegen_flags: <defaults>
</compile_context>

<pallas_src>
import functools
import math

import numpy as np
import jax
import jax.numpy as jnp
from jax.experimental import pallas as pl
from jax.experimental.pallas import tpu as pltpu


# ----------------------------------------------------------------------------
# Generation-aware VMEM budget (do not hard-code 64 MiB).
# ----------------------------------------------------------------------------
def _default_vmem_limit():
    try:
        return int(pltpu.get_tpu_info().vmem_capacity_bytes * 0.6)
    except Exception:
        return 48 * 1024 * 1024


_VMEM_LIMIT = _default_vmem_limit()


def _pick_tile(m, target):
    """Largest multiple of 8 that divides m and is <= target (m % 8 == 0)."""
    target = max(8, min(target, m))
    for cand in range(target - target % 8, 7, -8):
        if m % cand == 0:
            return cand
    return 8


def _pick_row_block(h, target=8):
    for cand in range(min(target, h), 0, -1):
        if h % cand == 0:
            return cand
    return 1


# ----------------------------------------------------------------------------
# Kernel A: ConvTranspose2d(2,2) as one matmul into the packed (di,dj,c)
# 128-lane layout, with BN1 sum / sum-of-squares fused into the epilogue.
# ----------------------------------------------------------------------------
def _upconv_bn1_kernel(x_ref, w_ref, b_ref, y_ref, s_ref, ss_ref):
    @pl.when(pl.program_id(1) == 0)
    def _init():
        s_ref[...] = jnp.zeros_like(s_ref)
        ss_ref[...] = jnp.zeros_like(ss_ref)

    acc = jnp.dot(x_ref[...].astype(jnp.bfloat16), w_ref[...],
                  preferred_element_type=jnp.float32) + b_ref[...]
    y_ref[...] = acc.astype(y_ref.dtype)
    s_ref[0] += jnp.sum(acc, axis=0, keepdims=True)
    ss_ref[0] += jnp.sum(acc * acc, axis=0, keepdims=True)


# ----------------------------------------------------------------------------
# Kernel B: BN1 normalize + ReLU, fused with the zero-padding write into the
# padded packed slab (B, H+2, W+2, 128).  f32 math, bf16 storage.
# ----------------------------------------------------------------------------
def _bn_relu_pad_kernel(y_ref, scale_ref, shift_ref, o_ref, *, H, W):
    v = y_ref[0].astype(jnp.float32) * scale_ref[...] + shift_ref[...]
    v = jnp.maximum(v, 0.0).astype(o_ref.dtype).reshape(H, W, 128)
    o_ref[0] = jnp.zeros((H + 2, W + 2, 128), o_ref.dtype)
    o_ref[0, pl.ds(1, H), pl.ds(1, W), :] = v


# ----------------------------------------------------------------------------
# Kernel C: 3x3 conv expressed directly on the packed grid (no pixel shuffle):
# each output packed row is one (W, 9*128) x (9*128, 128) matmul (taps folded
# into the contraction dim).  BN2 stats are fused into the epilogue.
# ----------------------------------------------------------------------------
def _conv3x3_bn2_kernel(main_ref, e1_ref, e2_ref, w_ref, b_ref,
                        o_ref, s_ref, ss_ref, *, hb, W):
    @pl.when(pl.program_id(1) == 0)
    def _init():
        s_ref[...] = jnp.zeros_like(s_ref)
        ss_ref[...] = jnp.zeros_like(ss_ref)

    wv = w_ref[...]                      # (1152, 128) bf16, hoisted
    bv = b_ref[...]                      # (1, 128) f32

    def tap(row, tw):                    # row, tw are static Python ints
        if row < hb:
            return main_ref[0, row, pl.ds(tw, W), :]
        if row == hb:
            return e1_ref[0, 0, pl.ds(tw, W), :]
        return e2_ref[0, 0, pl.ds(tw, W), :]

    ssum = jnp.zeros((1, 128), jnp.float32)
    ssq = jnp.zeros((1, 128), jnp.float32)
    for j in range(hb):
        a = jnp.concatenate(
            [tap(j + th, tw) for th in range(3) for tw in range(3)], axis=-1)
        acc = jnp.dot(a, wv, preferred_element_type=jnp.float32) + bv
        o_ref[0, j] = acc.astype(o_ref.dtype)
        ssum = ssum + jnp.sum(acc, axis=0, keepdims=True)
        ssq = ssq + jnp.sum(acc * acc, axis=0, keepdims=True)
    s_ref[0] += ssum
    ss_ref[0] += ssq


# ----------------------------------------------------------------------------
# Kernel D: BN2 normalize + ReLU fused as prologue of the final 1x1 conv,
# applied on the packed layout via a block-diagonal (128,128) weight.
# ----------------------------------------------------------------------------
def _bn_relu_1x1_kernel(z_ref, scale_ref, shift_ref, w_ref, b_ref, o_ref):
    z = z_ref[...].astype(jnp.float32) * scale_ref[...] + shift_ref[...]
    z = jnp.maximum(z, 0.0)
    acc = jnp.dot(z.astype(jnp.bfloat16), w_ref[...],
                  preferred_element_type=jnp.float32) + b_ref[...]
    o_ref[...] = acc.astype(o_ref.dtype)


# ----------------------------------------------------------------------------
# Host-side helpers
# ----------------------------------------------------------------------------
def _finish_bn(s, ss, count, gamma, beta, eps):
    """Combine partial sums into per-channel (scale, shift): BN(x)=x*scale+shift."""
    s_c = jnp.sum(s.reshape(-1, 32), axis=0)
    ss_c = jnp.sum(ss.reshape(-1, 32), axis=0)
    mean = s_c / count
    var = ss_c / count - mean * mean            # biased batch variance
    inv = gamma.astype(jnp.float32) * jax.lax.rsqrt(var + eps)
    return inv, beta.astype(jnp.float32) - mean * inv


def _packed_conv_weights(w):
    """Turn a (32,32,3,3) conv weight into 9 packed (128,128) tap matrices,
    flattened to (1152, 128) in the kernel's tap-concat order."""
    sel = np.zeros((3, 2, 2, 3), np.float32)    # [tap, sub_out, sub_in, k]
    for tap in range(3):
        for so in range(2):
            for si in range(2):
                k = 2 * tap + si - so - 1
                if 0 <= k <= 2:
                    sel[tap, so, si, k] = 1.0
    sel = jnp.asarray(sel)
    wp = jnp.einsum('tpdk,uqel,ockl->tudecpqo', sel, sel, w.astype(jnp.float32))
    return wp.reshape(9 * 128, 128).astype(jnp.bfloat16)


# ----------------------------------------------------------------------------
# UpConv forward
# ----------------------------------------------------------------------------
def upconv_fwd(p, x_nchw, eps=1e-5):
    wu = p['upconv']['w']                        # (Cin, Cout, 2, 2)
    Cin, Cout = int(wu.shape[0]), int(wu.shape[1])
    # TODO(synk): generalize the packed-lane layout beyond outchannels == 32.
    assert Cout == 32, "kernels specialize to outchannels == 32 (4*Cout = 128 lanes)"
    B, _, H, W = (int(d) for d in x_nchw.shape)
    M = B * H * W
    assert M % 8 == 0, "B*H*W must be a multiple of 8"

    x2d = jnp.transpose(x_nchw, (0, 2, 3, 1)).reshape(M, Cin).astype(jnp.float32)

    # ---------------- Kernel A: upconv matmul + fused BN1 stats ----------------
    w_up = jnp.transpose(wu, (0, 2, 3, 1)).reshape(Cin, 128).astype(jnp.bfloat16)
    b_up = jnp.tile(p['upconv']['b'], 4).reshape(1, 128).astype(jnp.float32)

    tma = _pick_tile(M, min(512, max(8, M // 2)))
    steps_total = M // tma
    nsplit = 2 if (steps_total % 2 == 0 and steps_total >= 2) else 1
    steps = steps_total // nsplit

    y, s1, ss1 = pl.pallas_call(
        _upconv_bn1_kernel,
        out_shape=(jax.ShapeDtypeStruct((M, 128), jnp.bfloat16),
                   jax.ShapeDtypeStruct((nsplit, 1, 128), jnp.float32),
                   jax.ShapeDtypeStruct((nsplit, 1, 128), jnp.float32)),
        grid=(nsplit, steps),
        in_specs=[pl.BlockSpec((tma, Cin), lambda sp, t: (sp * steps + t, 0)),
                  pl.BlockSpec((Cin, 128), lambda sp, t: (0, 0)),
                  pl.BlockSpec((1, 128), lambda sp, t: (0, 0))],
        out_specs=(pl.BlockSpec((tma, 128), lambda sp, t: (sp * steps + t, 0)),
                   pl.BlockSpec((1, 1, 128), lambda sp, t: (sp, 0, 0)),
                   pl.BlockSpec((1, 1, 128), lambda sp, t: (sp, 0, 0))),
        compiler_params=pltpu.CompilerParams(
            dimension_semantics=("parallel", "arbitrary"),
            vmem_limit_bytes=_VMEM_LIMIT),
    )(x2d, w_up, b_up)

    scale1, shift1 = _finish_bn(s1, ss1, 4.0 * M,
                                p['bn_upconv']['g'], p['bn_upconv']['b'], eps)
    scale1_l = jnp.tile(scale1, 4).reshape(1, 128)
    shift1_l = jnp.tile(shift1, 4).reshape(1, 128)

    # -------- Kernel B: BN1 affine + ReLU fused with padded-slab write --------
    slab = pl.pallas_call(
        functools.partial(_bn_relu_pad_kernel, H=H, W=W),
        out_shape=jax.ShapeDtypeStruct((B, H + 2, W + 2, 128), jnp.bfloat16),
        grid=(B,),
        in_specs=[pl.BlockSpec((1, H * W, 128), lambda b: (b, 0, 0)),
                  pl.BlockSpec((1, 128), lambda b: (0, 0)),
                  pl.BlockSpec((1, 128), lambda b: (0, 0))],
        out_specs=pl.BlockSpec((1, H + 2, W + 2, 128), lambda b: (b, 0, 0, 0)),
        compiler_params=pltpu.CompilerParams(
            dimension_semantics=("parallel",),
            vmem_limit_bytes=_VMEM_LIMIT),
    )(y.reshape(B, H * W, 128), scale1_l, shift1_l)

    # ------------- Kernel C: packed 3x3 conv + fused BN2 stats ---------------
    wp = _packed_conv_weights(p['conv']['w'])            # (1152, 128) bf16
    b_c = jnp.tile(p['conv']['b'], 4).reshape(1, 128).astype(jnp.float32)
    hb = _pick_row_block(H)
    nt = H // hb

    z, s2, ss2 = pl.pallas_call(
        functools.partial(_conv3x3_bn2_kernel, hb=hb, W=W),
        out_shape=(jax.ShapeDtypeStruct((B, H, W, 128), jnp.bfloat16),
                   jax.ShapeDtypeStruct((B, 1, 128), jnp.float32),
                   jax.ShapeDtypeStruct((B, 1, 128), jnp.float32)),
        grid=(B, nt),
        in_specs=[pl.BlockSpec((1, hb, W + 2, 128), lambda b, t: (b, t, 0, 0)),
                  pl.BlockSpec((1, 1, W + 2, 128),
                               lambda b, t: (b, t * hb + hb, 0, 0)),
                  pl.BlockSpec((1, 1, W + 2, 128),
                               lambda b, t: (b, t * hb + hb + 1, 0, 0)),
                  pl.BlockSpec((9 * 128, 128), lambda b, t: (0, 0)),
                  pl.BlockSpec((1, 128), lambda b, t: (0, 0))],
        out_specs=(pl.BlockSpec((1, hb, W, 128), lambda b, t: (b, t, 0, 0)),
                   pl.BlockSpec((1, 1, 128), lambda b, t: (b, 0, 0)),
                   pl.BlockSpec((1, 1, 128), lambda b, t: (b, 0, 0))),
        compiler_params=pltpu.CompilerParams(
            dimension_semantics=("parallel", "arbitrary"),
            vmem_limit_bytes=_VMEM_LIMIT),
    )(slab, slab, slab, wp, b_c)

    scale2, shift2 = _finish_bn(s2, ss2, 4.0 * M,
                                p['bn_conv']['g'], p['bn_conv']['b'], eps)
    scale2_l = jnp.tile(scale2, 4).reshape(1, 128)
    shift2_l = jnp.tile(shift2, 4).reshape(1, 128)

    # ------ Kernel D: BN2 affine + ReLU prologue fused with final 1x1 conv ------
    wf = p['final_conv']['w'][:, :, 0, 0]                # (Cout, Cin) = w[o, c]
    wd = jnp.kron(jnp.eye(4, dtype=jnp.float32), wf.T.astype(jnp.float32))
    wd = wd.astype(jnp.bfloat16)                         # (128, 128) block-diag
    b_f = jnp.tile(p['final_conv']['b'], 4).reshape(1, 128).astype(jnp.float32)

    tmd = _pick_tile(M, min(512, max(8, M // 2)))
    out = pl.pallas_call(
        _bn_relu_1x1_kernel,
        out_shape=jax.ShapeDtypeStruct((M, 128), jnp.float32),
        grid=(M // tmd,),
        in_specs=[pl.BlockSpec((tmd, 128), lambda i: (i, 0)),
                  pl.BlockSpec((1, 128), lambda i: (0, 0)),
                  pl.BlockSpec((1, 128), lambda i: (0, 0)),
                  pl.BlockSpec((128, 128), lambda i: (0, 0)),
                  pl.BlockSpec((1, 128), lambda i: (0, 0))],
        out_specs=pl.BlockSpec((tmd, 128), lambda i: (i, 0)),
        compiler_params=pltpu.CompilerParams(
            dimension_semantics=("parallel",),
            vmem_limit_bytes=_VMEM_LIMIT),
    )(z.reshape(M, 128), scale2_l, shift2_l, wd, b_f)

    # Unpack (di, dj, c) lanes back to NCHW (single XLA transpose at the end).
    out = out.reshape(B, H, W, 2, 2, Cout)
    out = jnp.transpose(out, (0, 5, 1, 3, 2, 4)).reshape(B, Cout, 2 * H, 2 * W)
    return out


# ----------------------------------------------------------------------------
# Deterministic parameter init (shapes match the PyTorch module)
# ----------------------------------------------------------------------------
def init_upconv_params(key, cin, cout):
    ks = jax.random.split(key, 8)

    def conv_w(k, co, ci, kh, kw):
        return jax.random.normal(k, (co, ci, kh, kw), jnp.float32) / math.sqrt(ci * kh * kw)

    return {
        'upconv': {'w': jax.random.normal(ks[0], (cin, cout, 2, 2), jnp.float32)
                        / math.sqrt(cin * 4),
                   'b': jax.random.normal(ks[1], (cout,), jnp.float32) * 0.01},
        'bn_upconv': {'g': 1.0 + 0.1 * jax.random.normal(ks[2], (cout,), jnp.float32),
                      'b': 0.1 * jax.random.normal(ks[3], (cout,), jnp.float32)},
        'conv': {'w': conv_w(ks[4], cout, cout, 3, 3),
                 'b': jax.random.normal(ks[5], (cout,), jnp.float32) * 0.01},
        'bn_conv': {'g': 1.0 + 0.1 * jax.random.normal(ks[6], (cout,), jnp.float32),
                    'b': 0.1 * jax.random.normal(ks[7], (cout,), jnp.float32)},
        'final_conv': {'w': conv_w(jax.random.fold_in(key, 99), cout, cout, 1, 1),
                       'b': jax.random.normal(jax.random.fold_in(key, 100),
                                              (cout,), jnp.float32) * 0.01},
    }


# ----------------------------------------------------------------------------
# Pure-JAX f32 reference (same training-mode BN semantics) for validation
# ----------------------------------------------------------------------------
def _ref_bn_relu(y, g, b, eps):
    mean = jnp.mean(y, axis=(0, 1, 2))
    var = jnp.mean(jnp.square(y - mean), axis=(0, 1, 2))
    return jnp.maximum((y - mean) * jax.lax.rsqrt(var + eps) * g + b, 0.0)


def ref_upconv(p, x_nchw, eps=1e-5):
    hp = jax.lax.Precision.HIGHEST
    x = jnp.transpose(x_nchw, (0, 2, 3, 1)).astype(jnp.float32)
    B, H, W, _ = x.shape
    w = p['upconv']['w']
    Cout = w.shape[1]
    y = jnp.einsum('bhwi,iodk->bhdwko', x, w, precision=hp)
    y = y.reshape(B, 2 * H, 2 * W, Cout) + p['upconv']['b']
    y = _ref_bn_relu(y, p['bn_upconv']['g'], p['bn_upconv']['b'], eps)
    yp = jnp.pad(y, ((0, 0), (1, 1), (1, 1), (0, 0)))
    wc = p['conv']['w']
    z = sum(jnp.einsum('bhwi,oi->bhwo',
                       yp[:, di:di + 2 * H, dj:dj + 2 * W, :], wc[:, :, di, dj],
                       precision=hp)
            for di in range(3) for dj in range(3)) + p['conv']['b']
    z = _ref_bn_relu(z, p['bn_conv']['g'], p['bn_conv']['b'], eps)
    out = jnp.einsum('bhwi,oi->bhwo', z, p['final_conv']['w'][:, :, 0, 0],
                     precision=hp) + p['final_conv']['b']
    return jnp.transpose(out, (0, 3, 1, 2))


# ----------------------------------------------------------------------------
if __name__ == "__main__":
    key = jax.random.PRNGKey(0)
    kp, kx = jax.random.split(key)
    B, CIN, COUT, H, W = 2, 64, 32, 16, 16

    params = init_upconv_params(kp, CIN, COUT)
    x = jax.random.normal(kx, (B, CIN, H, W), jnp.float32)

    fwd = jax.jit(upconv_fwd)
    out = jax.block_until_ready(fwd(params, x))

    assert out.shape == (B, COUT, 2 * H, 2 * W), out.shape
    assert out.dtype == jnp.float32
    assert bool(jnp.all(jnp.isfinite(out)))

    ref = ref_upconv(params, x)
    max_err = float(jnp.max(jnp.abs(out - ref)))
    assert bool(jnp.allclose(out, ref, rtol=0.1, atol=0.06)), max_err

    print("KERNEL_OK")
</pallas_src>

<mosaic_0001>
module attributes {stable_mosaic.version = 11 : i64} {
  func.func @_upconv_bn1_kernel(%arg0: i32, %arg1: i32, %arg2: memref<256x64xf32, #tpu.memory_space<vmem>>, %arg3: memref<64x128xbf16, #tpu.memory_space<vmem>>, %arg4: memref<1x128xf32, #tpu.memory_space<vmem>>, %arg5: memref<256x128xbf16, #tpu.memory_space<vmem>>, %arg6: memref<1x1x128xf32, #tpu.memory_space<vmem>>, %arg7: memref<1x1x128xf32, #tpu.memory_space<vmem>>) attributes {dimension_semantics = [#tpu.dimension_semantics<parallel>, #tpu.dimension_semantics<arbitrary>], iteration_bounds = array<i64: 2, 1>, scalar_prefetch = 0 : i64, scratch_operands = 0 : i64, tpu.core_type = #tpu.core_type<tc>, window_params = [{transform_indices = @transform_0, window_bounds = array<i64: 256, 64>}, {pipeline_mode = #tpu.pipeline_mode<synchronous>, transform_indices = @transform_1, window_bounds = array<i64: 64, 128>}, {pipeline_mode = #tpu.pipeline_mode<synchronous>, transform_indices = @transform_2, window_bounds = array<i64: 1, 128>}, {transform_indices = @transform_3, window_bounds = array<i64: 256, 128>}, {transform_indices = @transform_4, window_bounds = array<i64: 1, 1, 128>}, {transform_indices = @transform_5, window_bounds = array<i64: 1, 1, 128>}]} {
    %c0_i32 = arith.constant 0 : i32
    %0 = arith.cmpi eq, %arg1, %c0_i32 : i32
    %1 = arith.extui %0 : i1 to i32
    %c0_i32_0 = arith.constant 0 : i32
    %2 = arith.cmpi ne, %1, %c0_i32_0 : i32
    scf.if %2 {
      %cst_22 = arith.constant 0.000000e+00 : f32
      %29 = vector.broadcast %cst_22 : f32 to vector<1x1x128xf32>
      %c0_23 = arith.constant 0 : index
      %c0_24 = arith.constant 0 : index
      %c0_25 = arith.constant 0 : index
      %30 = vector.load %arg6[%c0_23, %c0_24, %c0_25] : memref<1x1x128xf32, #tpu.memory_space<vmem>>, vector<1x1x128xf32>
      tpu.vector_store %arg6[%c0_23, %c0_24, %c0_25], %29 {strides = array<i32>} : memref<1x1x128xf32, #tpu.memory_space<vmem>>, vector<1x1x128xf32>,
      %cst_26 = arith.constant 0.000000e+00 : f32
      %31 = vector.broadcast %cst_26 : f32 to vector<1x1x128xf32>
      %c0_27 = arith.constant 0 : index
      %c0_28 = arith.constant 0 : index
      %c0_29 = arith.constant 0 : index
      %32 = vector.load %arg7[%c0_27, %c0_28, %c0_29] : memref<1x1x128xf32, #tpu.memory_space<vmem>>, vector<1x1x128xf32>
      tpu.vector_store %arg7[%c0_27, %c0_28, %c0_29], %31 {strides = array<i32>} : memref<1x1x128xf32, #tpu.memory_space<vmem>>, vector<1x1x128xf32>,
    } else {
    }
    %c0 = arith.constant 0 : index
    %c0_1 = arith.constant 0 : index
    %3 = vector.load %arg2[%c0, %c0_1] : memref<256x64xf32, #tpu.memory_space<vmem>>, vector<256x64xf32>
    %4 = arith.truncf %3 : vector<256x64xf32> to vector<256x64xbf16>
    %c0_2 = arith.constant 0 : index
    %c0_3 = arith.constant 0 : index
    %5 = vector.load %arg3[%c0_2, %c0_3] : memref<64x128xbf16, #tpu.memory_space<vmem>>, vector<64x128xbf16>
    %cst = arith.constant dense<0.000000e+00> : vector<256x128xf32>
    %6 = tpu.matmul %4, %5, %cst {dimension_numbers = #tpu.dot_dimension_numbers<[1], [0], [0], [1], [0, 0, 1, 1], [], []>} : vector<256x64xbf16>, vector<64x128xbf16>, vector<256x128xf32> -> vector<256x128xf32>
    %c0_4 = arith.constant 0 : index
    %c0_5 = arith.constant 0 : index
    %7 = vector.load %arg4[%c0_4, %c0_5] : memref<1x128xf32, #tpu.memory_space<vmem>>, vector<1x128xf32>
    %8 = vector.broadcast %7 : vector<1x128xf32> to vector<256x128xf32>
    %9 = arith.addf %6, %8 : vector<256x128xf32>
    %10 = arith.truncf %9 : vector<256x128xf32> to vector<256x128xbf16>
    %c0_6 = arith.constant 0 : index
    %c0_7 = arith.constant 0 : index
    %11 = vector.load %arg5[%c0_6, %c0_7] : memref<256x128xbf16, #tpu.memory_space<vmem>>, vector<256x128xbf16>
    tpu.vector_store %arg5[%c0_6, %c0_7], %10 {strides = array<i32>} : memref<256x128xbf16, #tpu.memory_space<vmem>>, vector<256x128xbf16>,
    %c0_8 = arith.constant 0 : index
    %c0_9 = arith.constant 0 : index
    %c0_10 = arith.constant 0 : index
    %12 = vector.load %arg6[%c0_8, %c0_9, %c0_10] : memref<1x1x128xf32, #tpu.memory_space<vmem>>, vector<1x1x128xf32>
    %13 = vector.shape_cast %12 : vector<1x1x128xf32> to vector<1x128xf32>
    %cst_11 = arith.constant dense<0.000000e+00> : vector<128xf32>
    %14 = vector.multi_reduction <add>, %9, %cst_11 [0] : vector<256x128xf32> to vector<128xf32>
    %15 = vector.shape_cast %14 : vector<128xf32> to vector<1x128xf32>
    %16 = arith.addf %13, %15 : vector<1x128xf32>
    %c0_12 = arith.constant 0 : index
    %c0_13 = arith.constant 0 : index
    %c0_14 = arith.constant 0 : index
    %17 = vector.load %arg6[%c0_12, %c0_13, %c0_14] : memref<1x1x128xf32, #tpu.memory_space<vmem>>, vector<1x1x128xf32>
    %18 = vector.shape_cast %17 : vector<1x1x128xf32> to vector<1x128xf32>
    %19 = vector.shape_cast %16 : vector<1x128xf32> to vector<1x1x128xf32>
    tpu.vector_store %arg6[%c0_12, %c0_13, %c0_14], %19 {strides = array<i32>} : memref<1x1x128xf32, #tpu.memory_space<vmem>>, vector<1x1x128xf32>,
    %c0_15 = arith.constant 0 : index
    %c0_16 = arith.constant 0 : index
    %c0_17 = arith.constant 0 : index
    %20 = vector.load %arg7[%c0_15, %c0_16, %c0_17] : memref<1x1x128xf32, #tpu.memory_space<vmem>>, vector<1x1x128xf32>
    %21 = vector.shape_cast %20 : vector<1x1x128xf32> to vector<1x128xf32>
    %22 = arith.mulf %9, %9 : vector<256x128xf32>
    %cst_18 = arith.constant dense<0.000000e+00> : vector<128xf32>
    %23 = vector.multi_reduction <add>, %22, %cst_18 [0] : vector<256x128xf32> to vector<128xf32>
    %24 = vector.shape_cast %23 : vector<128xf32> to vector<1x128xf32>
    %25 = arith.addf %21, %24 : vector<1x128xf32>
    %c0_19 = arith.constant 0 : index
    %c0_20 = arith.constant 0 : index
    %c0_21 = arith.constant 0 : index
    %26 = vector.load %arg7[%c0_19, %c0_20, %c0_21] : memref<1x1x128xf32, #tpu.memory_space<vmem>>, vector<1x1x128xf32>
    %27 = vector.shape_cast %26 : vector<1x1x128xf32> to vector<1x128xf32>
    %28 = vector.shape_cast %25 : vector<1x128xf32> to vector<1x1x128xf32>
    tpu.vector_store %arg7[%c0_19, %c0_20, %c0_21], %28 {strides = array<i32>} : memref<1x1x128xf32, #tpu.memory_space<vmem>>, vector<1x1x128xf32>,
    return
  }
  func.func @transform_0(%arg0: i32, %arg1: i32) -> (i32, i32) {
    %c1_i32 = arith.constant 1 : i32
    %0 = arith.muli %arg0, %c1_i32 : i32
    %1 = arith.addi %0, %arg1 : i32
    %c0_i32 = arith.constant 0 : i32
    %c0_i32_0 = arith.constant 0 : i32
    return %1, %c0_i32 : i32, i32
  }
  func.func @transform_1(%arg0: i32, %arg1: i32) -> (i32, i32) {
    %c0_i32 = arith.constant 0 : i32
    %c0_i32_0 = arith.constant 0 : i32
    %c0_i32_1 = arith.constant 0 : i32
    return %c0_i32, %c0_i32_0 : i32, i32
  }
  func.func @transform_2(%arg0: i32, %arg1: i32) -> (i32, i32) {
    %c0_i32 = arith.constant 0 : i32
    %c0_i32_0 = arith.constant 0 : i32
    %c0_i32_1 = arith.constant 0 : i32
    return %c0_i32, %c0_i32_0 : i32, i32
  }
  func.func @transform_3(%arg0: i32, %arg1: i32) -> (i32, i32) {
    %c1_i32 = arith.constant 1 : i32
    %0 = arith.muli %arg0, %c1_i32 : i32
    %1 = arith.addi %0, %arg1 : i32
    %c0_i32 = arith.constant 0 : i32
    %c0_i32_0 = arith.constant 0 : i32
    return %1, %c0_i32 : i32, i32
  }
  func.func @transform_4(%arg0: i32, %arg1: i32) -> (i32, i32, i32) {
    %c0_i32 = arith.constant 0 : i32
    %c0_i32_0 = arith.constant 0 : i32
    %c0_i32_1 = arith.constant 0 : i32
    return %arg0, %c0_i32, %c0_i32_0 : i32, i32, i32
  }
  func.func @transform_5(%arg0: i32, %arg1: i32) -> (i32, i32, i32) {
    %c0_i32 = arith.constant 0 : i32
    %c0_i32_0 = arith.constant 0 : i32
    %c0_i32_1 = arith.constant 0 : i32
    return %arg0, %c0_i32, %c0_i32_0 : i32, i32, i32
  }
}

module attributes {stable_mosaic.version = 11 : i64} {
  func.func @_bn_relu_pad_kernel(%arg0: i32, %arg1: memref<1x256x128xbf16, #tpu.memory_space<vmem>>, %arg2: memref<1x128xf32, #tpu.memory_space<vmem>>, %arg3: memref<1x128xf32, #tpu.memory_space<vmem>>, %arg4: memref<1x18x18x128xbf16, #tpu.memory_space<vmem>>) attributes {dimension_semantics = [#tpu.dimension_semantics<parallel>], iteration_bounds = array<i64: 2>, scalar_prefetch = 0 : i64, scratch_operands = 0 : i64, tpu.core_type = #tpu.core_type<tc>, window_params = [{transform_indices = @transform_0, window_bounds = array<i64: 1, 256, 128>}, {pipeline_mode = #tpu.pipeline_mode<synchronous>, transform_indices = @transform_1, window_bounds = array<i64: 1, 128>}, {pipeline_mode = #tpu.pipeline_mode<synchronous>, transform_indices = @transform_2, window_bounds = array<i64: 1, 128>}, {transform_indices = @transform_3, window_bounds = array<i64: 1, 18, 18, 128>}]} {
    %c0 = arith.constant 0 : index
    %c0_0 = arith.constant 0 : index
    %c0_1 = arith.constant 0 : index
    %0 = vector.load %arg1[%c0, %c0_0, %c0_1] : memref<1x256x128xbf16, #tpu.memory_space<vmem>>, vector<1x256x128xbf16>
    %1 = vector.shape_cast %0 : vector<1x256x128xbf16> to vector<256x128xbf16>
    %2 = arith.extf %1 : vector<256x128xbf16> to vector<256x128xf32>
    %c0_2 = arith.constant 0 : index
    %c0_3 = arith.constant 0 : index
    %3 = vector.load %arg2[%c0_2, %c0_3] : memref<1x128xf32, #tpu.memory_space<vmem>>, vector<1x128xf32>
    %4 = vector.broadcast %3 : vector<1x128xf32> to vector<256x128xf32>
    %5 = arith.mulf %2, %4 : vector<256x128xf32>
    %c0_4 = arith.constant 0 : index
    %c0_5 = arith.constant 0 : index
    %6 = vector.load %arg3[%c0_4, %c0_5] : memref<1x128xf32, #tpu.memory_space<vmem>>, vector<1x128xf32>
    %7 = vector.broadcast %6 : vector<1x128xf32> to vector<256x128xf32>
    %8 = arith.addf %5, %7 : vector<256x128xf32>
    %cst = arith.constant 0.000000e+00 : f32
    %9 = vector.broadcast %cst : f32 to vector<256x128xf32>
    %10 = arith.maximumf %8, %9 : vector<256x128xf32>
    %11 = arith.truncf %10 : vector<256x128xf32> to vector<256x128xbf16>
    %12 = vector.shape_cast %11 : vector<256x128xbf16> to vector<16x16x128xbf16>
    %cst_6 = arith.constant 0.000000e+00 : bf16
    %13 = vector.broadcast %cst_6 : bf16 to vector<18x18x128xbf16>
    %c0_7 = arith.constant 0 : index
    %c0_8 = arith.constant 0 : index
    %c0_9 = arith.constant 0 : index
    %c0_10 = arith.constant 0 : index
    %14 = vector.load %arg4[%c0_7, %c0_8, %c0_9, %c0_10] : memref<1x18x18x128xbf16, #tpu.memory_space<vmem>>, vector<1x18x18x128xbf16>
    %15 = vector.shape_cast %14 : vector<1x18x18x128xbf16> to vector<18x18x128xbf16>
    %16 = vector.shape_cast %13 : vector<18x18x128xbf16> to vector<1x18x18x128xbf16>
    tpu.vector_store %arg4[%c0_7, %c0_8, %c0_9, %c0_10], %16 {strides = array<i32>} : memref<1x18x18x128xbf16, #tpu.memory_space<vmem>>, vector<1x18x18x128xbf16>,
    %c0_11 = arith.constant 0 : index
    %c1 = arith.constant 1 : index
    %c1_12 = arith.constant 1 : index
    %c0_13 = arith.constant 0 : index
    %17 = vector.load %arg4[%c0_11, %c1, %c1_12, %c0_13] : memref<1x18x18x128xbf16, #tpu.memory_space<vmem>>, vector<1x16x16x128xbf16>
    %18 = vector.shape_cast %17 : vector<1x16x16x128xbf16> to vector<16x16x128xbf16>
    %19 = vector.shape_cast %12 : vector<16x16x128xbf16> to vector<1x16x16x128xbf16>
    tpu.vector_store %arg4[%c0_11, %c1, %c1_12, %c0_13], %19 {strides = array<i32>} : memref<1x18x18x128xbf16, #tpu.memory_space<vmem>>, vector<1x16x16x128xbf16>,
    return
  }
  func.func @transform_0(%arg0: i32) -> (i32, i32, i32) {
    %c0_i32 = arith.constant 0 : i32
    %c0_i32_0 = arith.constant 0 : i32
    %c0_i32_1 = arith.constant 0 : i32
    return %arg0, %c0_i32, %c0_i32_0 : i32, i32, i32
  }
  func.func @transform_1(%arg0: i32) -> (i32, i32) {
    %c0_i32 = arith.constant 0 : i32
    %c0_i32_0 = arith.constant 0 : i32
    %c0_i32_1 = arith.constant 0 : i32
    return %c0_i32, %c0_i32_0 : i32, i32
  }
  func.func @transform_2(%arg0: i32) -> (i32, i32) {
    %c0_i32 = arith.constant 0 : i32
    %c0_i32_0 = arith.constant 0 : i32
    %c0_i32_1 = arith.constant 0 : i32
    return %c0_i32, %c0_i32_0 : i32, i32
  }
  func.func @transform_3(%arg0: i32) -> (i32, i32, i32, i32) {
    %c0_i32 = arith.constant 0 : i32
    %c0_i32_0 = arith.constant 0 : i32
    %c0_i32_1 = arith.constant 0 : i32
    %c0_i32_2 = arith.constant 0 : i32
    return %arg0, %c0_i32, %c0_i32_0, %c0_i32_1 : i32, i32, i32, i32
  }
}

module attributes {stable_mosaic.version = 11 : i64} {
  func.func @_conv3x3_bn2_kernel(%arg0: i32, %arg1: i32, %arg2: memref<1x8x18x128xbf16, #tpu.memory_space<vmem>>, %arg3: memref<1x1x18x128xbf16, #tpu.memory_space<vmem>>, %arg4: memref<1x1x18x128xbf16, #tpu.memory_space<vmem>>, %arg5: memref<1152x128xbf16, #tpu.memory_space<vmem>>, %arg6: memref<1x128xf32, #tpu.memory_space<vmem>>, %arg7: memref<1x8x16x128xbf16, #tpu.memory_space<vmem>>, %arg8: memref<1x1x128xf32, #tpu.memory_space<vmem>>, %arg9: memref<1x1x128xf32, #tpu.memory_space<vmem>>) attributes {dimension_semantics = [#tpu.dimension_semantics<parallel>, #tpu.dimension_semantics<arbitrary>], iteration_bounds = array<i64: 2, 2>, scalar_prefetch = 0 : i64, scratch_operands = 0 : i64, tpu.core_type = #tpu.core_type<tc>, window_params = [{transform_indices = @transform_0, window_bounds = array<i64: 1, 8, 18, 128>}, {transform_indices = @transform_1, window_bounds = array<i64: 1, 1, 18, 128>}, {transform_indices = @transform_2, window_bounds = array<i64: 1, 1, 18, 128>}, {pipeline_mode = #tpu.pipeline_mode<synchronous>, transform_indices = @transform_3, window_bounds = array<i64: 1152, 128>}, {pipeline_mode = #tpu.pipeline_mode<synchronous>, transform_indices = @transform_4, window_bounds = array<i64: 1, 128>}, {transform_indices = @transform_5, window_bounds = array<i64: 1, 8, 16, 128>}, {transform_indices = @transform_6, window_bounds = array<i64: 1, 1, 128>}, {transform_indices = @transform_7, window_bounds = array<i64: 1, 1, 128>}]} {
    %c0_i32 = arith.constant 0 : i32
    %0 = arith.cmpi eq, %arg1, %c0_i32 : i32
    %1 = arith.extui %0 : i1 to i32
    %c0_i32_0 = arith.constant 0 : i32
    %2 = arith.cmpi ne, %1, %c0_i32_0 : i32
    scf.if %2 {
      %cst_354 = arith.constant 0.000000e+00 : f32
      %283 = vector.broadcast %cst_354 : f32 to vector<1x1x128xf32>
      %c0_355 = arith.constant 0 : index
      %c0_356 = arith.constant 0 : index
      %c0_357 = arith.constant 0 : index
      %284 = vector.load %arg8[%c0_355, %c0_356, %c0_357] : memref<1x1x128xf32, #tpu.memory_space<vmem>>, vector<1x1x128xf32>
      tpu.vector_store %arg8[%c0_355, %c0_356, %c0_357], %283 {strides = array<i32>} : memref<1x1x128xf32, #tpu.memory_space<vmem>>, vector<1x1x128xf32>,
      %cst_358 = arith.constant 0.000000e+00 : f32
      %285 = vector.broadcast %cst_358 : f32 to vector<1x1x128xf32>
      %c0_359 = arith.constant 0 : index
      %c0_360 = arith.constant 0 : index
      %c0_361 = arith.constant 0 : index
      %286 = vector.load %arg9[%c0_359, %c0_360, %c0_361] : memref<1x1x128xf32, #tpu.memory_space<vmem>>, vector<1x1x128xf32>
      tpu.vector_store %arg9[%c0_359, %c0_360, %c0_361], %285 {strides = array<i32>} : memref<1x1x128xf32, #tpu.memory_space<vmem>>, vector<1x1x128xf32>,
    } else {
    }
    %c0 = arith.constant 0 : index
    %c0_1 = arith.constant 0 : index
    %3 = vector.load %arg5[%c0, %c0_1] : memref<1152x128xbf16, #tpu.memory_space<vmem>>, vector<1152x128xbf16>
    %c0_2 = arith.constant 0 : index
    %c0_3 = arith.constant 0 : index
    %4 = vector.load %arg6[%c0_2, %c0_3] : memref<1x128xf32, #tpu.memory_space<vmem>>, vector<1x128xf32>
    %cst = arith.constant 0.000000e+00 : f32
    %5 = vector.broadcast %cst : f32 to vector<1x128xf32>
    %cst_4 = arith.constant 0.000000e+00 : f32
    %6 = vector.broadcast %cst_4 : f32 to vector<1x128xf32>
    %c0_5 = arith.constant 0 : index
    %c0_6 = arith.constant 0 : index
    %c0_7 = arith.constant 0 : index
    %c0_8 = arith.constant 0 : index
    %7 = vector.load %arg2[%c0_5, %c0_6, %c0_7, %c0_8] : memref<1x8x18x128xbf16, #tpu.memory_space<vmem>>, vector<1x1x16x128xbf16>
    %8 = vector.shape_cast %7 : vector<1x1x16x128xbf16> to vector<16x128xbf16>
    %c0_9 = arith.constant 0 : index
    %c0_10 = arith.constant 0 : index
    %c1 = arith.constant 1 : index
    %c0_11 = arith.constant 0 : index
    %9 = vector.load %arg2[%c0_9, %c0_10, %c1, %c0_11] : memref<1x8x18x128xbf16, #tpu.memory_space<vmem>>, vector<1x1x16x128xbf16>
    %10 = vector.shape_cast %9 : vector<1x1x16x128xbf16> to vector<16x128xbf16>
    %c0_12 = arith.constant 0 : index
    %c0_13 = arith.constant 0 : index
    %c2 = arith.constant 2 : index
    %c0_14 = arith.constant 0 : index
    %11 = vector.load %arg2[%c0_12, %c0_13, %c2, %c0_14] : memref<1x8x18x128xbf16, #tpu.memory_space<vmem>>, vector<1x1x16x128xbf16>
    %12 = vector.shape_cast %11 : vector<1x1x16x128xbf16> to vector<16x128xbf16>
    %c0_15 = arith.constant 0 : index
    %c1_16 = arith.constant 1 : index
    %c0_17 = arith.constant 0 : index
    %c0_18 = arith.constant 0 : index
    %13 = vector.load %arg2[%c0_15, %c1_16, %c0_17, %c0_18] : memref<1x8x18x128xbf16, #tpu.memory_space<vmem>>, vector<1x1x16x128xbf16>
    %14 = vector.shape_cast %13 : vector<1x1x16x128xbf16> to vector<16x128xbf16>
    %c0_19 = arith.constant 0 : index
    %c1_20 = arith.constant 1 : index
    %c1_21 = arith.constant 1 : index
    %c0_22 = arith.constant 0 : index
    %15 = vector.load %arg2[%c0_19, %c1_20, %c1_21, %c0_22] : memref<1x8x18x128xbf16, #tpu.memory_space<vmem>>, vector<1x1x16x128xbf16>
    %16 = vector.shape_cast %15 : vector<1x1x16x128xbf16> to vector<16x128xbf16>
    %c0_23 = arith.constant 0 : index
    %c1_24 = arith.constant 1 : index
    %c2_25 = arith.constant 2 : index
    %c0_26 = arith.constant 0 : index
    %17 = vector.load %arg2[%c0_23, %c1_24, %c2_25, %c0_26] : memref<1x8x18x128xbf16, #tpu.memory_space<vmem>>, vector<1x1x16x128xbf16>
    %18 = vector.shape_cast %17 : vector<1x1x16x128xbf16> to vector<16x128xbf16>
    %c0_27 = arith.constant 0 : index
    %c2_28 = arith.constant 2 : index
    %c0_29 = arith.constant 0 : index
    %c0_30 = arith.constant 0 : index
    %19 = vector.load %arg2[%c0_27, %c2_28, %c0_29, %c0_30] : memref<1x8x18x128xbf16, #tpu.memory_space<vmem>>, vector<1x1x16x128xbf16>
    %20 = vector.shape_cast %19 : vector<1x1x16x128xbf16> to vector<16x128xbf16>
    %c0_31 = arith.constant 0 : index
    %c2_32 = arith.constant 2 : index
    %c1_33 = arith.constant 1 : index
    %c0_34 = arith.constant 0 : index
    %21 = vector.load %arg2[%c0_31, %c2_32, %c1_33, %c0_34] : memref<1x8x18x128xbf16, #tpu.memory_space<vmem>>, vector<1x1x16x128xbf16>
    %22 = vector.shape_cast %21 : vector<1x1x16x128xbf16> to vector<16x128xbf16>
    %c0_35 = arith.constant 0 : index
    %c2_36 = arith.constant 2 : index
    %c2_37 = arith.constant 2 : index
    %c0_38 = arith.constant 0 : index
    %23 = vector.load %arg2[%c0_35, %c2_36, %c2_37, %c0_38] : memref<1x8x18x128xbf16, #tpu.memory_space<vmem>>, vector<1x1x16x128xbf16>
    %24 = vector.shape_cast %23 : vector<1x1x16x128xbf16> to vector<16x128xbf16>
    %25 = tpu.concatenate %8, %10, %12, %14, %16, %18, %20, %22, %24 in 1 : vector<16x128xbf16>, vector<16x128xbf16>, vector<16x128xbf16>, vector<16x128xbf16>, vector<16x128xbf16>, vector<16x128xbf16>, vector<16x128xbf16>, vector<16x128xbf16>, vector<16x128xbf16> -> vector<16x1152xbf16>
    %cst_39 = arith.constant dense<0.000000e+00> : vector<16x128xf32>
    %26 = tpu.matmul %25, %3, %cst_39 {dimension_numbers = #tpu.dot_dimension_numbers<[1], [0], [0], [1], [0, 0, 1, 1], [], []>} : vector<16x1152xbf16>, vector<1152x128xbf16>, vector<16x128xf32> -> vector<16x128xf32>
    %27 = vector.broadcast %4 : vector<1x128xf32> to vector<16x128xf32>
    %28 = arith.addf %26, %27 : vector<16x128xf32>
    %29 = arith.truncf %28 : vector<16x128xf32> to vector<16x128xbf16>
    %c0_40 = arith.constant 0 : index
    %c0_41 = arith.constant 0 : index
    %c0_42 = arith.constant 0 : index
    %c0_43 = arith.constant 0 : index
    %30 = vector.load %arg7[%c0_40, %c0_41, %c0_42, %c0_43] : memref<1x8x16x128xbf16, #tpu.memory_space<vmem>>, vector<1x1x16x128xbf16>
    %31 = vector.shape_cast %30 : vector<1x1x16x128xbf16> to vector<16x128xbf16>
    %32 = vector.shape_cast %29 : vector<16x128xbf16> to vector<1x1x16x128xbf16>
    tpu.vector_store %arg7[%c0_40, %c0_41, %c0_42, %c0_43], %32 {strides = array<i32>} : memref<1x8x16x128xbf16, #tpu.memory_space<vmem>>, vector<1x1x16x128xbf16>,
    %cst_44 = arith.constant dense<0.000000e+00> : vector<128xf32>
    %33 = vector.multi_reduction <add>, %28, %cst_44 [0] : vector<16x128xf32> to vector<128xf32>
    %34 = vector.shape_cast %33 : vector<128xf32> to vector<1x128xf32>
    %35 = arith.addf %5, %34 : vector<1x128xf32>
    %36 = arith.mulf %28, %28 : vector<16x128xf32>
    %cst_45 = arith.constant dense<0.000000e+00> : vector<128xf32>
    %37 = vector.multi_reduction <add>, %36, %cst_45 [0] : vector<16x128xf32> to vector<128xf32>
    %38 = vector.shape_cast %37 : vector<128xf32> to vector<1x128xf32>
    %39 = arith.addf %6, %38 : vector<1x128xf32>
    %c0_46 = arith.constant 0 : index
    %c1_47 = arith.constant 1 : index
    %c0_48 = arith.constant 0 : index
    %c0_49 = arith.constant 0 : index
    %40 = vector.load %arg2[%c0_46, %c1_47, %c0_48, %c0_49] : memref<1x8x18x128xbf16, #tpu.memory_space<vmem>>, vector<1x1x16x128xbf16>
    %41 = vector.shape_cast %40 : vector<1x1x16x128xbf16> to vector<16x128xbf16>
    %c0_50 = arith.constant 0 : index
    %c1_51 = arith.constant 1 : index
    %c1_52 = arith.constant 1 : index
    %c0_53 = arith.constant 0 : index
    %42 = vector.load %arg2[%c0_50, %c1_51, %c1_52, %c0_53] : memref<1x8x18x128xbf16, #tpu.memory_space<vmem>>, vector<1x1x16x128xbf16>
    %43 = vector.shape_cast %42 : vector<1x1x16x128xbf16> to vector<16x128xbf16>
    %c0_54 = arith.constant 0 : index
    %c1_55 = arith.constant 1 : index
    %c2_56 = arith.constant 2 : index
    %c0_57 = arith.constant 0 : index
    %44 = vector.load %arg2[%c0_54, %c1_55, %c2_56, %c0_57] : memref<1x8x18x128xbf16, #tpu.memory_space<vmem>>, vector<1x1x16x128xbf16>
    %45 = vector.shape_cast %44 : vector<1x1x16x128xbf16> to vector<16x128xbf16>
    %c0_58 = arith.constant 0 : index
    %c2_59 = arith.constant 2 : index
    %c0_60 = arith.constant 0 : index
    %c0_61 = arith.constant 0 : index
    %46 = vector.load %arg2[%c0_58, %c2_59, %c0_60, %c0_61] : memref<1x8x18x128xbf16, #tpu.memory_space<vmem>>, vector<1x1x16x128xbf16>
    %47 = vector.shape_cast %46 : vector<1x1x16x128xbf16> to vector<16x128xbf16>
    %c0_62 = arith.constant 0 : index
    %c2_63 = arith.constant 2 : index
    %c1_64 = arith.constant 1 : index
    %c0_65 = arith.constant 0 : index
    %48 = vector.load %arg2[%c0_62, %c2_63, %c1_64, %c0_65] : memref<1x8x18x128xbf16, #tpu.memory_space<vmem>>, vector<1x1x16x128xbf16>
    %49 = vector.shape_cast %48 : vector<1x1x16x128xbf16> to vector<16x128xbf16>
    %c0_66 = arith.constant 0 : index
    %c2_67 = arith.constant 2 : index
    %c2_68 = arith.constant 2 : index
    %c0_69 = arith.constant 0 : index
    %50 = vector.load %arg2[%c0_66, %c2_67, %c2_68, %c0_69] : memref<1x8x18x128xbf16, #tpu.memory_space<vmem>>, vector<1x1x16x128xbf16>
    %51 = vector.shape_cast %50 : vector<1x1x16x128xbf16> to vector<16x128xbf16>
    %c0_70 = arith.constant 0 : index
    %c3 = arith.constant 3 : index
    %c0_71 = arith.constant 0 : index
    %c0_72 = arith.constant 0 : index
    %52 = vector.load %arg2[%c0_70, %c3, %c0_71, %c0_72] : memref<1x8x18x128xbf16, #tpu.memory_space<vmem>>, vector<1x1x16x128xbf16>
    %53 = vector.shape_cast %52 : vector<1x1x16x128xbf16> to vector<16x128xbf16>
    %c0_73 = arith.constant 0 : index
    %c3_74 = arith.constant 3 : index
    %c1_75 = arith.constant 1 : index
    %c0_76 = arith.constant 0 : index
    %54 = vector.load %arg2[%c0_73, %c3_74, %c1_75, %c0_76] : memref<1x8x18x128xbf16, #tpu.memory_space<vmem>>, vector<1x1x16x128xbf16>
    %55 = vector.shape_cast %54 : vector<1x1x16x128xbf16> to vector<16x128xbf16>
    %c0_77 = arith.constant 0 : index
    %c3_78 = arith.constant 3 : index
    %c2_79 = arith.constant 2 : index
    %c0_80 = arith.constant 0 : index
    %56 = vector.load %arg2[%c0_77, %c3_78, %c2_79, %c0_80] : memref<1x8x18x128xbf16, #tpu.memory_space<vmem>>, vector<1x1x16x128xbf16>
    %57 = vector.shape_cast %56 : vector<1x1x16x128xbf16> to vector<16x128xbf16>
    %58 = tpu.concatenate %41, %43, %45, %47, %49, %51, %53, %55, %57 in 1 : vector<16x128xbf16>, vector<16x128xbf16>, vector<16x128xbf16>, vector<16x128xbf16>, vector<16x128xbf16>, vector<16x128xbf16>, vector<16x128xbf16>, vector<16x128xbf16>, vector<16x128xbf16> -> vector<16x1152xbf16>
    %cst_81 = arith.constant dense<0.000000e+00> : vector<16x128xf32>
    %59 = tpu.matmul %58, %3, %cst_81 {dimension_numbers = #tpu.dot_dimension_numbers<[1], [0], [0], [1], [0, 0, 1, 1], [], []>} : vector<16x1152xbf16>, vector<1152x128xbf16>, vector<16x128xf32> -> vector<16x128xf32>
    %60 = vector.broadcast %4 : vector<1x128xf32> to vector<16x128xf32>
    %61 = arith.addf %59, %60 : vector<16x128xf32>
    %62 = arith.truncf %61 : vector<16x128xf32> to vector<16x128xbf16>
    %c0_82 = arith.constant 0 : index
    %c1_83 = arith.constant 1 : index
    %c0_84 = arith.constant 0 : index
    %c0_85 = arith.constant 0 : index
    %63 = vector.load %arg7[%c0_82, %c1_83, %c0_84, %c0_85] : memref<1x8x16x128xbf16, #tpu.memory_space<vmem>>, vector<1x1x16x128xbf16>
    %64 = vector.shape_cast %63 : vector<1x1x16x128xbf16> to vector<16x128xbf16>
    %65 = vector.shape_cast %62 : vector<16x128xbf16> to vector<1x1x16x128xbf16>
    tpu.vector_store %arg7[%c0_82, %c1_83, %c0_84, %c0_85], %65 {strides = array<i32>} : memref<1x8x16x128xbf16, #tpu.memory_space<vmem>>, vector<1x1x16x128xbf16>,
    %cst_86 = arith.constant dense<0.000000e+00> : vector<128xf32>
    %66 = vector.multi_reduction <add>, %61, %cst_86 [0] : vector<16x128xf32> to vector<128xf32>
    %67 = vector.shape_cast %66 : vector<128xf32> to vector<1x128xf32>
    %68 = arith.addf %35, %67 : vector<1x128xf32>
    %69 = arith.mulf %61, %61 : vector<16x128xf32>
    %cst_87 = arith.constant dense<0.000000e+00> : vector<128xf32>
    %70 = vector.multi_reduction <add>, %69, %cst_87 [0] : vector<16x128xf32> to vector<128xf32>
    %71 = vector.shape_cast %70 : vector<128xf32> to vector<1x128xf32>
    %72 = arith.addf %39, %71 : vector<1x128xf32>
    %c0_88 = arith.constant 0 : index
    %c2_89 = arith.constant 2 : index
    %c0_90 = arith.constant 0 : index
    %c0_91 = arith.constant 0 : index
    %73 = vector.load %arg2[%c0_88, %c2_89, %c0_90, %c0_91] : memref<1x8x18x128xbf16, #tpu.memory_space<vmem>>, vector<1x1x16x128xbf16>
    %74 = vector.shape_cast %73 : vector<1x1x16x128xbf16> to vector<16x128xbf16>
    %c0_92 = arith.constant 0 : index
    %c2_93 = arith.constant 2 : index
    %c1_94 = arith.constant 1 : index
    %c0_95 = arith.constant 0 : index
    %75 = vector.load %arg2[%c0_92, %c2_93, %c1_94, %c0_95] : memref<1x8x18x128xbf16, #tpu.memory_space<vmem>>, vector<1x1x16x128xbf16>
    %76 = vector.shape_cast %75 : vector<1x1x16x128xbf16> to vector<16x128xbf16>
    %c0_96 = arith.constant 0 : index
    %c2_97 = arith.constant 2 : index
    %c2_98 = arith.constant 2 : index
    %c0_99 = arith.constant 0 : index
    %77 = vector.load %arg2[%c0_96, %c2_97, %c2_98, %c0_99] : memref<1x8x18x128xbf16, #tpu.memory_space<vmem>>, vector<1x1x16x128xbf16>
    %78 = vector.shape_cast %77 : vector<1x1x16x128xbf16> to vector<16x128xbf16>
    %c0_100 = arith.constant 0 : index
    %c3_101 = arith.constant 3 : index
    %c0_102 = arith.constant 0 : index
    %c0_103 = arith.constant 0 : index
    %79 = vector.load %arg2[%c0_100, %c3_101, %c0_102, %c0_103] : memref<1x8x18x128xbf16, #tpu.memory_space<vmem>>, vector<1x1x16x128xbf16>
    %80 = vector.shape_cast %79 : vector<1x1x16x128xbf16> to vector<16x128xbf16>
    %c0_104 = arith.constant 0 : index
    %c3_105 = arith.constant 3 : index
    %c1_106 = arith.constant 1 : index
    %c0_107 = arith.constant 0 : index
    %81 = vector.load %arg2[%c0_104, %c3_105, %c1_106, %c0_107] : memref<1x8x18x128xbf16, #tpu.memory_space<vmem>>, vector<1x1x16x128xbf16>
    %82 = vector.shape_cast %81 : vector<1x1x16x128xbf16> to vector<16x128xbf16>
    %c0_108 = arith.constant 0 : index
    %c3_109 = arith.constant 3 : index
    %c2_110 = arith.constant 2 : index
    %c0_111 = arith.constant 0 : index
    %83 = vector.load %arg2[%c0_108, %c3_109, %c2_110, %c0_111] : memref<1x8x18x128xbf16, #tpu.memory_space<vmem>>, vector<1x1x16x128xbf16>
    %84 = vector.shape_cast %83 : vector<1x1x16x128xbf16> to vector<16x128xbf16>
    %c0_112 = arith.constant 0 : index
    %c4 = arith.constant 4 : index
    %c0_113 = arith.constant 0 : index
    %c0_114 = arith.constant 0 : index
    %85 = vector.load %arg2[%c0_112, %c4, %c0_113, %c0_114] : memref<1x8x18x128xbf16, #tpu.memory_space<vmem>>, vector<1x1x16x128xbf16>
    %86 = vector.shape_cast %85 : vector<1x1x16x128xbf16> to vector<16x128xbf16>
    %c0_115 = arith.constant 0 : index
    %c4_116 = arith.constant 4 : index
    %c1_117 = arith.constant 1 : index
    %c0_118 = arith.constant 0 : index
    %87 = vector.load %arg2[%c0_115, %c4_116, %c1_117, %c0_118] : memref<1x8x18x128xbf16, #tpu.memory_space<vmem>>, vector<1x1x16x128xbf16>
    %88 = vector.shape_cast %87 : vector<1x1x16x128xbf16> to vector<16x128xbf16>
    %c0_119 = arith.constant 0 : index
    %c4_120 = arith.constant 4 : index
    %c2_121 = arith.constant 2 : index
    %c0_122 = arith.constant 0 : index
    %89 = vector.load %arg2[%c0_119, %c4_120, %c2_121, %c0_122] : memref<1x8x18x128xbf16, #tpu.memory_space<vmem>>, vector<1x1x16x128xbf16>
    %90 = vector.shape_cast %89 : vector<1x1x16x128xbf16> to vector<16x128xbf16>
    %91 = tpu.concatenate %74, %76, %78, %80, %82, %84, %86, %88, %90 in 1 : vector<16x128xbf16>, vector<16x128xbf16>, vector<16x128xbf16>, vector<16x128xbf16>, vector<16x128xbf16>, vector<16x128xbf16>, vector<16x128xbf16>, vector<16x128xbf16>, vector<16x128xbf16> -> vector<16x1152xbf16>
    %cst_123 = arith.constant dense<0.000000e+00> : vector<16x128xf32>
    %92 = tpu.matmul %91, %3, %cst_123 {dimension_numbers = #tpu.dot_dimension_numbers<[1], [0], [0], [1], [0, 0, 1, 1], [], []>} : vector<16x1152xbf16>, vector<1152x128xbf16>, vector<16x128xf32> -> vector<16x128xf32>
    %93 = vector.broadcast %4 : vector<1x128xf32> to vector<16x128xf32>
    %94 = arith.addf %92, %93 : vector<16x128xf32>
    %95 = arith.truncf %94 : vector<16x128xf32> to vector<16x128xbf16>
    %c0_124 = arith.constant 0 : index
    %c2_125 = arith.constant 2 : index
    %c0_126 = arith.constant 0 : index
    %c0_127 = arith.constant 0 : index
    %96 = vector.load %arg7[%c0_124, %c2_125, %c0_126, %c0_127] : memref<1x8x16x128xbf16, #tpu.memory_space<vmem>>, vector<1x1x16x128xbf16>
    %97 = vector.shape_cast %96 : vector<1x1x16x128xbf16> to vector<16x128xbf16>
    %98 = vector.shape_cast %95 : vector<16x128xbf16> to vector<1x1x16x128xbf16>
    tpu.vector_store %arg7[%c0_124, %c2_125, %c0_126, %c0_127], %98 {strides = array<i32>} : memref<1x8x16x128xbf16, #tpu.memory_space<vmem>>, vector<1x1x16x128xbf16>,
    %cst_128 = arith.constant dense<0.000000e+00> : vector<128xf32>
    %99 = vector.multi_reduction <add>, %94, %cst_128 [0] : vector<16x128xf32> to vector<128xf32>
    %100 = vector.shape_cast %99 : vector<128xf32> to vector<1x128xf32>
    %101 = arith.addf %68, %100 : vector<1x128xf32>
    %102 = arith.mulf %94, %94 : vector<16x128xf32>
    %cst_129 = arith.constant dense<0.000000e+00> : vector<128xf32>
    %103 = vector.multi_reduction <add>, %102, %cst_129 [0] : vector<16x128xf32> to vector<128xf32>
    %104 = vector.shape_cast %103 : vector<128xf32> to vector<1x128xf32>
    %105 = arith.addf %72, %104 : vector<1x128xf32>
    %c0_130 = arith.constant 0 : index
    %c3_131 = arith.constant 3 : index
    %c0_132 = arith.constant 0 : index
    %c0_133 = arith.constant 0 : index
    %106 = vector.load %arg2[%c0_130, %c3_131, %c0_132, %c0_133] : memref<1x8x18x128xbf16, #tpu.memory_space<vmem>>, vector<1x1x16x128xbf16>
    %107 = vector.shape_cast %106 : vector<1x1x16x128xbf16> to vector<16x128xbf16>
    %c0_134 = arith.constant 0 : index
    %c3_135 = arith.constant 3 : index
    %c1_136 = arith.constant 1 : index
    %c0_137 = arith.constant 0 : index
    %108 = vector.load %arg2[%c0_134, %c3_135, %c1_136, %c0_137] : memref<1x8x18x128xbf16, #tpu.memory_space<vmem>>, vector<1x1x16x128xbf16>
    %109 = vector.shape_cast %108 : vector<1x1x16x128xbf16> to vector<16x128xbf16>
    %c0_138 = arith.constant 0 : index
    %c3_139 = arith.constant 3 : index
    %c2_140 = arith.constant 2 : index
    %c0_141 = arith.constant 0 : index
    %110 = vector.load %arg2[%c0_138, %c3_139, %c2_140, %c0_141] : memref<1x8x18x128xbf16, #tpu.memory_space<vmem>>, vector<1x1x16x128xbf16>
    %111 = vector.shape_cast %110 : vector<1x1x16x128xbf16> to vector<16x128xbf16>
    %c0_142 = arith.constant 0 : index
    %c4_143 = arith.constant 4 : index
    %c0_144 = arith.constant 0 : index
    %c0_145 = arith.constant 0 : index
    %112 = vector.load %arg2[%c0_142, %c4_143, %c0_144, %c0_145] : memref<1x8x18x128xbf16, #tpu.memory_space<vmem>>, vector<1x1x16x128xbf16>
    %113 = vector.shape_cast %112 : vector<1x1x16x128xbf16> to vector<16x128xbf16>
    %c0_146 = arith.constant 0 : index
    %c4_147 = arith.constant 4 : index
    %c1_148 = arith.constant 1 : index
    %c0_149 = arith.constant 0 : index
    %114 = vector.load %arg2[%c0_146, %c4_147, %c1_148, %c0_149] : memref<1x8x18x128xbf16, #tpu.memory_space<vmem>>, vector<1x1x16x128xbf16>
    %115 = vector.shape_cast %114 : vector<1x1x16x128xbf16> to vector<16x128xbf16>
    %c0_150 = arith.constant 0 : index
    %c4_151 = arith.constant 4 : index
    %c2_152 = arith.constant 2 : index
    %c0_153 = arith.constant 0 : index
    %116 = vector.load %arg2[%c0_150, %c4_151, %c2_152, %c0_153] : memref<1x8x18x128xbf16, #tpu.memory_space<vmem>>, vector<1x1x16x128xbf16>
    %117 = vector.shape_cast %116 : vector<1x1x16x128xbf16> to vector<16x128xbf16>
    %c0_154 = arith.constant 0 : index
    %c5 = arith.constant 5 : index
    %c0_155 = arith.constant 0 : index
    %c0_156 = arith.constant 0 : index
    %118 = vector.load %arg2[%c0_154, %c5, %c0_155, %c0_156] : memref<1x8x18x128xbf16, #tpu.memory_space<vmem>>, vector<1x1x16x128xbf16>
    %119 = vector.shape_cast %118 : vector<1x1x16x128xbf16> to vector<16x128xbf16>
    %c0_157 = arith.constant 0 : index
    %c5_158 = arith.constant 5 : index
    %c1_159 = arith.constant 1 : index
    %c0_160 = arith.constant 0 : index
    %120 = vector.load %arg2[%c0_157, %c5_158, %c1_159, %c0_160] : memref<1x8x18x128xbf16, #tpu.memory_space<vmem>>, vector<1x1x16x128xbf16>
    %121 = vector.shape_cast %120 : vector<1x1x16x128xbf16> to vector<16x128xbf16>
    %c0_161 = arith.constant 0 : index
    %c5_162 = arith.constant 5 : index
    %c2_163 = arith.constant 2 : index
    %c0_164 = arith.constant 0 : index
    %122 = vector.load %arg2[%c0_161, %c5_162, %c2_163, %c0_164] : memref<1x8x18x128xbf16, #tpu.memory_space<vmem>>, vector<1x1x16x128xbf16>
    %123 = vector.shape_cast %122 : vector<1x1x16x128xbf16> to vector<16x128xbf16>
    %124 = tpu.concatenate %107, %109, %111, %113, %115, %117, %119, %121, %123 in 1 : vector<16x128xbf16>, vector<16x128xbf16>, vector<16x128xbf16>, vector<16x128xbf16>, vector<16x128xbf16>, vector<16x128xbf16>, vector<16x128xbf16>, vector<16x128xbf16>, vector<16x128xbf16> -> vector<16x1152xbf16>
    %cst_165 = arith.constant dense<0.000000e+00> : vector<16x128xf32>
    %125 = tpu.matmul %124, %3, %cst_165 {dimension_numbers = #tpu.dot_dimension_numbers<[1], [0], [0], [1], [0, 0, 1, 1], [], []>} : vector<16x1152xbf16>, vector<1152x128xbf16>, vector<16x128xf32> -> vector<16x128xf32>
    %126 = vector.broadcast %4 : vector<1x128xf32> to vector<16x128xf32>
    %127 = arith.addf %125, %126 : vector<16x128xf32>
    %128 = arith.truncf %127 : vector<16x128xf32> to vector<16x128xbf16>
    %c0_166 = arith.constant 0 : index
    %c3_167 = arith.constant 3 : index
    %c0_168 = arith.constant 0 : index
    %c0_169 = arith.constant 0 : index
    %129 = vector.load %arg7[%c0_166, %c3_167, %c0_168, %c0_169] : memref<1x8x16x128xbf16, #tpu.memory_space<vmem>>, vector<1x1x16x128xbf16>
    %130 = vector.shape_cast %129 : vector<1x1x16x128xbf16> to vector<16x128xbf16>
    %131 = vector.shape_cast %128 : vector<16x128xbf16> to vector<1x1x16x128xbf16>
    tpu.vector_store %arg7[%c0_166, %c3_167, %c0_168, %c0_169], %131 {strides = array<i32>} : memref<1x8x16x128xbf16, #tpu.memory_space<vmem>>, vector<1x1x16x128xbf16>,
    %cst_170 = arith.constant dense<0.000000e+00> : vector<128xf32>
    %132 = vector.multi_reduction <add>, %127, %cst_170 [0] : vector<16x128xf32> to vector<128xf32>
    %133 = vector.shape_cast %132 : vector<128xf32> to vector<1x128xf32>
    %134 = arith.addf %101, %133 : vector<1x128xf32>
    %135 = arith.mulf %127, %127 : vector<16x128xf32>
    %cst_171 = arith.constant dense<0.000000e+00> : vector<128xf32>
    %136 = vector.multi_reduction <add>, %135, %cst_171 [0] : vector<16x128xf32> to vector<128xf32>
    %137 = vector.shape_cast %136 : vector<128xf32> to vector<1x128xf32>
    %138 = arith.addf %105, %137 : vector<1x128xf32>
    %c0_172 = arith.constant 0 : index
    %c4_173 = arith.constant 4 : index
    %c0_174 = arith.constant 0 : index
    %c0_175 = arith.constant 0 : index
    %139 = vector.load %arg2[%c0_172, %c4_173, %c0_174, %c0_175] : memref<1x8x18x128xbf16, #tpu.memory_space<vmem>>, vector<1x1x16x128xbf16>
    %140 = vector.shape_cast %139 : vector<1x1x16x128xbf16> to vector<16x128xbf16>
    %c0_176 = arith.constant 0 : index
    %c4_177 = arith.constant 4 : index
    %c1_178 = arith.constant 1 : index
    %c0_179 = arith.constant 0 : index
    %141 = vector.load %arg2[%c0_176, %c4_177, %c1_178, %c0_179] : memref<1x8x18x128xbf16, #tpu.memory_space<vmem>>, vector<1x1x16x128xbf16>
    %142 = vector.shape_cast %141 : vector<1x1x16x128xbf16> to vector<16x128xbf16>
    %c0_180 = arith.constant 0 : index
    %c4_181 = arith.constant 4 : index
    %c2_182 = arith.constant 2 : index
    %c0_183 = arith.constant 0 : index
    %143 = vector.load %arg2[%c0_180, %c4_181, %c2_182, %c0_183] : memref<1x8x18x128xbf16, #tpu.memory_space<vmem>>, vector<1x1x16x128xbf16>
    %144 = vector.shape_cast %143 : vector<1x1x16x128xbf16> to vector<16x128xbf16>
    %c0_184 = arith.constant 0 : index
    %c5_185 = arith.constant 5 : index
    %c0_186 = arith.constant 0 : index
    %c0_187 = arith.constant 0 : index
    %145 = vector.load %arg2[%c0_184, %c5_185, %c0_186, %c0_187] : memref<1x8x18x128xbf16, #tpu.memory_space<vmem>>, vector<1x1x16x128xbf16>
    %146 = vector.shape_cast %145 : vector<1x1x16x128xbf16> to vector<16x128xbf16>
    %c0_188 = arith.constant 0 : index
    %c5_189 = arith.constant 5 : index
    %c1_190 = arith.constant 1 : index
    %c0_191 = arith.constant 0 : index
    %147 = vector.load %arg2[%c0_188, %c5_189, %c1_190, %c0_191] : memref<1x8x18x128xbf16, #tpu.memory_space<vmem>>, vector<1x1x16x128xbf16>
    %148 = vector.shape_cast %147 : vector<1x1x16x128xbf16> to vector<16x128xbf16>
    %c0_192 = arith.constant 0 : index
    %c5_193 = arith.constant 5 : index
    %c2_194 = arith.constant 2 : index
    %c0_195 = arith.constant 0 : index
    %149 = vector.load %arg2[%c0_192, %c5_193, %c2_194, %c0_195] : memref<1x8x18x128xbf16, #tpu.memory_space<vmem>>, vector<1x1x16x128xbf16>
    %150 = vector.shape_cast %149 : vector<1x1x16x128xbf16> to vector<16x128xbf16>
    %c0_196 = arith.constant 0 : index
    %c6 = arith.constant 6 : index
    %c0_197 = arith.constant 0 : index
    %c0_198 = arith.constant 0 : index
    %151 = vector.load %arg2[%c0_196, %c6, %c0_197, %c0_198] : memref<1x8x18x128xbf16, #tpu.memory_space<vmem>>, vector<1x1x16x128xbf16>
    %152 = vector.shape_cast %151 : vector<1x1x16x128xbf16> to vector<16x128xbf16>
    %c0_199 = arith.constant 0 : index
    %c6_200 = arith.constant 6 : index
    %c1_201 = arith.constant 1 : index
    %c0_202 = arith.constant 0 : index
    %153 = vector.load %arg2[%c0_199, %c6_200, %c1_201, %c0_202] : memref<1x8x18x128xbf16, #tpu.memory_space<vmem>>, vector<1x1x16x128xbf16>
    %154 = vector.shape_cast %153 : vector<1x1x16x128xbf16> to vector<16x128xbf16>
    %c0_203 = arith.constant 0 : index
    %c6_204 = arith.constant 6 : index
    %c2_205 = arith.constant 2 : index
    %c0_206 = arith.constant 0 : index
    %155 = vector.load %arg2[%c0_203, %c6_204, %c2_205, %c0_206] : memref<1x8x18x128xbf16, #tpu.memory_space<vmem>>, vector<1x1x16x128xbf16>
    %156 = vector.shape_cast %155 : vector<1x1x16x128xbf16> to vector<16x128xbf16>
    %157 = tpu.concatenate %140, %142, %144, %146, %148, %150, %152, %154, %156 in 1 : vector<16x128xbf16>, vector<16x128xbf16>, vector<16x128xbf16>, vector<16x128xbf16>, vector<16x128xbf16>, vector<16x128xbf16>, vector<16x128xbf16>, vector<16x128xbf16>, vector<16x128xbf16> -> vector<16x1152xbf16>
    %cst_207 = arith.constant dense<0.000000e+00> : vector<16x128xf32>
    %158 = tpu.matmul %157, %3, %cst_207 {dimension_numbers = #tpu.dot_dimension_numbers<[1], [0], [0], [1], [0, 0, 1, 1], [], []>} : vector<16x1152xbf16>, vector<1152x128xbf16>, vector<16x128xf32> -> vector<16x128xf32>
    %159 = vector.broadcast %4 : vector<1x128xf32> to vector<16x128xf32>
    %160 = arith.addf %158, %159 : vector<16x128xf32>
    %161 = arith.truncf %160 : vector<16x128xf32> to vector<16x128xbf16>
    %c0_208 = arith.constant 0 : index
    %c4_209 = arith.constant 4 : index
    %c0_210 = arith.constant 0 : index
    %c0_211 = arith.constant 0 : index
    %162 = vector.load %arg7[%c0_208, %c4_209, %c0_210, %c0_211] : memref<1x8x16x128xbf16, #tpu.memory_space<vmem>>, vector<1x1x16x128xbf16>
    %163 = vector.shape_cast %162 : vector<1x1x16x128xbf16> to vector<16x128xbf16>
    %164 = vector.shape_cast %161 : vector<16x128xbf16> to vector<1x1x16x128xbf16>
    tpu.vector_store %arg7[%c0_208, %c4_209, %c0_210, %c0_211], %164 {strides = array<i32>} : memref<1x8x16x128xbf16, #tpu.memory_space<vmem>>, vector<1x1x16x128xbf16>,
    %cst_212 = arith.constant dense<0.000000e+00> : vector<128xf32>
    %165 = vector.multi_reduction <add>, %160, %cst_212 [0] : vector<16x128xf32> to vector<128xf32>
    %166 = vector.shape_cast %165 : vector<128xf32> to vector<1x128xf32>
    %167 = arith.addf %134, %166 : vector<1x128xf32>
    %168 = arith.mulf %160, %160 : vector<16x128xf32>
    %cst_213 = arith.constant dense<0.000000e+00> : vector<128xf32>
    %169 = vector.multi_reduction <add>, %168, %cst_213 [0] : vector<16x128xf32> to vector<128xf32>
    %170 = vector.shape_cast %169 : vector<128xf32> to vector<1x128xf32>
    %171 = arith.addf %138, %170 : vector<1x128xf32>
    %c0_214 = arith.constant 0 : index
    %c5_215 = arith.constant 5 : index
    %c0_216 = arith.constant 0 : index
    %c0_217 = arith.constant 0 : index
    %172 = vector.load %arg2[%c0_214, %c5_215, %c0_216, %c0_217] : memref<1x8x18x128xbf16, #tpu.memory_space<vmem>>, vector<1x1x16x128xbf16>
    %173 = vector.shape_cast %172 : vector<1x1x16x128xbf16> to vector<16x128xbf16>
    %c0_218 = arith.constant 0 : index
    %c5_219 = arith.constant 5 : index
    %c1_220 = arith.constant 1 : index
    %c0_221 = arith.constant 0 : index
    %174 = vector.load %arg2[%c0_218, %c5_219, %c1_220, %c0_221] : memref<1x8x18x128xbf16, #tpu.memory_space<vmem>>, vector<1x1x16x128xbf16>
    %175 = vector.shape_cast %174 : vector<1x1x16x128xbf16> to vector<16x128xbf16>
    %c0_222 = arith.constant 0 : index
    %c5_223 = arith.constant 5 : index
    %c2_224 = arith.constant 2 : index
    %c0_225 = arith.constant 0 : index
    %176 = vector.load %arg2[%c0_222, %c5_223, %c2_224, %c0_225] : memref<1x8x18x128xbf16, #tpu.memory_space<vmem>>, vector<1x1x16x128xbf16>
    %177 = vector.shape_cast %176 : vector<1x1x16x128xbf16> to vector<16x128xbf16>
    %c0_226 = arith.constant 0 : index
    %c6_227 = arith.constant 6 : index
    %c0_228 = arith.constant 0 : index
    %c0_229 = arith.constant 0 : index
    %178 = vector.load %arg2[%c0_226, %c6_227, %c0_228, %c0_229] : memref<1x8x18x128xbf16, #tpu.memory_space<vmem>>, vector<1x1x16x128xbf16>
    %179 = vector.shape_cast %178 : vector<1x1x16x128xbf16> to vector<16x128xbf16>
    %c0_230 = arith.constant 0 : index
    %c6_231 = arith.constant 6 : index
    %c1_232 = arith.constant 1 : index
    %c0_233 = arith.constant 0 : index
    %180 = vector.load %arg2[%c0_230, %c6_231, %c1_232, %c0_233] : memref<1x8x18x128xbf16, #tpu.memory_space<vmem>>, vector<1x1x16x128xbf16>
    %181 = vector.shape_cast %180 : vector<1x1x16x128xbf16> to vector<16x128xbf16>
    %c0_234 = arith.constant 0 : index
    %c6_235 = arith.constant 6 : index
    %c2_236 = arith.constant 2 : index
    %c0_237 = arith.constant 0 : index
    %182 = vector.load %arg2[%c0_234, %c6_235, %c2_236, %c0_237] : memref<1x8x18x128xbf16, #tpu.memory_space<vmem>>, vector<1x1x16x128xbf16>
    %183 = vector.shape_cast %182 : vector<1x1x16x128xbf16> to vector<16x128xbf16>
    %c0_238 = arith.constant 0 : index
    %c7 = arith.constant 7 : index
    %c0_239 = arith.constant 0 : index
    %c0_240 = arith.constant 0 : index
    %184 = vector.load %arg2[%c0_238, %c7, %c0_239, %c0_240] : memref<1x8x18x128xbf16, #tpu.memory_space<vmem>>, vector<1x1x16x128xbf16>
    %185 = vector.shape_cast %184 : vector<1x1x16x128xbf16> to vector<16x128xbf16>
    %c0_241 = arith.constant 0 : index
    %c7_242 = arith.constant 7 : index
    %c1_243 = arith.constant 1 : index
    %c0_244 = arith.constant 0 : index
    %186 = vector.load %arg2[%c0_241, %c7_242, %c1_243, %c0_244] : memref<1x8x18x128xbf16, #tpu.memory_space<vmem>>, vector<1x1x16x128xbf16>
    %187 = vector.shape_cast %186 : vector<1x1x16x128xbf16> to vector<16x128xbf16>
    %c0_245 = arith.constant 0 : index
    %c7_246 = arith.constant 7 : index
    %c2_247 = arith.constant 2 : index
    %c0_248 = arith.constant 0 : index
    %188 = vector.load %arg2[%c0_245, %c7_246, %c2_247, %c0_248] : memref<1x8x18x128xbf16, #tpu.memory_space<vmem>>, vector<1x1x16x128xbf16>
    %189 = vector.shape_cast %188 : vector<1x1x16x128xbf16> to vector<16x128xbf16>
    %190 = tpu.concatenate %173, %175, %177, %179, %181, %183, %185, %187, %189 in 1 : vector<16x128xbf16>, vector<16x128xbf16>, vector<16x128xbf16>, vector<16x128xbf16>, vector<16x128xbf16>, vector<16x128xbf16>, vector<16x128xbf16>, vector<16x128xbf16>, vector<16x128xbf16> -> vector<16x1152xbf16>
    %cst_249 = arith.constant dense<0.000000e+00> : vector<16x128xf32>
    %191 = tpu.matmul %190, %3, %cst_249 {dimension_numbers = #tpu.dot_dimension_numbers<[1], [0], [0], [1], [0, 0, 1, 1], [], []>} : vector<16x1152xbf16>, vector<1152x128xbf16>, vector<16x128xf32> -> vector<16x128xf32>
    %192 = vector.broadcast %4 : vector<1x128xf32> to vector<16x128xf32>
    %193 = arith.addf %191, %192 : vector<16x128xf32>
    %194 = arith.truncf %193 : vector<16x128xf32> to vector<16x128xbf16>
    %c0_250 = arith.constant 0 : index
    %c5_251 = arith.constant 5 : index
    %c0_252 = arith.constant 0 : index
    %c0_253 = arith.constant 0 : index
    %195 = vector.load %arg7[%c0_250, %c5_251, %c0_252, %c0_253] : memref<1x8x16x128xbf16, #tpu.memory_space<vmem>>, vector<1x1x16x128xbf16>
    %196 = vector.shape_cast %195 : vector<1x1x16x128xbf16> to vector<16x128xbf16>
    %197 = vector.shape_cast %194 : vector<16x128xbf16> to vector<1x1x16x128xbf16>
    tpu.vector_store %arg7[%c0_250, %c5_251, %c0_252, %c0_253], %197 {strides = array<i32>} : memref<1x8x16x128xbf16, #tpu.memory_space<vmem>>, vector<1x1x16x128xbf16>,
    %cst_254 = arith.constant dense<0.000000e+00> : vector<128xf32>
    %198 = vector.multi_reduction <add>, %193, %cst_254 [0] : vector<16x128xf32> to vector<128xf32>
    %199 = vector.shape_cast %198 : vector<128xf32> to vector<1x128xf32>
    %200 = arith.addf %167, %199 : vector<1x128xf32>
    %201 = arith.mulf %193, %193 : vector<16x128xf32>
    %cst_255 = arith.constant dense<0.000000e+00> : vector<128xf32>
    %202 = vector.multi_reduction <add>, %201, %cst_255 [0] : vector<16x128xf32> to vector<128xf32>
    %203 = vector.shape_cast %202 : vector<128xf32> to vector<1x128xf32>
    %204 = arith.addf %171, %203 : vector<1x128xf32>
    %c0_256 = arith.constant 0 : index
    %c6_257 = arith.constant 6 : index
    %c0_258 = arith.constant 0 : index
    %c0_259 = arith.constant 0 : index
    %205 = vector.load %arg2[%c0_256, %c6_257, %c0_258, %c0_259] : memref<1x8x18x128xbf16, #tpu.memory_space<vmem>>, vector<1x1x16x128xbf16>
    %206 = vector.shape_cast %205 : vector<1x1x16x128xbf16> to vector<16x128xbf16>
    %c0_260 = arith.constant 0 : index
    %c6_261 = arith.constant 6 : index
    %c1_262 = arith.constant 1 : index
    %c0_263 = arith.constant 0 : index
    %207 = vector.load %arg2[%c0_260, %c6_261, %c1_262, %c0_263] : memref<1x8x18x128xbf16, #tpu.memory_space<vmem>>, vector<1x1x16x128xbf16>
    %208 = vector.shape_cast %207 : vector<1x1x16x128xbf16> to vector<16x128xbf16>
    %c0_264 = arith.constant 0 : index
    %c6_265 = arith.constant 6 : index
    %c2_266 = arith.constant 2 : index
    %c0_267 = arith.constant 0 : index
    %209 = vector.load %arg2[%c0_264, %c6_265, %c2_266, %c0_267] : memref<1x8x18x128xbf16, #tpu.memory_space<vmem>>, vector<1x1x16x128xbf16>
    %210 = vector.shape_cast %209 : vector<1x1x16x128xbf16> to vector<16x128xbf16>
    %c0_268 = arith.constant 0 : index
    %c7_269 = arith.constant 7 : index
    %c0_270 = arith.constant 0 : index
    %c0_271 = arith.constant 0 : index
    %211 = vector.load %arg2[%c0_268, %c7_269, %c0_270, %c0_271] : memref<1x8x18x128xbf16, #tpu.memory_space<vmem>>, vector<1x1x16x128xbf16>
    %212 = vector.shape_cast %211 : vector<1x1x16x128xbf16> to vector<16x128xbf16>
    %c0_272 = arith.constant 0 : index
    %c7_273 = arith.constant 7 : index
    %c1_274 = arith.constant 1 : index
    %c0_275 = arith.constant 0 : index
    %213 = vector.load %arg2[%c0_272, %c7_273, %c1_274, %c0_275] : memref<1x8x18x128xbf16, #tpu.memory_space<vmem>>, vector<1x1x16x128xbf16>
    %214 = vector.shape_cast %213 : vector<1x1x16x128xbf16> to vector<16x128xbf16>
    %c0_276 = arith.constant 0 : index
    %c7_277 = arith.constant 7 : index
    %c2_278 = arith.constant 2 : index
    %c0_279 = arith.constant 0 : index
    %215 = vector.load %arg2[%c0_276, %c7_277, %c2_278, %c0_279] : memref<1x8x18x128xbf16, #tpu.memory_space<vmem>>, vector<1x1x16x128xbf16>
    %216 = vector.shape_cast %215 : vector<1x1x16x128xbf16> to vector<16x128xbf16>
    %c0_280 = arith.constant 0 : index
    %c0_281 = arith.constant 0 : index
    %c0_282 = arith.constant 0 : index
    %c0_283 = arith.constant 0 : index
    %217 = vector.load %arg3[%c0_280, %c0_281, %c0_282, %c0_283] : memref<1x1x18x128xbf16, #tpu.memory_space<vmem>>, vector<1x1x16x128xbf16>
    %218 = vector.shape_cast %217 : vector<1x1x16x128xbf16> to vector<16x128xbf16>
    %c0_284 = arith.constant 0 : index
    %c0_285 = arith.constant 0 : index
    %c1_286 = arith.constant 1 : index
    %c0_287 = arith.constant 0 : index
    %219 = vector.load %arg3[%c0_284, %c0_285, %c1_286, %c0_287] : memref<1x1x18x128xbf16, #tpu.memory_space<vmem>>, vector<1x1x16x128xbf16>
    %220 = vector.shape_cast %219 : vector<1x1x16x128xbf16> to vector<16x128xbf16>
    %c0_288 = arith.constant 0 : index
    %c0_289 = arith.constant 0 : index
    %c2_290 = arith.constant 2 : index
    %c0_291 = arith.constant 0 : index
    %221 = vector.load %arg3[%c0_288, %c0_289, %c2_290, %c0_291] : memref<1x1x18x128xbf16, #tpu.memory_space<vmem>>, vector<1x1x16x128xbf16>
    %222 = vector.shape_cast %221 : vector<1x1x16x128xbf16> to vector<16x128xbf16>
    %223 = tpu.concatenate %206, %208, %210, %212, %214, %216, %218, %220, %222 in 1 : vector<16x128xbf16>, vector<16x128xbf16>, vector<16x128xbf16>, vector<16x128xbf16>, vector<16x128xbf16>, vector<16x128xbf16>, vector<16x128xbf16>, vector<16x128xbf16>, vector<16x128xbf16> -> vector<16x1152xbf16>
    %cst_292 = arith.constant dense<0.000000e+00> : vector<16x128xf32>
    %224 = tpu.matmul %223, %3, %cst_292 {dimension_numbers = #tpu.dot_dimension_numbers<[1], [0], [0], [1], [0, 0, 1, 1], [], []>} : vector<16x1152xbf16>, vector<1152x128xbf16>, vector<16x128xf32> -> vector<16x128xf32>
    %225 = vector.broadcast %4 : vector<1x128xf32> to vector<16x128xf32>
    %226 = arith.addf %224, %225 : vector<16x128xf32>
    %227 = arith.truncf %226 : vector<16x128xf32> to vector<16x128xbf16>
    %c0_293 = arith.constant 0 : index
    %c6_294 = arith.constant 6 : index
    %c0_295 = arith.constant 0 : index
    %c0_296 = arith.constant 0 : index
    %228 = vector.load %arg7[%c0_293, %c6_294, %c0_295, %c0_296] : memref<1x8x16x128xbf16, #tpu.memory_space<vmem>>, vector<1x1x16x128xbf16>
    %229 = vector.shape_cast %228 : vector<1x1x16x128xbf16> to vector<16x128xbf16>
    %230 = vector.shape_cast %227 : vector<16x128xbf16> to vector<1x1x16x128xbf16>
    tpu.vector_store %arg7[%c0_293, %c6_294, %c0_295, %c0_296], %230 {strides = array<i32>} : memref<1x8x16x128xbf16, #tpu.memory_space<vmem>>, vector<1x1x16x128xbf16>,
    %cst_297 = arith.constant dense<0.000000e+00> : vector<128xf32>
    %231 = vector.multi_reduction <add>, %226, %cst_297 [0] : vector<16x128xf32> to vector<128xf32>
    %232 = vector.shape_cast %231 : vector<128xf32> to vector<1x128xf32>
    %233 = arith.addf %200, %232 : vector<1x128xf32>
    %234 = arith.mulf %226, %226 : vector<16x128xf32>
    %cst_298 = arith.constant dense<0.000000e+00> : vector<128xf32>
    %235 = vector.multi_reduction <add>, %234, %cst_298 [0] : vector<16x128xf32> to vector<128xf32>
    %236 = vector.shape_cast %235 : vector<128xf32> to vector<1x128xf32>
    %237 = arith.addf %204, %236 : vector<1x128xf32>
    %c0_299 = arith.constant 0 : index
    %c7_300 = arith.constant 7 : index
    %c0_301 = arith.constant 0 : index
    %c0_302 = arith.constant 0 : index
    %238 = vector.load %arg2[%c0_299, %c7_300, %c0_301, %c0_302] : memref<1x8x18x128xbf16, #tpu.memory_space<vmem>>, vector<1x1x16x128xbf16>
    %239 = vector.shape_cast %238 : vector<1x1x16x128xbf16> to vector<16x128xbf16>
    %c0_303 = arith.constant 0 : index
    %c7_304 = arith.constant 7 : index
    %c1_305 = arith.constant 1 : index
    %c0_306 = arith.constant 0 : index
    %240 = vector.load %arg2[%c0_303, %c7_304, %c1_305, %c0_306] : memref<1x8x18x128xbf16, #tpu.memory_space<vmem>>, vector<1x1x16x128xbf16>
    %241 = vector.shape_cast %240 : vector<1x1x16x128xbf16> to vector<16x128xbf16>
    %c0_307 = arith.constant 0 : index
    %c7_308 = arith.constant 7 : index
    %c2_309 = arith.constant 2 : index
    %c0_310 = arith.constant 0 : index
    %242 = vector.load %arg2[%c0_307, %c7_308, %c2_309, %c0_310] : memref<1x8x18x128xbf16, #tpu.memory_space<vmem>>, vector<1x1x16x128xbf16>
    %243 = vector.shape_cast %242 : vector<1x1x16x128xbf16> to vector<16x128xbf16>
    %c0_311 = arith.constant 0 : index
    %c0_312 = arith.constant 0 : index
    %c0_313 = arith.constant 0 : index
    %c0_314 = arith.constant 0 : index
    %244 = vector.load %arg3[%c0_311, %c0_312, %c0_313, %c0_314] : memref<1x1x18x128xbf16, #tpu.memory_space<vmem>>, vector<1x1x16x128xbf16>
    %245 = vector.shape_cast %244 : vector<1x1x16x128xbf16> to vector<16x128xbf16>
    %c0_315 = arith.constant 0 : index
    %c0_316 = arith.constant 0 : index
    %c1_317 = arith.constant 1 : index
    %c0_318 = arith.constant 0 : index
    %246 = vector.load %arg3[%c0_315, %c0_316, %c1_317, %c0_318] : memref<1x1x18x128xbf16, #tpu.memory_space<vmem>>, vector<1x1x16x128xbf16>
    %247 = vector.shape_cast %246 : vector<1x1x16x128xbf16> to vector<16x128xbf16>
    %c0_319 = arith.constant 0 : index
    %c0_320 = arith.constant 0 : index
    %c2_321 = arith.constant 2 : index
    %c0_322 = arith.constant 0 : index
    %248 = vector.load %arg3[%c0_319, %c0_320, %c2_321, %c0_322] : memref<1x1x18x128xbf16, #tpu.memory_space<vmem>>, vector<1x1x16x128xbf16>
    %249 = vector.shape_cast %248 : vector<1x1x16x128xbf16> to vector<16x128xbf16>
    %c0_323 = arith.constant 0 : index
    %c0_324 = arith.constant 0 : index
    %c0_325 = arith.constant 0 : index
    %c0_326 = arith.constant 0 : index
    %250 = vector.load %arg4[%c0_323, %c0_324, %c0_325, %c0_326] : memref<1x1x18x128xbf16, #tpu.memory_space<vmem>>, vector<1x1x16x128xbf16>
    %251 = vector.shape_cast %250 : vector<1x1x16x128xbf16> to vector<16x128xbf16>
    %c0_327 = arith.constant 0 : index
    %c0_328 = arith.constant 0 : index
    %c1_329 = arith.constant 1 : index
    %c0_330 = arith.constant 0 : index
    %252 = vector.load %arg4[%c0_327, %c0_328, %c1_329, %c0_330] : memref<1x1x18x128xbf16, #tpu.memory_space<vmem>>, vector<1x1x16x128xbf16>
    %253 = vector.shape_cast %252 : vector<1x1x16x128xbf16> to vector<16x128xbf16>
    %c0_331 = arith.constant 0 : index
    %c0_332 = arith.constant 0 : index
    %c2_333 = arith.constant 2 : index
    %c0_334 = arith.constant 0 : index
    %254 = vector.load %arg4[%c0_331, %c0_332, %c2_333, %c0_334] : memref<1x1x18x128xbf16, #tpu.memory_space<vmem>>, vector<1x1x16x128xbf16>
    %255 = vector.shape_cast %254 : vector<1x1x16x128xbf16> to vector<16x128xbf16>
    %256 = tpu.concatenate %239, %241, %243, %245, %247, %249, %251, %253, %255 in 1 : vector<16x128xbf16>, vector<16x128xbf16>, vector<16x128xbf16>, vector<16x128xbf16>, vector<16x128xbf16>, vector<16x128xbf16>, vector<16x128xbf16>, vector<16x128xbf16>, vector<16x128xbf16> -> vector<16x1152xbf16>
    %cst_335 = arith.constant dense<0.000000e+00> : vector<16x128xf32>
    %257 = tpu.matmul %256, %3, %cst_335 {dimension_numbers = #tpu.dot_dimension_numbers<[1], [0], [0], [1], [0, 0, 1, 1], [], []>} : vector<16x1152xbf16>, vector<1152x128xbf16>, vector<16x128xf32> -> vector<16x128xf32>
    %258 = vector.broadcast %4 : vector<1x128xf32> to vector<16x128xf32>
    %259 = arith.addf %257, %258 : vector<16x128xf32>
    %260 = arith.truncf %259 : vector<16x128xf32> to vector<16x128xbf16>
    %c0_336 = arith.constant 0 : index
    %c7_337 = arith.constant 7 : index
    %c0_338 = arith.constant 0 : index
    %c0_339 = arith.constant 0 : index
    %261 = vector.load %arg7[%c0_336, %c7_337, %c0_338, %c0_339] : memref<1x8x16x128xbf16, #tpu.memory_space<vmem>>, vector<1x1x16x128xbf16>
    %262 = vector.shape_cast %261 : vector<1x1x16x128xbf16> to vector<16x128xbf16>
    %263 = vector.shape_cast %260 : vector<16x128xbf16> to vector<1x1x16x128xbf16>
    tpu.vector_store %arg7[%c0_336, %c7_337, %c0_338, %c0_339], %263 {strides = array<i32>} : memref<1x8x16x128xbf16, #tpu.memory_space<vmem>>, vector<1x1x16x128xbf16>,
    %cst_340 = arith.constant dense<0.000000e+00> : vector<128xf32>
    %264 = vector.multi_reduction <add>, %259, %cst_340 [0] : vector<16x128xf32> to vector<128xf32>
    %265 = vector.shape_cast %264 : vector<128xf32> to vector<1x128xf32>
    %266 = arith.addf %233, %265 : vector<1x128xf32>
    %267 = arith.mulf %259, %259 : vector<16x128xf32>
    %cst_341 = arith.constant dense<0.000000e+00> : vector<128xf32>
    %268 = vector.multi_reduction <add>, %267, %cst_341 [0] : vector<16x128xf32> to vector<128xf32>
    %269 = vector.shape_cast %268 : vector<128xf32> to vector<1x128xf32>
    %270 = arith.addf %237, %269 : vector<1x128xf32>
    %c0_342 = arith.constant 0 : index
    %c0_343 = arith.constant 0 : index
    %c0_344 = arith.constant 0 : index
    %271 = vector.load %arg8[%c0_342, %c0_343, %c0_344] : memref<1x1x128xf32, #tpu.memory_space<vmem>>, vector<1x1x128xf32>
    %272 = vector.shape_cast %271 : vector<1x1x128xf32> to vector<1x128xf32>
    %273 = arith.addf %272, %266 : vector<1x128xf32>
    %c0_345 = arith.constant 0 : index
    %c0_346 = arith.constant 0 : index
    %c0_347 = arith.constant 0 : index
    %274 = vector.load %arg8[%c0_345, %c0_346, %c0_347] : memref<1x1x128xf32, #tpu.memory_space<vmem>>, vector<1x1x128xf32>
    %275 = vector.shape_cast %274 : vector<1x1x128xf32> to vector<1x128xf32>
    %276 = vector.shape_cast %273 : vector<1x128xf32> to vector<1x1x128xf32>
    tpu.vector_store %arg8[%c0_345, %c0_346, %c0_347], %276 {strides = array<i32>} : memref<1x1x128xf32, #tpu.memory_space<vmem>>, vector<1x1x128xf32>,
    %c0_348 = arith.constant 0 : index
    %c0_349 = arith.constant 0 : index
    %c0_350 = arith.constant 0 : index
    %277 = vector.load %arg9[%c0_348, %c0_349, %c0_350] : memref<1x1x128xf32, #tpu.memory_space<vmem>>, vector<1x1x128xf32>
    %278 = vector.shape_cast %277 : vector<1x1x128xf32> to vector<1x128xf32>
    %279 = arith.addf %278, %270 : vector<1x128xf32>
    %c0_351 = arith.constant 0 : index
    %c0_352 = arith.constant 0 : index
    %c0_353 = arith.constant 0 : index
    %280 = vector.load %arg9[%c0_351, %c0_352, %c0_353] : memref<1x1x128xf32, #tpu.memory_space<vmem>>, vector<1x1x128xf32>
    %281 = vector.shape_cast %280 : vector<1x1x128xf32> to vector<1x128xf32>
    %282 = vector.shape_cast %279 : vector<1x128xf32> to vector<1x1x128xf32>
    tpu.vector_store %arg9[%c0_351, %c0_352, %c0_353], %282 {strides = array<i32>} : memref<1x1x128xf32, #tpu.memory_space<vmem>>, vector<1x1x128xf32>,
    return
  }
  func.func @transform_0(%arg0: i32, %arg1: i32) -> (i32, i32, i32, i32) {
    %c0_i32 = arith.constant 0 : i32
    %c0_i32_0 = arith.constant 0 : i32
    %c0_i32_1 = arith.constant 0 : i32
    return %arg0, %arg1, %c0_i32, %c0_i32_0 : i32, i32, i32, i32
  }
  func.func @transform_1(%arg0: i32, %arg1: i32) -> (i32, i32, i32, i32) {
    %c8_i32 = arith.constant 8 : i32
    %0 = arith.muli %arg1, %c8_i32 : i32
    %c8_i32_0 = arith.constant 8 : i32
    %1 = arith.addi %0, %c8_i32_0 : i32
    %c0_i32 = arith.constant 0 : i32
    %c0_i32_1 = arith.constant 0 : i32
    %c0_i32_2 = arith.constant 0 : i32
    return %arg0, %1, %c0_i32, %c0_i32_1 : i32, i32, i32, i32
  }
  func.func @transform_2(%arg0: i32, %arg1: i32) -> (i32, i32, i32, i32) {
    %c8_i32 = arith.constant 8 : i32
    %0 = arith.muli %arg1, %c8_i32 : i32
    %c8_i32_0 = arith.constant 8 : i32
    %1 = arith.addi %0, %c8_i32_0 : i32
    %c1_i32 = arith.constant 1 : i32
    %2 = arith.addi %1, %c1_i32 : i32
    %c0_i32 = arith.constant 0 : i32
    %c0_i32_1 = arith.constant 0 : i32
    %c0_i32_2 = arith.constant 0 : i32
    return %arg0, %2, %c0_i32, %c0_i32_1 : i32, i32, i32, i32
  }
  func.func @transform_3(%arg0: i32, %arg1: i32) -> (i32, i32) {
    %c0_i32 = arith.constant 0 : i32
    %c0_i32_0 = arith.constant 0 : i32
    %c0_i32_1 = arith.constant 0 : i32
    return %c0_i32, %c0_i32_0 : i32, i32
  }
  func.func @transform_4(%arg0: i32, %arg1: i32) -> (i32, i32) {
    %c0_i32 = arith.constant 0 : i32
    %c0_i32_0 = arith.constant 0 : i32
    %c0_i32_1 = arith.constant 0 : i32
    return %c0_i32, %c0_i32_0 : i32, i32
  }
  func.func @transform_5(%arg0: i32, %arg1: i32) -> (i32, i32, i32, i32) {
    %c0_i32 = arith.constant 0 : i32
    %c0_i32_0 = arith.constant 0 : i32
    %c0_i32_1 = arith.constant 0 : i32
    return %arg0, %arg1, %c0_i32, %c0_i32_0 : i32, i32, i32, i32
  }
  func.func @transform_6(%arg0: i32, %arg1: i32) -> (i32, i32, i32) {
    %c0_i32 = arith.constant 0 : i32
    %c0_i32_0 = arith.constant 0 : i32
    %c0_i32_1 = arith.constant 0 : i32
    return %arg0, %c0_i32, %c0_i32_0 : i32, i32, i32
  }
  func.func @transform_7(%arg0: i32, %arg1: i32) -> (i32, i32, i32) {
    %c0_i32 = arith.constant 0 : i32
    %c0_i32_0 = arith.constant 0 : i32
    %c0_i32_1 = arith.constant 0 : i32
    return %arg0, %c0_i32, %c0_i32_0 : i32, i32, i32
  }
}

module attributes {stable_mosaic.version = 11 : i64} {
  func.func @_bn_relu_1x1_kernel(%arg0: i32, %arg1: memref<256x128xbf16, #tpu.memory_space<vmem>>, %arg2: memref<1x128xf32, #tpu.memory_space<vmem>>, %arg3: memref<1x128xf32, #tpu.memory_space<vmem>>, %arg4: memref<128x128xbf16, #tpu.memory_space<vmem>>, %arg5: memref<1x128xf32, #tpu.memory_space<vmem>>, %arg6: memref<256x128xf32, #tpu.memory_space<vmem>>) attributes {dimension_semantics = [#tpu.dimension_semantics<parallel>], iteration_bounds = array<i64: 2>, scalar_prefetch = 0 : i64, scratch_operands = 0 : i64, tpu.core_type = #tpu.core_type<tc>, window_params = [{transform_indices = @transform_0, window_bounds = array<i64: 256, 128>}, {pipeline_mode = #tpu.pipeline_mode<synchronous>, transform_indices = @transform_1, window_bounds = array<i64: 1, 128>}, {pipeline_mode = #tpu.pipeline_mode<synchronous>, transform_indices = @transform_2, window_bounds = array<i64: 1, 128>}, {pipeline_mode = #tpu.pipeline_mode<synchronous>, transform_indices = @transform_3, window_bounds = array<i64: 128, 128>}, {pipeline_mode = #tpu.pipeline_mode<synchronous>, transform_indices = @transform_4, window_bounds = array<i64: 1, 128>}, {transform_indices = @transform_5, window_bounds = array<i64: 256, 128>}]} {
    %c0 = arith.constant 0 : index
    %c0_0 = arith.constant 0 : index
    %0 = vector.load %arg1[%c0, %c0_0] : memref<256x128xbf16, #tpu.memory_space<vmem>>, vector<256x128xbf16>
    %1 = arith.extf %0 : vector<256x128xbf16> to vector<256x128xf32>
    %c0_1 = arith.constant 0 : index
    %c0_2 = arith.constant 0 : index
    %2 = vector.load %arg2[%c0_1, %c0_2] : memref<1x128xf32, #tpu.memory_space<vmem>>, vector<1x128xf32>
    %3 = vector.broadcast %2 : vector<1x128xf32> to vector<256x128xf32>
    %4 = arith.mulf %1, %3 : vector<256x128xf32>
    %c0_3 = arith.constant 0 : index
    %c0_4 = arith.constant 0 : index
    %5 = vector.load %arg3[%c0_3, %c0_4] : memref<1x128xf32, #tpu.memory_space<vmem>>, vector<1x128xf32>
    %6 = vector.broadcast %5 : vector<1x128xf32> to vector<256x128xf32>
    %7 = arith.addf %4, %6 : vector<256x128xf32>
    %cst = arith.constant 0.000000e+00 : f32
    %8 = vector.broadcast %cst : f32 to vector<256x128xf32>
    %9 = arith.maximumf %7, %8 : vector<256x128xf32>
    %10 = arith.truncf %9 : vector<256x128xf32> to vector<256x128xbf16>
    %c0_5 = arith.constant 0 : index
    %c0_6 = arith.constant 0 : index
    %11 = vector.load %arg4[%c0_5, %c0_6] : memref<128x128xbf16, #tpu.memory_space<vmem>>, vector<128x128xbf16>
    %cst_7 = arith.constant dense<0.000000e+00> : vector<256x128xf32>
    %12 = tpu.matmul %10, %11, %cst_7 {dimension_numbers = #tpu.dot_dimension_numbers<[1], [0], [0], [1], [0, 0, 1, 1], [], []>} : vector<256x128xbf16>, vector<128x128xbf16>, vector<256x128xf32> -> vector<256x128xf32>
    %c0_8 = arith.constant 0 : index
    %c0_9 = arith.constant 0 : index
    %13 = vector.load %arg5[%c0_8, %c0_9] : memref<1x128xf32, #tpu.memory_space<vmem>>, vector<1x128xf32>
    %14 = vector.broadcast %13 : vector<1x128xf32> to vector<256x128xf32>
    %15 = arith.addf %12, %14 : vector<256x128xf32>
    %c0_10 = arith.constant 0 : index
    %c0_11 = arith.constant 0 : index
    %16 = vector.load %arg6[%c0_10, %c0_11] : memref<256x128xf32, #tpu.memory_space<vmem>>, vector<256x128xf32>
    tpu.vector_store %arg6[%c0_10, %c0_11], %15 {strides = array<i32>} : memref<256x128xf32, #tpu.memory_space<vmem>>, vector<256x128xf32>,
    return
  }
  func.func @transform_0(%arg0: i32) -> (i32, i32) {
    %c0_i32 = arith.constant 0 : i32
    %c0_i32_0 = arith.constant 0 : i32
    return %arg0, %c0_i32 : i32, i32
  }
  func.func @transform_1(%arg0: i32) -> (i32, i32) {
    %c0_i32 = arith.constant 0 : i32
    %c0_i32_0 = arith.constant 0 : i32
    %c0_i32_1 = arith.constant 0 : i32
    return %c0_i32, %c0_i32_0 : i32, i32
  }
  func.func @transform_2(%arg0: i32) -> (i32, i32) {
    %c0_i32 = arith.constant 0 : i32
    %c0_i32_0 = arith.constant 0 : i32
    %c0_i32_1 = arith.constant 0 : i32
    return %c0_i32, %c0_i32_0 : i32, i32
  }
  func.func @transform_3(%arg0: i32) -> (i32, i32) {
    %c0_i32 = arith.constant 0 : i32
    %c0_i32_0 = arith.constant 0 : i32
    %c0_i32_1 = arith.constant 0 : i32
    return %c0_i32, %c0_i32_0 : i32, i32
  }
  func.func @transform_4(%arg0: i32) -> (i32, i32) {
    %c0_i32 = arith.constant 0 : i32
    %c0_i32_0 = arith.constant 0 : i32
    %c0_i32_1 = arith.constant 0 : i32
    return %c0_i32, %c0_i32_0 : i32, i32
  }
  func.func @transform_5(%arg0: i32) -> (i32, i32) {
    %c0_i32 = arith.constant 0 : i32
    %c0_i32_0 = arith.constant 0 : i32
    return %arg0, %c0_i32 : i32, i32
  }
}

</mosaic_0001>

<llo_original>
// kernel: tile.38
$region0: #{tile.38}
  #allocation2 [shape = 's32[1]{0}', space=sflag, size = 0x4, scoped, tag = 'scoped memory for tile.38']
  %s0 = inlined_call_operand.hbm [shape: f32[32], index: 0, kind: input, shape index: {}]
  %s1 = inlined_call_operand.vmem [shape: f32[4,32], index: 1, kind: output, shape index: {}]
  $region1: #{tile.38} parent=0
    #allocation0 [shape = 'u8[512]{0}', space=vmem, size = 0x400, scoped, tag = 'operand span for operand 0']
    #allocation1 [shape = 's32[1]{0}', space=sflag, size = 0x4, scoped, tag = 'scoped memory for tile.38']
    %2 = vsyncpa [#allocation1], 0
    // Predicated region
    $region2: #{tile.38} parent=1 // pred_check
      _
    $region3: #{tile.38} parent=1 // pred_check_branch
      %4 = sbr.rel (0) target = $region5
    $region4: #{tile.38} parent=1 // pred_region
      %6 = vsyncadd [#allocation1], 0
      %s8 = sshll.u32 %s0, 4
      %s9 = int_to_ptr.hbm [resolvable:$true] %s8
      %s10 = sshll.u32 [#allocation0], 4
      %s11 = int_to_ptr.vmem [resolvable:$true] %s10
      %13 = dma.hbm_to_vmem [thread:$0]  %s9, 16, %s11, [#allocation1]
    $region5: #{tile.38} parent=1 // pred_fallthru
      _
    // Predicated region
    $region6: #{tile.38} parent=1 // pred_check
      _
    $region7: #{tile.38} parent=1 // pred_check_branch
      %15 = sbr.rel (0) target = $region9
    $region8: #{tile.38} parent=1 // pred_region
      %17 = dma.done [#allocation1], 16
    $region9: #{tile.38} parent=1 // pred_fallthru
      _
    %v18 = vld [vmem:[#allocation0] ss:$0 sm:$0xff]
    %19 = vst [vmem:[%s1] sm:$0xf] %v18
    %20 = vsyncpa [#allocation1], 1

// kernel: tile.39
$region0: #{tile.39}
  %s0 = inlined_call_operand.vmem [shape: f32[4,32], index: 0, kind: input, shape index: {}]
  %s1 = inlined_call_operand.vmem [shape: f32[1,128], index: 1, kind: output, shape index: {}]
  $region1: #{tile.39} parent=0
    #allocation0 [shape = 'u8[4096]{0}', space=vmem, size = 0x1000, scoped, tag = 'scoped mem for output reshape']
    #allocation1 [shape = 'u8[4096]{0}', space=vmem, size = 0x1000, scoped, tag = 'scoped mem for input reshape']
    %s3 = ssub.s32 16, 1
    %v4 = vld [vmem:[%s0] sm:%s3]
    %5 = vst [vmem:[#allocation1] sm:%s3] %v4
    %v6 = vld [vmem:[#allocation1] sm:$0x1]
    %vm7 = vcmask 261120
    %8 = vst.msk [vmem:[#allocation0] sm:$0x1] %vm7, %v6
    %s9 = scalar_lea.vmem [#allocation1], 3
    %v10 = vld [vmem:[%s9] sm:$0x1]
    %11 = vrot.lane.b32.xlu0 %v10, 96
    %v12 = vpop.permute.xlu0 %11
    %vm13 = vcmask 1048320
    %14 = vst.msk [vmem:[#allocation0] sm:$0x1] %vm13, %v12
    %s15 = scalar_lea.vmem [#allocation1], 2
    %v16 = vld [vmem:[%s15] sm:$0x1]
    %17 = vrot.lane.b32.xlu0 %v16, 64
    %v18 = vpop.permute.xlu0 %17
    %vm19 = vcmask 785920
    %20 = vst.msk [vmem:[#allocation0] sm:$0x1] %vm19, %v18
    %s21 = scalar_lea.vmem [#allocation1], 1
    %v22 = vld [vmem:[%s21] sm:$0x1]
    %23 = vrot.lane.b32.xlu0 %v22, 32
    %v24 = vpop.permute.xlu0 %23
    %vm25 = vcmask 523520
    %26 = vst.msk [vmem:[#allocation0] sm:$0x1] %vm25, %v24
    %s28 = ssub.s32 2, 1
    %v29 = vld [vmem:[#allocation0] sm:%s28]
    %s31 = ssub.s32 2, 1
    %32 = vst [vmem:[%s1] sm:%s31] %v29

// kernel: tile.43
$region0: #{tile.43}
  #allocation0 [shape = 's32[1]{0}', space=sflag, size = 0x4, scoped, tag = 'scoped memory for tile.43']
  %s0 = inlined_call_operand.vmem [shape: f32[32], index: 0, kind: input, shape index: {}]
  %s1 = inlined_call_operand.vmem [shape: f32[4,32], index: 1, kind: output, shape index: {}]
  // Predicated region
  $region2: #{tile.43} parent=0 // pred_check
    _
  $region3: #{tile.43} parent=0 // pred_check_branch
    %3 = sbr.rel (0) target = $region5
  $region4: #{tile.43} parent=0 // pred_region
    _
  $region5: #{tile.43} parent=0 // pred_fallthru
    _
  %v4 = vld [vmem:[%s0] ss:$0 sm:$0xff]
  %5 = vst [vmem:[%s1] sm:$0xf] %v4

// kernel: upconv_fwd.4
$region0: #{upconv_fwd.4}
  #allocation0 [shape = 'u32[]', space=smem, size = 0x4, offset = 0x4, fixed_abs, tag = 'smem constant byte address 0x4 - core index']
  #allocation1 [shape = 'u32[72,128]{1,0:T(1,128)}', space=vmem, size = 0x9000, scoped, tag = 'internal scratch']
  %s0 = inlined_call_operand.hbm [shape: f32[512,64], index: 0, kind: input, shape index: {}]
  %s1 = inlined_call_operand.vmem [shape: bf16[64,128], index: 1, kind: input, shape index: {}]
  %s2 = inlined_call_operand.vmem [shape: f32[1,128], index: 2, kind: input, shape index: {}]
  %s3 = inlined_call_operand.vmem [shape: bf16[512,128], index: 3, kind: output, shape index: {0}]
  %s4 = inlined_call_operand.vmem [shape: f32[2,1,128], index: 4, kind: output, shape index: {1}]
  %s5 = inlined_call_operand.vmem [shape: f32[2,1,128], index: 5, kind: output, shape index: {2}]
  %6 = xla_tuple %s3, %s4, %s5
  %s7 = sld [smem:[#allocation0]]
  $region69: #{upconv_fwd.4} parent=0
    _
  %s9 = ssub.s32 1, %s7
  %s10 = scalar_select 0, %s9, %s7
  $region1: #{upconv_fwd.4} parent=0
    #allocation2 [shape = 'u8[262144]{0}', space=vmem, size = 0x40000, scoped, tag = 'input window, operand 0']
    #allocation3 [shape = 's32[2]{0}', space=sflag, size = 0x8, scoped, tag = 'scoped memory for upconv_fwd.4']
    %11 = vsyncpa [#allocation3], 0
    %s12 = scalar_lea.sflag [#allocation3], 1
    %13 = vsyncpa %s12, 0
    loop: start=0, step=1, limit=4
    $region2: #{upconv_fwd.4} parent=1 // loop_pre_header
      _
    $region3: #{upconv_fwd.4} parent=1 // loop_header
      %s15 = sphi 0, %s19
      %p16 = scmp.ge.s32.totalorder %s15, 4
      %s22 = sphi 0, %s34
      %s23 = sphi 0, %s30
      %s24 = sphi 0, %s22
      %s25 = sphi 0, %s23
      %s26 = sphi 0, %s24
      %s27 = sphi 0, %s25
      %s39 = sphi 0, %s41
      %s42 = sphi 0, %s39
      %s43 = sphi 0, %s42
      %s59 = sphi 0, %s43
      %s63 = sphi 0, %s63
      %s65 = sphi 0, %s63
      %s66 = sphi 0, %s65
      %s80 = sphi 0, %s66
      %s84 = sphi 0, %s84
      %s86 = sphi 0, %s84
      %s87 = sphi 0, %s86
      %s101 = sphi 0, %s87
      %s109 = sphi 0, %s111
      %s112 = sphi 0, %s109
      %s113 = sphi 0, %s112
      %s129 = sphi 0, %s113
      %s135 = sphi 0, %s137
      %s138 = sphi 0, %s135
      %s139 = sphi 0, %s138
      %s155 = sphi 0, %s139
      %s161 = sphi 0, %s163
      %s164 = sphi 0, %s161
      %s165 = sphi 0, %s164
      %s181 = sphi 0, %s165
    $region4: #{upconv_fwd.4} parent=1 // loop_header_branch
      %18 = sbr.rel (%p16) target = $region8
    $region5: #{upconv_fwd.4} parent=1 // loop_body
      %s20 = ssub.s32 %s15, 1
      %s21 = ssub.s32 %s15, 2
      %s28 = sadd.s32 1, %s23
      %p29 = scmp.ge.s32.totalorder %s28, 1
      %s30 = scalar_select %p29, 0, %s28
      %s31 = sadd.s32 1, %s22
      %s32 = scalar_select %p29, %s31, %s22
      %p33 = scmp.ge.s32.totalorder %s32, 2
      %s34 = scalar_select %p33, 0, %s32
      %s35 = sadd.s32 %s22, %s23
      %s36 = sadd.s32 %s34, %s30
      %s37 = ssub.s32 %s35, %s36
      %p38 = scmp.eq.s32.totalorder %s37, 0
      %s40 = sadd.s32 %s39, 1
      %s41 = scalar_select %p38, %s39, %s40
      %p44 = pneg %p38
      %p45 = scmp.eq.s32.totalorder %s15, 1
      %p46 = por %p44, %p45
      %p47 = scmp.ne.s32.totalorder %s39, %s42
      %p48 = scmp.eq.s32.totalorder %s15, 0
      %p49 = por %p47, %p48
      %p50 = scmp.ne.s32.totalorder %s39, %s42
      %p51 = scmp.eq.s32.totalorder %s20, 1
      %p52 = por %p50, %p51
      %p53 = scmp.ne.s32.totalorder %s42, %s43
      %p54 = scmp.eq.s32.totalorder %s20, 0
      %p55 = por %p53, %p54
      %p56 = scmp.ne.s32.totalorder %s42, %s43
      %p57 = scmp.eq.s32.totalorder %s21, 1
      %p58 = por %p56, %p57
      %p60 = scmp.ne.s32.totalorder %s43, %s59
      %p61 = scmp.eq.s32.totalorder %s21, 0
      %p62 = por %p60, %p61
      %s64 = sadd.s32 %s63, 1
      %p67 = scmp.eq.s32.totalorder %s15, 1
      %p68 = scmp.ne.s32.totalorder %s63, %s65
      %p69 = scmp.eq.s32.totalorder %s15, 0
      %p70 = por %p68, %p69
      %p71 = scmp.ne.s32.totalorder %s63, %s65
      %p72 = scmp.eq.s32.totalorder %s20, 1
      %p73 = por %p71, %p72
      %p74 = scmp.ne.s32.totalorder %s65, %s66
      %p75 = scmp.eq.s32.totalorder %s20, 0
      %p76 = por %p74, %p75
      %p77 = scmp.ne.s32.totalorder %s65, %s66
      %p78 = scmp.eq.s32.totalorder %s21, 1
      %p79 = por %p77, %p78
      %p81 = scmp.ne.s32.totalorder %s66, %s80
      %p82 = scmp.eq.s32.totalorder %s21, 0
      %p83 = por %p81, %p82
      %s85 = sadd.s32 %s84, 1
      %p88 = scmp.eq.s32.totalorder %s15, 1
      %p89 = scmp.ne.s32.totalorder %s84, %s86
      %p90 = scmp.eq.s32.totalorder %s15, 0
      %p91 = por %p89, %p90
      %p92 = scmp.ne.s32.totalorder %s84, %s86
      %p93 = scmp.eq.s32.totalorder %s20, 1
      %p94 = por %p92, %p93
      %p95 = scmp.ne.s32.totalorder %s86, %s87
      %p96 = scmp.eq.s32.totalorder %s20, 0
      %p97 = por %p95, %p96
      %p98 = scmp.ne.s32.totalorder %s86, %s87
      %p99 = scmp.eq.s32.totalorder %s21, 1
      %p100 = por %p98, %p99
      %p102 = scmp.ne.s32.totalorder %s87, %s101
      %p103 = scmp.eq.s32.totalorder %s21, 0
      %p104 = por %p102, %p103
      %s105 = sadd.s32 %s22, %s23
      %s106 = sadd.s32 %s34, %s30
      %s107 = ssub.s32 %s105, %s106
      %p108 = scmp.eq.s32.totalorder %s107, 0
      %s110 = sadd.s32 %s109, 1
      %s111 = scalar_select %p108, %s109, %s110
      %p114 = pneg %p108
      %p115 = scmp.eq.s32.totalorder %s15, 1
      %p116 = por %p114, %p115
      %p117 = scmp.ne.s32.totalorder %s109, %s112
      %p118 = scmp.eq.s32.totalorder %s15, 0
      %p119 = por %p117, %p118
      %p120 = scmp.ne.s32.totalorder %s109, %s112
      %p121 = scmp.eq.s32.totalorder %s20, 1
      %p122 = por %p120, %p121
      %p123 = scmp.ne.s32.totalorder %s112, %s113
      %p124 = scmp.eq.s32.totalorder %s20, 0
      %p125 = por %p123, %p124
      %p126 = scmp.ne.s32.totalorder %s112, %s113
      %p127 = scmp.eq.s32.totalorder %s21, 1
      %p128 = por %p126, %p127
      %p130 = scmp.ne.s32.totalorder %s113, %s129
      %p131 = scmp.eq.s32.totalorder %s21, 0
      %p132 = por %p130, %p131
      %s133 = ssub.s32 %s22, %s34
      %p134 = scmp.eq.s32.totalorder %s133, 0
      %s136 = sadd.s32 %s135, 1
      %s137 = scalar_select %p134, %s135, %s136
      %p140 = pneg %p134
      %p141 = scmp.eq.s32.totalorder %s15, 1
      %p142 = por %p140, %p141
      %p143 = scmp.ne.s32.totalorder %s135, %s138
      %p144 = scmp.eq.s32.totalorder %s15, 0
      %p145 = por %p143, %p144
      %p146 = scmp.ne.s32.totalorder %s135, %s138
      %p147 = scmp.eq.s32.totalorder %s20, 1
      %p148 = por %p146, %p147
      %p149 = scmp.ne.s32.totalorder %s138, %s139
      %p150 = scmp.eq.s32.totalorder %s20, 0
      %p151 = por %p149, %p150
      %p152 = scmp.ne.s32.totalorder %s138, %s139
      %p153 = scmp.eq.s32.totalorder %s21, 1
      %p154 = por %p152, %p153
      %p156 = scmp.ne.s32.totalorder %s139, %s155
      %p157 = scmp.eq.s32.totalorder %s21, 0
      %p158 = por %p156, %p157
      %s159 = ssub.s32 %s22, %s34
      %p160 = scmp.eq.s32.totalorder %s159, 0
      %s162 = sadd.s32 %s161, 1
      %s163 = scalar_select %p160, %s161, %s162
      %p166 = pneg %p160
      %p167 = scmp.eq.s32.totalorder %s15, 1
      %p168 = por %p166, %p167
      %p169 = scmp.ne.s32.totalorder %s161, %s164
      %p170 = scmp.eq.s32.totalorder %s15, 0
      %p171 = por %p169, %p170
      %p172 = scmp.ne.s32.totalorder %s161, %s164
      %p173 = scmp.eq.s32.totalorder %s20, 1
      %p174 = por %p172, %p173
      %p175 = scmp.ne.s32.totalorder %s164, %s165
      %p176 = scmp.eq.s32.totalorder %s20, 0
      %p177 = por %p175, %p176
      %p178 = scmp.ne.s32.totalorder %s164, %s165
      %p179 = scmp.eq.s32.totalorder %s21, 1
      %p180 = por %p178, %p179
      %p182 = scmp.ne.s32.totalorder %s165, %s181
      %p183 = scmp.eq.s32.totalorder %s21, 0
      %p184 = por %p182, %p183
      %p185 = scmp.le.s32.totalorder 1, %s15
      %p186 = scmp.lt.s32.totalorder %s15, 3
      %p187 = pnand %p185, %p186
      %p188 = pneg %p187
      // Predicated region
      $region9: #{upconv_fwd.4} parent=5 // pred_check
        _
      $region10: #{upconv_fwd.4} parent=5 // pred_check_branch
        %190 = sbr.rel (%p187) target = $region12
      $region11: #{upconv_fwd.4} parent=5 // pred_region
        %s191 = ssub.s32 %s15, 1
        // Predicated region
        $region13: #{upconv_fwd.4} parent=11 // pred_check
          %p192 = pneg %p76
        $region14: #{upconv_fwd.4} parent=11 // pred_check_branch
          %194 = sbr.rel (%p192) target = $region16
        $region15: #{upconv_fwd.4} parent=11 // pred_region
          _
        $region16: #{upconv_fwd.4} parent=11 // pred_fallthru
          _
        // Predicated region
        $region17: #{upconv_fwd.4} parent=11 // pred_check
          %p195 = pneg %p97
        $region18: #{upconv_fwd.4} parent=11 // pred_check_branch
          %197 = sbr.rel (%p195) target = $region20
        $region19: #{upconv_fwd.4} parent=11 // pred_region
          _
        $region20: #{upconv_fwd.4} parent=11 // pred_fallthru
          _
      $region12: #{upconv_fwd.4} parent=5 // pred_fallthru
        _
      %p198 = scmp.lt.s32.totalorder %s15, 2
      // Predicated region
      $region21: #{upconv_fwd.4} parent=5 // pred_check
        %p199 = pneg %p198
      $region22: #{upconv_fwd.4} parent=5 // pred_check_branch
        %201 = sbr.rel (%p199) target = $region24
      $region23: #{upconv_fwd.4} parent=5 // pred_region
        // Predicated region
        $region25: #{upconv_fwd.4} parent=23 // pred_check
          %p202 = pneg %p49
        $region26: #{upconv_fwd.4} parent=23 // pred_check_branch
          %204 = sbr.rel (%p202) target = $region28
        $region27: #{upconv_fwd.4} parent=23 // pred_region
          %s205 = sand.u32 %s39, 1
          %s206 = scalar_lea.sflag [#allocation3], %s205
          %s207 = sand.u32 %s39, 1
          %s208 = smul.addr %s207, 256
          %s209 = scalar_lea.vmem [#allocation2], %s208
          %s210 = sadd.s32 %s22, %s23
          %s211 = smul.u32 32, %s210
          %213 = vsyncadd %s206, 0
          %s214 = smul.addr %s211, 8
          %s215 = scalar_lea.hbm %s0, %s214
          %s216 = sshll.u32 %s215, 4
          %s217 = int_to_ptr.hbm [resolvable:$true] %s216
          %s218 = sshll.u32 %s209, 4
          %s219 = int_to_ptr.vmem [resolvable:$true] %s218
          %224 = dma.hbm_to_vmem [thread:$0]  %s217, 4096, %s219, %s206, 128, 128, 8
        $region28: #{upconv_fwd.4} parent=23 // pred_fallthru
          _
      $region24: #{upconv_fwd.4} parent=5 // pred_fallthru
        _
      %p225 = scmp.le.s32.totalorder 1, %s15
      %p226 = scmp.lt.s32.totalorder %s15, 3
      %p227 = pnand %p225, %p226
      %p228 = pneg %p227
      // Predicated region
      $region29: #{upconv_fwd.4} parent=5 // pred_check
        _
      $region30: #{upconv_fwd.4} parent=5 // pred_check_branch
        %230 = sbr.rel (%p227) target = $region32
      $region31: #{upconv_fwd.4} parent=5 // pred_region
        %s231 = ssub.s32 %s15, 1
        %s232 = sand.u32 %s42, 1
        %s233 = scalar_lea.sflag [#allocation3], %s232
        %s234 = sand.u32 %s42, 1
        %s235 = smul.addr %s234, 256
        %s236 = scalar_lea.vmem [#allocation2], %s235
        // Predicated region
        $region33: #{upconv_fwd.4} parent=31 // pred_check
          %p237 = pneg %p55
        $region34: #{upconv_fwd.4} parent=31 // pred_check_branch
          %239 = sbr.rel (%p237) target = $region36
        $region35: #{upconv_fwd.4} parent=31 // pred_region
          %241 = dma.done %s233, 4096
        $region36: #{upconv_fwd.4} parent=31 // pred_fallthru
          _
        %s242 = sand.u32 %s42, 1
        %s243 = scalar_lea.sflag [#allocation3], %s242
        %s244 = sand.u32 %s42, 1
        %s245 = smul.addr %s244, 256
        %s246 = scalar_lea.vmem [#allocation2], %s245
        %p247 = pneg %p55
        %p248 = pneg %p52
        %p249 = pneg %p76
        %p250 = pneg %p73
        %p251 = pneg %p97
        %p252 = pneg %p94
        %p253 = pneg %p125
        %p254 = pneg %p122
        %s255 = sadd.s32 %s24, %s25
        %s256 = smul.u32 32, %s255
        %p257 = scmp.lt.s32.totalorder %s256, 63
        %s258 = scalar_select %p257, %s256, 63
        %s259 = smul.addr %s258, 4
        %s260 = scalar_lea.vmem %s3, %s259
        %p261 = pneg %p151
        %p262 = pneg %p148
        %p263 = scmp.lt.s32.totalorder %s24, 1
        %s264 = scalar_select %p263, %s24, 1
        %s265 = scalar_lea.vmem %s4, %s264
        %p266 = pneg %p177
        %p267 = pneg %p174
        %p268 = scmp.lt.s32.totalorder %s24, 1
        %s269 = scalar_select %p268, %s24, 1
        %s270 = scalar_lea.vmem %s5, %s269
        %s271 = sadd.s32 %s24, %s25
        %s272 = smul.u32 32, %s271
        %s273 = sadd.s32 %s24, %s25
        %s274 = smul.u32 32, %s273
        %p275 = scmp.lt.s32.totalorder %s274, 63
        %s276 = scalar_select %p275, %s274, 63
        %s277 = smul.addr %s276, 4
        %s278 = scalar_lea.vmem %s3, %s277
        %s279 = sadd.s32 %s24, %s25
        %s280 = smul.u32 32, %s279
        %p281 = scmp.lt.s32.totalorder %s24, 1
        %s282 = scalar_select %p281, %s24, 1
        %s283 = scalar_lea.vmem %s4, %s282
        %p284 = scmp.lt.s32.totalorder %s24, 1
        %s285 = scalar_select %p284, %s24, 1
        %s286 = scalar_lea.vmem %s5, %s285
        %p288 = scmp.eq.s32.totalorder %s25, 0
        // Predicated region
        $region37: #{upconv_fwd.4} parent=31 // pred_check
          %p289 = pneg %p288
        $region38: #{upconv_fwd.4} parent=31 // pred_check_branch
          %291 = sbr.rel (%p289) target = $region40
        $region39: #{upconv_fwd.4} parent=31 // pred_region
          %292 = vst [vmem:[%s283] sm:$0x1] 0.0
          %293 = vst [vmem:[%s286] sm:$0x1] 0.0
        $region40: #{upconv_fwd.4} parent=31 // pred_fallthru
          _
        %v294 = vld [vmem:[%s236] sm:$0xff]
        %v295 = vld [vmem:[%s236 + $0x8] sm:$0xff]
        %v296 = vld [vmem:[%s236 + $0x10] sm:$0xff]
        %v297 = vld [vmem:[%s236 + $0x18] sm:$0xff]
        %v298 = vld [vmem:[%s236 + $0x20] sm:$0xff]
        %v299 = vld [vmem:[%s236 + $0x28] sm:$0xff]
        %v300 = vld [vmem:[%s236 + $0x30] sm:$0xff]
        %v301 = vld [vmem:[%s236 + $0x38] sm:$0xff]
        %v302 = vld [vmem:[%s236 + $0x40] sm:$0xff]
        %v303 = vld [vmem:[%s236 + $0x48] sm:$0xff]
        %v304 = vld [vmem:[%s236 + $0x50] sm:$0xff]
        %v305 = vld [vmem:[%s236 + $0x58] sm:$0xff]
        %v306 = vld [vmem:[%s236 + $0x60] sm:$0xff]
        %v307 = vld [vmem:[%s236 + $0x68] sm:$0xff]
        %v308 = vld [vmem:[%s236 + $0x70] sm:$0xff]
        %v309 = vld [vmem:[%s236 + $0x78] sm:$0xff]
        %v310 = vld [vmem:[%s236 + $0x80] sm:$0xff]
        %v311 = vld [vmem:[%s236 + $0x88] sm:$0xff]
        %v312 = vld [vmem:[%s236 + $0x90] sm:$0xff]
        %v313 = vld [vmem:[%s236 + $0x98] sm:$0xff]
        %v314 = vld [vmem:[%s236 + $0xa0] sm:$0xff]
        %v315 = vld [vmem:[%s236 + $0xa8] sm:$0xff]
        %v316 = vld [vmem:[%s236 + $0xb0] sm:$0xff]
        %v317 = vld [vmem:[%s236 + $0xb8] sm:$0xff]
        %v318 = vld [vmem:[%s236 + $0xc0] sm:$0xff]
        %v319 = vld [vmem:[%s236 + $0xc8] sm:$0xff]
        %v320 = vld [vmem:[%s236 + $0xd0] sm:$0xff]
        %v321 = vld [vmem:[%s236 + $0xd8] sm:$0xff]
        %v322 = vld [vmem:[%s236 + $0xe0] sm:$0xff]
        %v323 = vld [vmem:[%s236 + $0xe8] sm:$0xff]
        %v324 = vld [vmem:[%s236 + $0xf0] sm:$0xff]
        %v325 = vld [vmem:[%s236 + $0xf8] sm:$0xff]
        %v326 = vpack.c.bf16 %v295, %v294
        %v327 = vpack.c.bf16 %v297, %v296
        %v328 = vpack.c.bf16 %v299, %v298
        %v329 = vpack.c.bf16 %v301, %v300
        %v330 = vpack.c.bf16 %v303, %v302
        %v331 = vpack.c.bf16 %v305, %v304
        %v332 = vpack.c.bf16 %v307, %v306
        %v333 = vpack.c.bf16 %v309, %v308
        %v334 = vpack.c.bf16 %v311, %v310
        %v335 = vpack.c.bf16 %v313, %v312
        %v336 = vpack.c.bf16 %v315, %v314
        %v337 = vpack.c.bf16 %v317, %v316
        %v338 = vpack.c.bf16 %v319, %v318
        %v339 = vpack.c.bf16 %v321, %v320
        %v340 = vpack.c.bf16 %v323, %v322
        %v341 = vpack.c.bf16 %v325, %v324
        %v342 = vld [vmem:[%s1] sm:$0xf]
        %v343 = vld [vmem:[%s1 + $0x4] sm:$0xf]
        %v344 = vld [vmem:[%s1 + $0x8] sm:$0xf]
        %v345 = vld [vmem:[%s1 + $0xc] sm:$0xf]
        %v346 = vld [vmem:[%s1 + $0x10] sm:$0xf]
        %v347 = vld [vmem:[%s1 + $0x14] sm:$0xf]
        %v348 = vld [vmem:[%s1 + $0x18] sm:$0xf]
        %v349 = vld [vmem:[%s1 + $0x1c] sm:$0xf]
        %v350 = vld [vmem:[%s2] sm:$0x1]
        %v352 = vperm.slane %v350, 0
        %v362 = vunpack.c.l.b16 %v342
        %v363 = vunpack.c.l.b16 %v343
        %v364 = vunpack.c.l.b16 %v344
        %v365 = vunpack.c.l.b16 %v345
        %v366 = vunpack.c.l.b16 %v346
        %v367 = vunpack.c.l.b16 %v347
        %v368 = vunpack.c.l.b16 %v348
        %v369 = vunpack.c.l.b16 %v349
        %v370 = vpack.c.b16 %v363, %v362
        %v371 = vpack.c.b16 %v365, %v364
        %v372 = vpack.c.b16 %v367, %v366
        %v373 = vpack.c.b16 %v369, %v368
        %vm378 = vcmask 523264
        %v380 = vsel %vm378, %v326, 0
        %v383 = vsel %vm378, %v327, 0
        %v386 = vsel %vm378, %v328, 0
        %v389 = vsel %vm378, %v329, 0
        %v392 = vsel %vm378, %v330, 0
        %v395 = vsel %vm378, %v331, 0
        %v398 = vsel %vm378, %v332, 0
        %v401 = vsel %vm378, %v333, 0
        %v404 = vsel %vm378, %v334, 0
        %v407 = vsel %vm378, %v335, 0
        %v410 = vsel %vm378, %v336, 0
        %v413 = vsel %vm378, %v337, 0
        %v416 = vsel %vm378, %v338, 0
        %v419 = vsel %vm378, %v339, 0
        %v422 = vsel %vm378, %v340, 0
        %v425 = vsel %vm378, %v341, 0
        %427 = vmatpush.bf16.msra.mxu0 0
        %428 = vmatpush.bf16.msra.mxu0 0
        %429 = vmatpush.bf16.msra.mxu0 0
        %430 = vmatpush.bf16.msra.mxu0 0
        %431 = vmatpush.bf16.msra.mxu0 %v373
        %432 = vmatpush.bf16.msra.mxu0 %v372
        %433 = vmatpush.bf16.msra.mxu0 %v371
        %434 = vmatpush.bf16.msra.mxu0 %v370
        %435 = vmatmul.bf16.gmra.mxu0 %v380
        %v436 = vpop.f32.mrf.mxu0
        %v437 = vadd.f32 %v352, %v436
        %v438 = vpop.f32.mrf.mxu0
        %v439 = vadd.f32 %v352, %v438
        %440 = vmatmul.bf16.gmra.mxu0 %v383
        %v441 = vpop.f32.mrf.mxu0
        %v442 = vadd.f32 %v352, %v441
        %v443 = vpop.f32.mrf.mxu0
        %v444 = vadd.f32 %v352, %v443
        %445 = vmatmul.bf16.gmra.mxu0 %v386
        %v446 = vpop.f32.mrf.mxu0
        %v447 = vadd.f32 %v352, %v446
        %v448 = vpop.f32.mrf.mxu0
        %v449 = vadd.f32 %v352, %v448
        %450 = vmatmul.bf16.gmra.mxu0 %v389
        %v451 = vpop.f32.mrf.mxu0
        %v452 = vadd.f32 %v352, %v451
        %v453 = vpop.f32.mrf.mxu0
        %v454 = vadd.f32 %v352, %v453
        %455 = vmatmul.bf16.gmra.mxu0 %v392
        %v456 = vpop.f32.mrf.mxu0
        %v457 = vadd.f32 %v352, %v456
        %v458 = vpop.f32.mrf.mxu0
        %v459 = vadd.f32 %v352, %v458
        %460 = vmatmul.bf16.gmra.mxu0 %v395
        %v461 = vpop.f32.mrf.mxu0
        %v462 = vadd.f32 %v352, %v461
        %v463 = vpop.f32.mrf.mxu0
        %v464 = vadd.f32 %v352, %v463
        %465 = vmatmul.bf16.gmra.mxu0 %v398
        %v466 = vpop.f32.mrf.mxu0
        %v467 = vadd.f32 %v352, %v466
        %v468 = vpop.f32.mrf.mxu0
        %v469 = vadd.f32 %v352, %v468
        %470 = vmatmul.bf16.gmra.mxu0 %v401
        %v471 = vpop.f32.mrf.mxu0
        %v472 = vadd.f32 %v352, %v471
        %v473 = vpop.f32.mrf.mxu0
        %v474 = vadd.f32 %v352, %v473
        %475 = vmatmul.bf16.gmra.mxu0 %v404
        %v476 = vpop.f32.mrf.mxu0
        %v477 = vadd.f32 %v352, %v476
        %v478 = vpop.f32.mrf.mxu0
        %v479 = vadd.f32 %v352, %v478
        %480 = vmatmul.bf16.gmra.mxu0 %v407
        %v481 = vpop.f32.mrf.mxu0
        %v482 = vadd.f32 %v352, %v481
        %v483 = vpop.f32.mrf.mxu0
        %v484 = vadd.f32 %v352, %v483
        %485 = vmatmul.bf16.gmra.mxu0 %v410
        %v486 = vpop.f32.mrf.mxu0
        %v487 = vadd.f32 %v352, %v486
        %v488 = vpop.f32.mrf.mxu0
        %v489 = vadd.f32 %v352, %v488
        %490 = vmatmul.bf16.gmra.mxu0 %v413
        %v491 = vpop.f32.mrf.mxu0
        %v492 = vadd.f32 %v352, %v491
        %v493 = vpop.f32.mrf.mxu0
        %v494 = vadd.f32 %v352, %v493
        %495 = vmatmul.bf16.gmra.mxu0 %v416
        %v496 = vpop.f32.mrf.mxu0
        %v497 = vadd.f32 %v352, %v496
        %v498 = vpop.f32.mrf.mxu0
        %v499 = vadd.f32 %v352, %v498
        %500 = vmatmul.bf16.gmra.mxu0 %v419
        %v501 = vpop.f32.mrf.mxu0
        %v502 = vadd.f32 %v352, %v501
        %v503 = vpop.f32.mrf.mxu0
        %v504 = vadd.f32 %v352, %v503
        %505 = vmatmul.bf16.gmra.mxu0 %v422
        %v506 = vpop.f32.mrf.mxu0
        %v507 = vadd.f32 %v352, %v506
        %v508 = vpop.f32.mrf.mxu0
        %v509 = vadd.f32 %v352, %v508
        %510 = vmatmul.bf16.gmra.mxu0 %v425
        %v511 = vpop.f32.mrf.mxu0
        %v512 = vadd.f32 %v352, %v511
        %v513 = vpop.f32.mrf.mxu0
        %v514 = vadd.f32 %v352, %v513
        %515 = vdwg.mxu0
        %v516 = vpack.c.bf16 %v437, %v437
        %v517 = vpack.c.bf16 %v439, %v439
        %v518 = vpack.c.bf16 %v442, %v442
        %v519 = vpack.c.bf16 %v444, %v444
        %v520 = vpack.c.bf16 %v447, %v447
        %v521 = vpack.c.bf16 %v449, %v449
        %v522 = vpack.c.bf16 %v452, %v452
        %v523 = vpack.c.bf16 %v454, %v454
        %v524 = vpack.c.bf16 %v457, %v457
        %v525 = vpack.c.bf16 %v459, %v459
        %v526 = vpack.c.bf16 %v462, %v462
        %v527 = vpack.c.bf16 %v464, %v464
        %v528 = vpack.c.bf16 %v467, %v467
        %v529 = vpack.c.bf16 %v469, %v469
        %v530 = vpack.c.bf16 %v472, %v472
        %v531 = vpack.c.bf16 %v474, %v474
        %v532 = vpack.c.bf16 %v477, %v477
        %v533 = vpack.c.bf16 %v479, %v479
        %v534 = vpack.c.bf16 %v482, %v482
        %v535 = vpack.c.bf16 %v484, %v484
        %v536 = vpack.c.bf16 %v487, %v487
        %v537 = vpack.c.bf16 %v489, %v489
        %v538 = vpack.c.bf16 %v492, %v492
        %v539 = vpack.c.bf16 %v494, %v494
        %v540 = vpack.c.bf16 %v497, %v497
        %v541 = vpack.c.bf16 %v499, %v499
        %v542 = vpack.c.bf16 %v502, %v502
        %v543 = vpack.c.bf16 %v504, %v504
        %v544 = vpack.c.bf16 %v507, %v507
        %v545 = vpack.c.bf16 %v509, %v509
        %v546 = vpack.c.bf16 %v512, %v512
        %v547 = vpack.c.bf16 %v514, %v514
        %548 = vst [vmem:[%s278] sm:$0xf] %v516
        %549 = vst [vmem:[%s278 + $0x4] sm:$0xf] %v517
        %550 = vst [vmem:[%s278 + $0x8] sm:$0xf] %v518
        %551 = vst [vmem:[%s278 + $0xc] sm:$0xf] %v519
        %552 = vst [vmem:[%s278 + $0x10] sm:$0xf] %v520
        %553 = vst [vmem:[%s278 + $0x14] sm:$0xf] %v521
        %554 = vst [vmem:[%s278 + $0x18] sm:$0xf] %v522
        %555 = vst [vmem:[%s278 + $0x1c] sm:$0xf] %v523
        %556 = vst [vmem:[%s278 + $0x20] sm:$0xf] %v524
        %557 = vst [vmem:[%s278 + $0x24] sm:$0xf] %v525
        %558 = vst [vmem:[%s278 + $0x28] sm:$0xf] %v526
        %559 = vst [vmem:[%s278 + $0x2c] sm:$0xf] %v527
        %560 = vst [vmem:[%s278 + $0x30] sm:$0xf] %v528
        %561 = vst [vmem:[%s278 + $0x34] sm:$0xf] %v529
        %562 = vst [vmem:[%s278 + $0x38] sm:$0xf] %v530
        %563 = vst [vmem:[%s278 + $0x3c] sm:$0xf] %v531
        %564 = vst [vmem:[%s278 + $0x40] sm:$0xf] %v532
        %565 = vst [vmem:[%s278 + $0x44] sm:$0xf] %v533
        %566 = vst [vmem:[%s278 + $0x48] sm:$0xf] %v534
        %567 = vst [vmem:[%s278 + $0x4c] sm:$0xf] %v535
        %568 = vst [vmem:[%s278 + $0x50] sm:$0xf] %v536
        %569 = vst [vmem:[%s278 + $0x54] sm:$0xf] %v537
        %570 = vst [vmem:[%s278 + $0x58] sm:$0xf] %v538
        %571 = vst [vmem:[%s278 + $0x5c] sm:$0xf] %v539
        %572 = vst [vmem:[%s278 + $0x60] sm:$0xf] %v540
        %573 = vst [vmem:[%s278 + $0x64] sm:$0xf] %v541
        %574 = vst [vmem:[%s278 + $0x68] sm:$0xf] %v542
        %575 = vst [vmem:[%s278 + $0x6c] sm:$0xf] %v543
        %576 = vst [vmem:[%s278 + $0x70] sm:$0xf] %v544
        %577 = vst [vmem:[%s278 + $0x74] sm:$0xf] %v545
        %578 = vst [vmem:[%s278 + $0x78] sm:$0xf] %v546
        %579 = vst [vmem:[%s278 + $0x7c] sm:$0xf] %v547
        %v580 = vld [vmem:[%s283] sm:$0x1]
        %v581 = vadd.f32 %v437, %v439
        %v582 = vadd.f32 %v581, %v442
        %v583 = vadd.f32 %v582, %v444
        %v584 = vadd.f32 %v583, %v447
        %v585 = vadd.f32 %v584, %v449
        %v586 = vadd.f32 %v585, %v452
        %v587 = vadd.f32 %v586, %v454
        %v588 = vadd.f32 %v587, %v457
        %v589 = vadd.f32 %v588, %v459
        %v590 = vadd.f32 %v589, %v462
        %v591 = vadd.f32 %v590, %v464
        %v592 = vadd.f32 %v591, %v467
        %v593 = vadd.f32 %v592, %v469
        %v594 = vadd.f32 %v593, %v472
        %v595 = vadd.f32 %v594, %v474
        %v596 = vadd.f32 %v595, %v477
        %v597 = vadd.f32 %v596, %v479
        %v598 = vadd.f32 %v597, %v482
        %v599 = vadd.f32 %v598, %v484
        %v600 = vadd.f32 %v599, %v487
        %v601 = vadd.f32 %v600, %v489
        %v602 = vadd.f32 %v601, %v492
        %v603 = vadd.f32 %v602, %v494
        %v604 = vadd.f32 %v603, %v497
        %v605 = vadd.f32 %v604, %v499
        %v606 = vadd.f32 %v605, %v502
        %v607 = vadd.f32 %v606, %v504
        %v608 = vadd.f32 %v607, %v507
        %v609 = vadd.f32 %v608, %v509
        %v610 = vadd.f32 %v609, %v512
        %v611 = vadd.f32 %v610, %v514
        %v612 = vrot.slane %v611, 4
        %v613 = vadd.f32 %v611, %v612
        %v614 = vrot.slane %v613, 2
        %v615 = vadd.f32 %v613, %v614
        %v616 = vrot.slane %v615, 1
        %v617 = vadd.f32 %v615, %v616
        %v618 = vadd.f32 %v580, %v617
        %619 = vst [vmem:[%s283] sm:$0x1] %v618
        %v620 = vld [vmem:[%s286] sm:$0x1]
        %v621 = vmul.f32 %v437, %v437
        %v622 = vmul.f32 %v439, %v439
        %v623 = vmul.f32 %v442, %v442
        %v624 = vmul.f32 %v444, %v444
        %v625 = vmul.f32 %v447, %v447
        %v626 = vmul.f32 %v449, %v449
        %v627 = vmul.f32 %v452, %v452
        %v628 = vmul.f32 %v454, %v454
        %v629 = vmul.f32 %v457, %v457
        %v630 = vmul.f32 %v459, %v459
        %v631 = vmul.f32 %v462, %v462
        %v632 = vmul.f32 %v464, %v464
        %v633 = vmul.f32 %v467, %v467
        %v634 = vmul.f32 %v469, %v469
        %v635 = vmul.f32 %v472, %v472
        %v636 = vmul.f32 %v474, %v474
        %v637 = vmul.f32 %v477, %v477
        %v638 = vmul.f32 %v479, %v479
        %v639 = vmul.f32 %v482, %v482
        %v640 = vmul.f32 %v484, %v484
        %v641 = vmul.f32 %v487, %v487
        %v642 = vmul.f32 %v489, %v489
        %v643 = vmul.f32 %v492, %v492
        %v644 = vmul.f32 %v494, %v494
        %v645 = vmul.f32 %v497, %v497
        %v646 = vmul.f32 %v499, %v499
        %v647 = vmul.f32 %v502, %v502
        %v648 = vmul.f32 %v504, %v504
        %v649 = vmul.f32 %v507, %v507
        %v650 = vmul.f32 %v509, %v509
        %v651 = vmul.f32 %v512, %v512
        %v652 = vmul.f32 %v514, %v514
        %v653 = vadd.f32 %v621, %v622
        %v654 = vadd.f32 %v653, %v623
        %v655 = vadd.f32 %v654, %v624
        %v656 = vadd.f32 %v655, %v625
        %v657 = vadd.f32 %v656, %v626
        %v658 = vadd.f32 %v657, %v627
        %v659 = vadd.f32 %v658, %v628
        %v660 = vadd.f32 %v659, %v629
        %v661 = vadd.f32 %v660, %v630
        %v662 = vadd.f32 %v661, %v631
        %v663 = vadd.f32 %v662, %v632
        %v664 = vadd.f32 %v663, %v633
        %v665 = vadd.f32 %v664, %v634
        %v666 = vadd.f32 %v665, %v635
        %v667 = vadd.f32 %v666, %v636
        %v668 = vadd.f32 %v667, %v637
        %v669 = vadd.f32 %v668, %v638
        %v670 = vadd.f32 %v669, %v639
        %v671 = vadd.f32 %v670, %v640
        %v672 = vadd.f32 %v671, %v641
        %v673 = vadd.f32 %v672, %v642
        %v674 = vadd.f32 %v673, %v643
        %v675 = vadd.f32 %v674, %v644
        %v676 = vadd.f32 %v675, %v645
        %v677 = vadd.f32 %v676, %v646
        %v678 = vadd.f32 %v677, %v647
        %v679 = vadd.f32 %v678, %v648
        %v680 = vadd.f32 %v679, %v649
        %v681 = vadd.f32 %v680, %v650
        %v682 = vadd.f32 %v681, %v651
        %v683 = vadd.f32 %v682, %v652
        %v684 = vrot.slane %v683, 4
        %v685 = vadd.f32 %v683, %v684
        %v686 = vrot.slane %v685, 2
        %v687 = vadd.f32 %v685, %v686
        %v688 = vrot.slane %v687, 1
        %v689 = vadd.f32 %v687, %v688
        %v690 = vadd.f32 %v620, %v689
        %691 = vst [vmem:[%s286] sm:$0x1] %v690
        %s692 = sadd.s32 %s24, %s25
        %s693 = smul.u32 32, %s692
        %p694 = scmp.lt.s32.totalorder %s693, 63
        %s695 = scalar_select %p694, %s693, 63
        %s696 = smul.addr %s695, 4
        %s697 = scalar_lea.vmem %s3, %s696
        %p698 = scmp.lt.s32.totalorder %s24, 1
        %s699 = scalar_select %p698, %s24, 1
        %s700 = scalar_lea.vmem %s4, %s699
        %p701 = scmp.lt.s32.totalorder %s24, 1
        %s702 = scalar_select %p701, %s24, 1
        %s703 = scalar_lea.vmem %s5, %s702
        // Predicated region
        $region41: #{upconv_fwd.4} parent=31 // pred_check
          %p704 = pneg %p122
        $region42: #{upconv_fwd.4} parent=31 // pred_check_branch
          %706 = sbr.rel (%p704) target = $region44
        $region43: #{upconv_fwd.4} parent=31 // pred_region
          %s707 = sadd.s32 %s24, %s25
          %s708 = smul.u32 32, %s707
        $region44: #{upconv_fwd.4} parent=31 // pred_fallthru
          _
        // Predicated region
        $region45: #{upconv_fwd.4} parent=31 // pred_check
          %p709 = pneg %p148
        $region46: #{upconv_fwd.4} parent=31 // pred_check_branch
          %711 = sbr.rel (%p709) target = $region48
        $region47: #{upconv_fwd.4} parent=31 // pred_region
          _
        $region48: #{upconv_fwd.4} parent=31 // pred_fallthru
          _
        // Predicated region
        $region49: #{upconv_fwd.4} parent=31 // pred_check
          %p712 = pneg %p174
        $region50: #{upconv_fwd.4} parent=31 // pred_check_branch
          %714 = sbr.rel (%p712) target = $region52
        $region51: #{upconv_fwd.4} parent=31 // pred_region
          _
        $region52: #{upconv_fwd.4} parent=31 // pred_fallthru
          _
      $region32: #{upconv_fwd.4} parent=5 // pred_fallthru
        _
      %p715 = scmp.le.s32.totalorder 2, %s15
      // Predicated region
      $region53: #{upconv_fwd.4} parent=5 // pred_check
        %p716 = pneg %p715
      $region54: #{upconv_fwd.4} parent=5 // pred_check_branch
        %718 = sbr.rel (%p716) target = $region56
      $region55: #{upconv_fwd.4} parent=5 // pred_region
        %s719 = ssub.s32 %s15, 2
        // Predicated region
        $region57: #{upconv_fwd.4} parent=55 // pred_check
          %p720 = pneg %p128
        $region58: #{upconv_fwd.4} parent=55 // pred_check_branch
          %722 = sbr.rel (%p720) target = $region60
        $region59: #{upconv_fwd.4} parent=55 // pred_region
          %s723 = sadd.s32 %s26, %s27
          %s724 = smul.u32 32, %s723
          %p725 = scmp.lt.s32.totalorder %s724, 63
          %s726 = scalar_select %p725, %s724, 63
          %s727 = smul.addr %s726, 4
          %s728 = scalar_lea.vmem %s3, %s727
        $region60: #{upconv_fwd.4} parent=55 // pred_fallthru
          _
        // Predicated region
        $region61: #{upconv_fwd.4} parent=55 // pred_check
          %p729 = pneg %p154
        $region62: #{upconv_fwd.4} parent=55 // pred_check_branch
          %731 = sbr.rel (%p729) target = $region64
        $region63: #{upconv_fwd.4} parent=55 // pred_region
          %p732 = scmp.lt.s32.totalorder %s26, 1
          %s733 = scalar_select %p732, %s26, 1
          %s734 = scalar_lea.vmem %s4, %s733
        $region64: #{upconv_fwd.4} parent=55 // pred_fallthru
          _
        // Predicated region
        $region65: #{upconv_fwd.4} parent=55 // pred_check
          %p735 = pneg %p180
        $region66: #{upconv_fwd.4} parent=55 // pred_check_branch
          %737 = sbr.rel (%p735) target = $region68
        $region67: #{upconv_fwd.4} parent=55 // pred_region
          %p738 = scmp.lt.s32.totalorder %s26, 1
          %s739 = scalar_select %p738, %s26, 1
          %s740 = scalar_lea.vmem %s5, %s739
        $region68: #{upconv_fwd.4} parent=55 // pred_fallthru
          _
      $region56: #{upconv_fwd.4} parent=5 // pred_fallthru
        _
    $region6: #{upconv_fwd.4} parent=1 // loop_footer
      %s19 = sadd.s32 1, %s15
    $region7: #{upconv_fwd.4} parent=1 // loop_footer_branch
      %14 = sbr.rel target = $region3
    $region8: #{upconv_fwd.4} parent=1 // loop_exit
      _
    %741 = vsyncpa [#allocation3], 1
    %s742 = scalar_lea.sflag [#allocation3], 1
    %743 = vsyncpa %s742, 1

// kernel: upconv_fwd.5
$region0: #{upconv_fwd.5}
  #allocation0 [shape = 'u32[]', space=smem, size = 0x4, offset = 0x4, fixed_abs, tag = 'smem constant byte address 0x4 - core index']
  #allocation1 [shape = 'u32[72,128]{1,0:T(1,128)}', space=vmem, size = 0x9000, scoped, tag = 'internal scratch']
  %s0 = inlined_call_operand.vmem [shape: bf16[2,256,128], index: 0, kind: input, shape index: {}]
  %s1 = inlined_call_operand.vmem [shape: f32[1,128], index: 1, kind: input, shape index: {}]
  %s2 = inlined_call_operand.vmem [shape: f32[1,128], index: 2, kind: input, shape index: {}]
  %s3 = inlined_call_operand.vmem [shape: bf16[2,18,18,128], index: 3, kind: output, shape index: {}]
  %s4 = sld [smem:[#allocation0]]
  $region45: #{upconv_fwd.5} parent=0
    _
  %s6 = ssub.s32 1, %s4
  %s7 = scalar_select 0, %s6, %s4
  loop: start=0, step=1, limit=4
  $region2: #{upconv_fwd.5} parent=0 // loop_pre_header
    _
  $region3: #{upconv_fwd.5} parent=0 // loop_header
    %s9 = sphi 0, %s13
    %p10 = scmp.ge.s32.totalorder %s9, 4
    %s19 = sphi 0, %s21
    %s22 = sphi 0, %s19
    %s23 = sphi 0, %s22
    %s39 = sphi 0, %s23
    %s43 = sphi 0, %s43
    %s45 = sphi 0, %s43
    %s46 = sphi 0, %s45
    %s60 = sphi 0, %s46
    %s64 = sphi 0, %s64
    %s66 = sphi 0, %s64
    %s67 = sphi 0, %s66
    %s81 = sphi 0, %s67
    %s87 = sphi 0, %s89
    %s90 = sphi 0, %s87
    %s91 = sphi 0, %s90
    %s107 = sphi 0, %s91
  $region4: #{upconv_fwd.5} parent=0 // loop_header_branch
    %12 = sbr.rel (%p10) target = $region8
  $region5: #{upconv_fwd.5} parent=0 // loop_body
    %s14 = ssub.s32 %s9, 1
    %s15 = ssub.s32 %s9, 2
    %s16 = sadd.s32 %s9, 1
    %s17 = ssub.s32 %s9, %s16
    %p18 = scmp.eq.s32.totalorder %s17, 0
    %s20 = sadd.s32 %s19, 1
    %s21 = scalar_select %p18, %s19, %s20
    %p24 = pneg %p18
    %p25 = scmp.eq.s32.totalorder %s9, 1
    %p26 = por %p24, %p25
    %p27 = scmp.ne.s32.totalorder %s19, %s22
    %p28 = scmp.eq.s32.totalorder %s9, 0
    %p29 = por %p27, %p28
    %p30 = scmp.ne.s32.totalorder %s19, %s22
    %p31 = scmp.eq.s32.totalorder %s14, 1
    %p32 = por %p30, %p31
    %p33 = scmp.ne.s32.totalorder %s22, %s23
    %p34 = scmp.eq.s32.totalorder %s14, 0
    %p35 = por %p33, %p34
    %p36 = scmp.ne.s32.totalorder %s22, %s23
    %p37 = scmp.eq.s32.totalorder %s15, 1
    %p38 = por %p36, %p37
    %p40 = scmp.ne.s32.totalorder %s23, %s39
    %p41 = scmp.eq.s32.totalorder %s15, 0
    %p42 = por %p40, %p41
    %s44 = sadd.s32 %s43, 1
    %p47 = scmp.eq.s32.totalorder %s9, 1
    %p48 = scmp.ne.s32.totalorder %s43, %s45
    %p49 = scmp.eq.s32.totalorder %s9, 0
    %p50 = por %p48, %p49
    %p51 = scmp.ne.s32.totalorder %s43, %s45
    %p52 = scmp.eq.s32.totalorder %s14, 1
    %p53 = por %p51, %p52
    %p54 = scmp.ne.s32.totalorder %s45, %s46
    %p55 = scmp.eq.s32.totalorder %s14, 0
    %p56 = por %p54, %p55
    %p57 = scmp.ne.s32.totalorder %s45, %s46
    %p58 = scmp.eq.s32.totalorder %s15, 1
    %p59 = por %p57, %p58
    %p61 = scmp.ne.s32.totalorder %s46, %s60
    %p62 = scmp.eq.s32.totalorder %s15, 0
    %p63 = por %p61, %p62
    %s65 = sadd.s32 %s64, 1
    %p68 = scmp.eq.s32.totalorder %s9, 1
    %p69 = scmp.ne.s32.totalorder %s64, %s66
    %p70 = scmp.eq.s32.totalorder %s9, 0
    %p71 = por %p69, %p70
    %p72 = scmp.ne.s32.totalorder %s64, %s66
    %p73 = scmp.eq.s32.totalorder %s14, 1
    %p74 = por %p72, %p73
    %p75 = scmp.ne.s32.totalorder %s66, %s67
    %p76 = scmp.eq.s32.totalorder %s14, 0
    %p77 = por %p75, %p76
    %p78 = scmp.ne.s32.totalorder %s66, %s67
    %p79 = scmp.eq.s32.totalorder %s15, 1
    %p80 = por %p78, %p79
    %p82 = scmp.ne.s32.totalorder %s67, %s81
    %p83 = scmp.eq.s32.totalorder %s15, 0
    %p84 = por %p82, %p83
    %s85 = ssub.s32 %s9, %s16
    %p86 = scmp.eq.s32.totalorder %s85, 0
    %s88 = sadd.s32 %s87, 1
    %s89 = scalar_select %p86, %s87, %s88
    %p92 = pneg %p86
    %p93 = scmp.eq.s32.totalorder %s9, 1
    %p94 = por %p92, %p93
    %p95 = scmp.ne.s32.totalorder %s87, %s90
    %p96 = scmp.eq.s32.totalorder %s9, 0
    %p97 = por %p95, %p96
    %p98 = scmp.ne.s32.totalorder %s87, %s90
    %p99 = scmp.eq.s32.totalorder %s14, 1
    %p100 = por %p98, %p99
    %p101 = scmp.ne.s32.totalorder %s90, %s91
    %p102 = scmp.eq.s32.totalorder %s14, 0
    %p103 = por %p101, %p102
    %p104 = scmp.ne.s32.totalorder %s90, %s91
    %p105 = scmp.eq.s32.totalorder %s15, 1
    %p106 = por %p104, %p105
    %p108 = scmp.ne.s32.totalorder %s91, %s107
    %p109 = scmp.eq.s32.totalorder %s15, 0
    %p110 = por %p108, %p109
    %p111 = scmp.le.s32.totalorder 1, %s9
    %p112 = scmp.lt.s32.totalorder %s9, 3
    %p113 = pnand %p111, %p112
    %p114 = pneg %p113
    // Predicated region
    $region9: #{upconv_fwd.5} parent=5 // pred_check
      _
    $region10: #{upconv_fwd.5} parent=5 // pred_check_branch
      %116 = sbr.rel (%p113) target = $region12
    $region11: #{upconv_fwd.5} parent=5 // pred_region
      %s117 = ssub.s32 %s9, 1
      // Predicated region
      $region13: #{upconv_fwd.5} parent=11 // pred_check
        %p118 = pneg %p56
      $region14: #{upconv_fwd.5} parent=11 // pred_check_branch
        %120 = sbr.rel (%p118) target = $region16
      $region15: #{upconv_fwd.5} parent=11 // pred_region
        _
      $region16: #{upconv_fwd.5} parent=11 // pred_fallthru
        _
      // Predicated region
      $region17: #{upconv_fwd.5} parent=11 // pred_check
        %p121 = pneg %p77
      $region18: #{upconv_fwd.5} parent=11 // pred_check_branch
        %123 = sbr.rel (%p121) target = $region20
      $region19: #{upconv_fwd.5} parent=11 // pred_region
        _
      $region20: #{upconv_fwd.5} parent=11 // pred_fallthru
        _
    $region12: #{upconv_fwd.5} parent=5 // pred_fallthru
      _
    %p124 = scmp.lt.s32.totalorder %s9, 2
    // Predicated region
    $region21: #{upconv_fwd.5} parent=5 // pred_check
      %p125 = pneg %p124
    $region22: #{upconv_fwd.5} parent=5 // pred_check_branch
      %127 = sbr.rel (%p125) target = $region24
    $region23: #{upconv_fwd.5} parent=5 // pred_region
      // Predicated region
      $region25: #{upconv_fwd.5} parent=23 // pred_check
        %p128 = pneg %p29
      $region26: #{upconv_fwd.5} parent=23 // pred_check_branch
        %130 = sbr.rel (%p128) target = $region28
      $region27: #{upconv_fwd.5} parent=23 // pred_region
        %p131 = scmp.lt.s32.totalorder %s9, 1
        %s132 = scalar_select %p131, %s9, 1
        %s133 = smul.addr %s132, 32
        %s134 = smul.addr %s133, 4
        %s135 = scalar_lea.vmem %s0, %s134
      $region28: #{upconv_fwd.5} parent=23 // pred_fallthru
        _
    $region24: #{upconv_fwd.5} parent=5 // pred_fallthru
      _
    %p136 = scmp.le.s32.totalorder 1, %s9
    %p137 = scmp.lt.s32.totalorder %s9, 3
    %p138 = pnand %p136, %p137
    %p139 = pneg %p138
    // Predicated region
    $region29: #{upconv_fwd.5} parent=5 // pred_check
      _
    $region30: #{upconv_fwd.5} parent=5 // pred_check_branch
      %141 = sbr.rel (%p138) target = $region32
    $region31: #{upconv_fwd.5} parent=5 // pred_region
      %s142 = ssub.s32 %s9, 1
      %p143 = scmp.lt.s32.totalorder %s14, 1
      %s144 = scalar_select %p143, %s14, 1
      %s145 = smul.addr %s144, 32
      %s146 = smul.addr %s145, 4
      %s147 = scalar_lea.vmem %s0, %s146
      %p148 = pneg %p35
      %p149 = pneg %p32
      %p150 = pneg %p56
      %p151 = pneg %p53
      %p152 = pneg %p77
      %p153 = pneg %p74
      %p154 = pneg %p103
      %p155 = pneg %p100
      %p156 = scmp.lt.s32.totalorder %s14, 1
      %s157 = scalar_select %p156, %s14, 1
      %s158 = smul.addr %s157, 54
      %s159 = smul.addr %s158, 4
      %s160 = scalar_lea.vmem %s3, %s159
      %p161 = scmp.lt.s32.totalorder %s14, 1
      %s162 = scalar_select %p161, %s14, 1
      %s163 = smul.addr %s162, 32
      %s164 = smul.addr %s163, 4
      %s165 = scalar_lea.vmem %s0, %s164
      %p166 = scmp.lt.s32.totalorder %s14, 1
      %s167 = scalar_select %p166, %s14, 1
      %s168 = smul.addr %s167, 54
      %s169 = smul.addr %s168, 4
      %s170 = scalar_lea.vmem %s3, %s169
      %v172 = vld [vmem:[%s165] sm:$0xf]
      %v173 = vld [vmem:[%s165 + $0x4] sm:$0xf]
      %v174 = vld [vmem:[%s165 + $0x8] sm:$0xf]
      %v175 = vld [vmem:[%s165 + $0xc] sm:$0xf]
      %v176 = vld [vmem:[%s165 + $0x10] sm:$0xf]
      %v177 = vld [vmem:[%s165 + $0x14] sm:$0xf]
      %v178 = vld [vmem:[%s165 + $0x18] sm:$0xf]
      %v179 = vld [vmem:[%s165 + $0x1c] sm:$0xf]
      %v180 = vld [vmem:[%s165 + $0x20] sm:$0xf]
      %v181 = vld [vmem:[%s165 + $0x24] sm:$0xf]
      %v182 = vld [vmem:[%s165 + $0x28] sm:$0xf]
      %v183 = vld [vmem:[%s165 + $0x2c] sm:$0xf]
      %v184 = vld [vmem:[%s165 + $0x30] sm:$0xf]
      %v185 = vld [vmem:[%s165 + $0x34] sm:$0xf]
      %v186 = vld [vmem:[%s165 + $0x38] sm:$0xf]
      %v187 = vld [vmem:[%s165 + $0x3c] sm:$0xf]
      %v188 = vld [vmem:[%s165 + $0x40] sm:$0xf]
      %v189 = vld [vmem:[%s165 + $0x44] sm:$0xf]
      %v190 = vld [vmem:[%s165 + $0x48] sm:$0xf]
      %v191 = vld [vmem:[%s165 + $0x4c] sm:$0xf]
      %v192 = vld [vmem:[%s165 + $0x50] sm:$0xf]
      %v193 = vld [vmem:[%s165 + $0x54] sm:$0xf]
      %v194 = vld [vmem:[%s165 + $0x58] sm:$0xf]
      %v195 = vld [vmem:[%s165 + $0x5c] sm:$0xf]
      %v196 = vld [vmem:[%s165 + $0x60] sm:$0xf]
      %v197 = vld [vmem:[%s165 + $0x64] sm:$0xf]
      %v198 = vld [vmem:[%s165 + $0x68] sm:$0xf]
      %v199 = vld [vmem:[%s165 + $0x6c] sm:$0xf]
      %v200 = vld [vmem:[%s165 + $0x70] sm:$0xf]
      %v201 = vld [vmem:[%s165 + $0x74] sm:$0xf]
      %v202 = vld [vmem:[%s165 + $0x78] sm:$0xf]
      %v203 = vld [vmem:[%s165 + $0x7c] sm:$0xf]
      %v204 = vunpack.c.l.bf16 %v172
      %v205 = vunpack.c.l.bf16 %v173
      %v206 = vunpack.c.l.bf16 %v174
      %v207 = vunpack.c.l.bf16 %v175
      %v208 = vunpack.c.l.bf16 %v176
      %v209 = vunpack.c.l.bf16 %v177
      %v210 = vunpack.c.l.bf16 %v178
      %v211 = vunpack.c.l.bf16 %v179
      %v212 = vunpack.c.l.bf16 %v180
      %v213 = vunpack.c.l.bf16 %v181
      %v214 = vunpack.c.l.bf16 %v182
      %v215 = vunpack.c.l.bf16 %v183
      %v216 = vunpack.c.l.bf16 %v184
      %v217 = vunpack.c.l.bf16 %v185
      %v218 = vunpack.c.l.bf16 %v186
      %v219 = vunpack.c.l.bf16 %v187
      %v220 = vunpack.c.l.bf16 %v188
      %v221 = vunpack.c.l.bf16 %v189
      %v222 = vunpack.c.l.bf16 %v190
      %v223 = vunpack.c.l.bf16 %v191
      %v224 = vunpack.c.l.bf16 %v192
      %v225 = vunpack.c.l.bf16 %v193
      %v226 = vunpack.c.l.bf16 %v194
      %v227 = vunpack.c.l.bf16 %v195
      %v228 = vunpack.c.l.bf16 %v196
      %v229 = vunpack.c.l.bf16 %v197
      %v230 = vunpack.c.l.bf16 %v198
      %v231 = vunpack.c.l.bf16 %v199
      %v232 = vunpack.c.l.bf16 %v200
      %v233 = vunpack.c.l.bf16 %v201
      %v234 = vunpack.c.l.bf16 %v202
      %v235 = vunpack.c.l.bf16 %v203
      %v236 = vld [vmem:[%s1] sm:$0x1]
      %v238 = vperm.slane %v236, 0
      %v240 = vmul.f32 %v204, %v238
      %v241 = vmul.f32 %v205, %v238
      %v242 = vmul.f32 %v206, %v238
      %v243 = vmul.f32 %v207, %v238
      %v244 = vmul.f32 %v208, %v238
      %v245 = vmul.f32 %v209, %v238
      %v246 = vmul.f32 %v210, %v238
      %v247 = vmul.f32 %v211, %v238
      %v248 = vmul.f32 %v212, %v238
      %v249 = vmul.f32 %v213, %v238
      %v250 = vmul.f32 %v214, %v238
      %v251 = vmul.f32 %v215, %v238
      %v252 = vmul.f32 %v216, %v238
      %v253 = vmul.f32 %v217, %v238
      %v254 = vmul.f32 %v218, %v238
      %v255 = vmul.f32 %v219, %v238
      %v256 = vmul.f32 %v220, %v238
      %v257 = vmul.f32 %v221, %v238
      %v258 = vmul.f32 %v222, %v238
      %v259 = vmul.f32 %v223, %v238
      %v260 = vmul.f32 %v224, %v238
      %v261 = vmul.f32 %v225, %v238
      %v262 = vmul.f32 %v226, %v238
      %v263 = vmul.f32 %v227, %v238
      %v264 = vmul.f32 %v228, %v238
      %v265 = vmul.f32 %v229, %v238
      %v266 = vmul.f32 %v230, %v238
      %v267 = vmul.f32 %v231, %v238
      %v268 = vmul.f32 %v232, %v238
      %v269 = vmul.f32 %v233, %v238
      %v270 = vmul.f32 %v234, %v238
      %v271 = vmul.f32 %v235, %v238
      %v272 = vld [vmem:[%s2] sm:$0x1]
      %v274 = vperm.slane %v272, 0
      %v276 = vadd.f32 %v240, %v274
      %v277 = vadd.f32 %v241, %v274
      %v278 = vadd.f32 %v242, %v274
      %v279 = vadd.f32 %v243, %v274
      %v280 = vadd.f32 %v244, %v274
      %v281 = vadd.f32 %v245, %v274
      %v282 = vadd.f32 %v246, %v274
      %v283 = vadd.f32 %v247, %v274
      %v284 = vadd.f32 %v248, %v274
      %v285 = vadd.f32 %v249, %v274
      %v286 = vadd.f32 %v250, %v274
      %v287 = vadd.f32 %v251, %v274
      %v288 = vadd.f32 %v252, %v274
      %v289 = vadd.f32 %v253, %v274
      %v290 = vadd.f32 %v254, %v274
      %v291 = vadd.f32 %v255, %v274
      %v292 = vadd.f32 %v256, %v274
      %v293 = vadd.f32 %v257, %v274
      %v294 = vadd.f32 %v258, %v274
      %v295 = vadd.f32 %v259, %v274
      %v296 = vadd.f32 %v260, %v274
      %v297 = vadd.f32 %v261, %v274
      %v298 = vadd.f32 %v262, %v274
      %v299 = vadd.f32 %v263, %v274
      %v300 = vadd.f32 %v264, %v274
      %v301 = vadd.f32 %v265, %v274
      %v302 = vadd.f32 %v266, %v274
      %v303 = vadd.f32 %v267, %v274
      %v304 = vadd.f32 %v268, %v274
      %v305 = vadd.f32 %v269, %v274
      %v306 = vadd.f32 %v270, %v274
      %v307 = vadd.f32 %v271, %v274
      %v308 = vmax.f32 %v276, 0.0
      %v309 = vmax.f32 %v277, 0.0
      %v310 = vmax.f32 %v278, 0.0
      %v311 = vmax.f32 %v279, 0.0
      %v312 = vmax.f32 %v280, 0.0
      %v313 = vmax.f32 %v281, 0.0
      %v314 = vmax.f32 %v282, 0.0
      %v315 = vmax.f32 %v283, 0.0
      %v316 = vmax.f32 %v284, 0.0
      %v317 = vmax.f32 %v285, 0.0
      %v318 = vmax.f32 %v286, 0.0
      %v319 = vmax.f32 %v287, 0.0
      %v320 = vmax.f32 %v288, 0.0
      %v321 = vmax.f32 %v289, 0.0
      %v322 = vmax.f32 %v290, 0.0
      %v323 = vmax.f32 %v291, 0.0
      %v324 = vmax.f32 %v292, 0.0
      %v325 = vmax.f32 %v293, 0.0
      %v326 = vmax.f32 %v294, 0.0
      %v327 = vmax.f32 %v295, 0.0
      %v328 = vmax.f32 %v296, 0.0
      %v329 = vmax.f32 %v297, 0.0
      %v330 = vmax.f32 %v298, 0.0
      %v331 = vmax.f32 %v299, 0.0
      %v332 = vmax.f32 %v300, 0.0
      %v333 = vmax.f32 %v301, 0.0
      %v334 = vmax.f32 %v302, 0.0
      %v335 = vmax.f32 %v303, 0.0
      %v336 = vmax.f32 %v304, 0.0
      %v337 = vmax.f32 %v305, 0.0
      %v338 = vmax.f32 %v306, 0.0
      %v339 = vmax.f32 %v307, 0.0
      %v340 = vpack.c.bf16 %v308, %v308
      %v341 = vpack.c.bf16 %v309, %v309
      %v342 = vpack.c.bf16 %v310, %v310
      %v343 = vpack.c.bf16 %v311, %v311
      %v344 = vpack.c.bf16 %v312, %v312
      %v345 = vpack.c.bf16 %v313, %v313
      %v346 = vpack.c.bf16 %v314, %v314
      %v347 = vpack.c.bf16 %v315, %v315
      %v348 = vpack.c.bf16 %v316, %v316
      %v349 = vpack.c.bf16 %v317, %v317
      %v350 = vpack.c.bf16 %v318, %v318
      %v351 = vpack.c.bf16 %v319, %v319
      %v352 = vpack.c.bf16 %v320, %v320
      %v353 = vpack.c.bf16 %v321, %v321
      %v354 = vpack.c.bf16 %v322, %v322
      %v355 = vpack.c.bf16 %v323, %v323
      %v356 = vpack.c.bf16 %v324, %v324
      %v357 = vpack.c.bf16 %v325, %v325
      %v358 = vpack.c.bf16 %v326, %v326
      %v359 = vpack.c.bf16 %v327, %v327
      %v360 = vpack.c.bf16 %v328, %v328
      %v361 = vpack.c.bf16 %v329, %v329
      %v362 = vpack.c.bf16 %v330, %v330
      %v363 = vpack.c.bf16 %v331, %v331
      %v364 = vpack.c.bf16 %v332, %v332
      %v365 = vpack.c.bf16 %v333, %v333
      %v366 = vpack.c.bf16 %v334, %v334
      %v367 = vpack.c.bf16 %v335, %v335
      %v368 = vpack.c.bf16 %v336, %v336
      %v369 = vpack.c.bf16 %v337, %v337
      %v370 = vpack.c.bf16 %v338, %v338
      %v371 = vpack.c.bf16 %v339, %v339
      %372 = vst [vmem:[%s170] sm:$0xf] 0
      %373 = vst [vmem:[%s170 + $0x4] sm:$0xf] 0
      %374 = vst [vmem:[%s170 + $0x8] sm:$0x1] 0
      %375 = vst [vmem:[%s170 + $0xc] sm:$0xf] 0
      %376 = vst [vmem:[%s170 + $0x10] sm:$0xf] 0
      %377 = vst [vmem:[%s170 + $0x14] sm:$0x1] 0
      %378 = vst [vmem:[%s170 + $0x18] sm:$0xf] 0
      %379 = vst [vmem:[%s170 + $0x1c] sm:$0xf] 0
      %380 = vst [vmem:[%s170 + $0x20] sm:$0x1] 0
      %381 = vst [vmem:[%s170 + $0x24] sm:$0xf] 0
      %382 = vst [vmem:[%s170 + $0x28] sm:$0xf] 0
      %383 = vst [vmem:[%s170 + $0x2c] sm:$0x1] 0
      %384 = vst [vmem:[%s170 + $0x30] sm:$0xf] 0
      %385 = vst [vmem:[%s170 + $0x34] sm:$0xf] 0
      %386 = vst [vmem:[%s170 + $0x38] sm:$0x1] 0
      %387 = vst [vmem:[%s170 + $0x3c] sm:$0xf] 0
      %388 = vst [vmem:[%s170 + $0x40] sm:$0xf] 0
      %389 = vst [vmem:[%s170 + $0x44] sm:$0x1] 0
      %390 = vst [vmem:[%s170 + $0x48] sm:$0xf] 0
      %391 = vst [vmem:[%s170 + $0x4c] sm:$0xf] 0
      %392 = vst [vmem:[%s170 + $0x50] sm:$0x1] 0
      %393 = vst [vmem:[%s170 + $0x54] sm:$0xf] 0
      %394 = vst [vmem:[%s170 + $0x58] sm:$0xf] 0
      %395 = vst [vmem:[%s170 + $0x5c] sm:$0x1] 0
      %396 = vst [vmem:[%s170 + $0x60] sm:$0xf] 0
      %397 = vst [vmem:[%s170 + $0x64] sm:$0xf] 0
      %398 = vst [vmem:[%s170 + $0x68] sm:$0x1] 0
      %399 = vst [vmem:[%s170 + $0x6c] sm:$0xf] 0
      %400 = vst [vmem:[%s170 + $0x70] sm:$0xf] 0
      %401 = vst [vmem:[%s170 + $0x74] sm:$0x1] 0
      %402 = vst [vmem:[%s170 + $0x78] sm:$0xf] 0
      %403 = vst [vmem:[%s170 + $0x7c] sm:$0xf] 0
      %404 = vst [vmem:[%s170 + $0x80] sm:$0x1] 0
      %405 = vst [vmem:[%s170 + $0x84] sm:$0xf] 0
      %406 = vst [vmem:[%s170 + $0x88] sm:$0xf] 0
      %407 = vst [vmem:[%s170 + $0x8c] sm:$0x1] 0
      %408 = vst [vmem:[%s170 + $0x90] sm:$0xf] 0
      %409 = vst [vmem:[%s170 + $0x94] sm:$0xf] 0
      %410 = vst [vmem:[%s170 + $0x98] sm:$0x1] 0
      %411 = vst [vmem:[%s170 + $0x9c] sm:$0xf] 0
      %412 = vst [vmem:[%s170 + $0xa0] sm:$0xf] 0
      %413 = vst [vmem:[%s170 + $0xa4] sm:$0x1] 0
      %414 = vst [vmem:[%s170 + $0xa8] sm:$0xf] 0
      %415 = vst [vmem:[%s170 + $0xac] sm:$0xf] 0
      %416 = vst [vmem:[%s170 + $0xb0] sm:$0x1] 0
      %417 = vst [vmem:[%s170 + $0xb4] sm:$0xf] 0
      %418 = vst [vmem:[%s170 + $0xb8] sm:$0xf] 0
      %419 = vst [vmem:[%s170 + $0xbc] sm:$0x1] 0
      %420 = vst [vmem:[%s170 + $0xc0] sm:$0xf] 0
      %421 = vst [vmem:[%s170 + $0xc4] sm:$0xf] 0
      %422 = vst [vmem:[%s170 + $0xc8] sm:$0x1] 0
      %423 = vst [vmem:[%s170 + $0xcc] sm:$0xf] 0
      %424 = vst [vmem:[%s170 + $0xd0] sm:$0xf] 0
      %425 = vst [vmem:[%s170 + $0xd4] sm:$0x1] 0
      %vm426 = vsmask.f32 256
      %vm427 = vsmask.f32 4368
      %vm428 = vmor %vm426, %vm427
      %v430 = vshrl.u32 %v340, 16
      %v432 = vrot.slane %v430, 7
      %v433 = vshll.u32 %v340, 16
      %v435 = vor.u32 %v432, %v433
      %v436 = vrot.slane %v432, 4
      %v438 = vshrl.u32 %v341, 16
      %v440 = vrot.slane %v438, 7
      %v441 = vshll.u32 %v341, 16
      %v443 = vor.u32 %v440, %v441
      %v444 = vsel %vm428, %v436, %v443
      %v445 = vrot.slane %v440, 4
      %v447 = vshrl.u32 %v342, 16
      %v449 = vrot.slane %v447, 7
      %v450 = vshll.u32 %v342, 16
      %v452 = vor.u32 %v449, %v450
      %v453 = vrot.slane %v449, 4
      %v455 = vshrl.u32 %v343, 16
      %v457 = vrot.slane %v455, 7
      %v458 = vshll.u32 %v343, 16
      %v460 = vor.u32 %v457, %v458
      %v461 = vsel %vm428, %v453, %v460
      %v462 = vrot.slane %v457, 4
      %v464 = vshrl.u32 %v344, 16
      %v466 = vrot.slane %v464, 7
      %v467 = vshll.u32 %v344, 16
      %v469 = vor.u32 %v466, %v467
      %v470 = vrot.slane %v466, 4
      %v472 = vshrl.u32 %v345, 16
      %v474 = vrot.slane %v472, 7
      %v475 = vshll.u32 %v345, 16
      %v477 = vor.u32 %v474, %v475
      %v478 = vsel %vm428, %v470, %v477
      %v479 = vrot.slane %v474, 4
      %v481 = vshrl.u32 %v346, 16
      %v483 = vrot.slane %v481, 7
      %v484 = vshll.u32 %v346, 16
      %v486 = vor.u32 %v483, %v484
      %v487 = vrot.slane %v483, 4
      %v489 = vshrl.u32 %v347, 16
      %v491 = vrot.slane %v489, 7
      %v492 = vshll.u32 %v347, 16
      %v494 = vor.u32 %v491, %v492
      %v495 = vsel %vm428, %v487, %v494
      %v496 = vrot.slane %v491, 4
      %v498 = vshrl.u32 %v348, 16
      %v500 = vrot.slane %v498, 7
      %v501 = vshll.u32 %v348, 16
      %v503 = vor.u32 %v500, %v501
      %v504 = vrot.slane %v500, 4
      %v506 = vshrl.u32 %v349, 16
      %v508 = vrot.slane %v506, 7
      %v509 = vshll.u32 %v349, 16
      %v511 = vor.u32 %v508, %v509
      %v512 = vsel %vm428, %v504, %v511
      %v513 = vrot.slane %v508, 4
      %v515 = vshrl.u32 %v350, 16
      %v517 = vrot.slane %v515, 7
      %v518 = vshll.u32 %v350, 16
      %v520 = vor.u32 %v517, %v518
      %v521 = vrot.slane %v517, 4
      %v523 = vshrl.u32 %v351, 16
      %v525 = vrot.slane %v523, 7
      %v526 = vshll.u32 %v351, 16
      %v528 = vor.u32 %v525, %v526
      %v529 = vsel %vm428, %v521, %v528
      %v530 = vrot.slane %v525, 4
      %v532 = vshrl.u32 %v352, 16
      %v534 = vrot.slane %v532, 7
      %v535 = vshll.u32 %v352, 16
      %v537 = vor.u32 %v534, %v535
      %v538 = vrot.slane %v534, 4
      %v540 = vshrl.u32 %v353, 16
      %v542 = vrot.slane %v540, 7
      %v543 = vshll.u32 %v353, 16
      %v545 = vor.u32 %v542, %v543
      %v546 = vsel %vm428, %v538, %v545
      %v547 = vrot.slane %v542, 4
      %v549 = vshrl.u32 %v354, 16
      %v551 = vrot.slane %v549, 7
      %v552 = vshll.u32 %v354, 16
      %v554 = vor.u32 %v551, %v552
      %v555 = vrot.slane %v551, 4
      %v557 = vshrl.u32 %v355, 16
      %v559 = vrot.slane %v557, 7
      %v560 = vshll.u32 %v355, 16
      %v562 = vor.u32 %v559, %v560
      %v563 = vsel %vm428, %v555, %v562
      %v564 = vrot.slane %v559, 4
      %v566 = vshrl.u32 %v356, 16
      %v568 = vrot.slane %v566, 7
      %v569 = vshll.u32 %v356, 16
      %v571 = vor.u32 %v568, %v569
      %v572 = vrot.slane %v568, 4
      %v574 = vshrl.u32 %v357, 16
      %v576 = vrot.slane %v574, 7
      %v577 = vshll.u32 %v357, 16
      %v579 = vor.u32 %v576, %v577
      %v580 = vsel %vm428, %v572, %v579
      %v581 = vrot.slane %v576, 4
      %v583 = vshrl.u32 %v358, 16
      %v585 = vrot.slane %v583, 7
      %v586 = vshll.u32 %v358, 16
      %v588 = vor.u32 %v585, %v586
      %v589 = vrot.slane %v585, 4
      %v591 = vshrl.u32 %v359, 16
      %v593 = vrot.slane %v591, 7
      %v594 = vshll.u32 %v359, 16
      %v596 = vor.u32 %v593, %v594
      %v597 = vsel %vm428, %v589, %v596
      %v598 = vrot.slane %v593, 4
      %v600 = vshrl.u32 %v360, 16
      %v602 = vrot.slane %v600, 7
      %v603 = vshll.u32 %v360, 16
      %v605 = vor.u32 %v602, %v603
      %v606 = vrot.slane %v602, 4
      %v608 = vshrl.u32 %v361, 16
      %v610 = vrot.slane %v608, 7
      %v611 = vshll.u32 %v361, 16
      %v613 = vor.u32 %v610, %v611
      %v614 = vsel %vm428, %v606, %v613
      %v615 = vrot.slane %v610, 4
      %v617 = vshrl.u32 %v362, 16
      %v619 = vrot.slane %v617, 7
      %v620 = vshll.u32 %v362, 16
      %v622 = vor.u32 %v619, %v620
      %v623 = vrot.slane %v619, 4
      %v625 = vshrl.u32 %v363, 16
      %v627 = vrot.slane %v625, 7
      %v628 = vshll.u32 %v363, 16
      %v630 = vor.u32 %v627, %v628
      %v631 = vsel %vm428, %v623, %v630
      %v632 = vrot.slane %v627, 4
      %v634 = vshrl.u32 %v364, 16
      %v636 = vrot.slane %v634, 7
      %v637 = vshll.u32 %v364, 16
      %v639 = vor.u32 %v636, %v637
      %v640 = vrot.slane %v636, 4
      %v642 = vshrl.u32 %v365, 16
      %v644 = vrot.slane %v642, 7
      %v645 = vshll.u32 %v365, 16
      %v647 = vor.u32 %v644, %v645
      %v648 = vsel %vm428, %v640, %v647
      %v649 = vrot.slane %v644, 4
      %v651 = vshrl.u32 %v366, 16
      %v653 = vrot.slane %v651, 7
      %v654 = vshll.u32 %v366, 16
      %v656 = vor.u32 %v653, %v654
      %v657 = vrot.slane %v653, 4
      %v659 = vshrl.u32 %v367, 16
      %v661 = vrot.slane %v659, 7
      %v662 = vshll.u32 %v367, 16
      %v664 = vor.u32 %v661, %v662
      %v665 = vsel %vm428, %v657, %v664
      %v666 = vrot.slane %v661, 4
      %v668 = vshrl.u32 %v368, 16
      %v670 = vrot.slane %v668, 7
      %v671 = vshll.u32 %v368, 16
      %v673 = vor.u32 %v670, %v671
      %v674 = vrot.slane %v670, 4
      %v676 = vshrl.u32 %v369, 16
      %v678 = vrot.slane %v676, 7
      %v679 = vshll.u32 %v369, 16
      %v681 = vor.u32 %v678, %v679
      %v682 = vsel %vm428, %v674, %v681
      %v683 = vrot.slane %v678, 4
      %v685 = vshrl.u32 %v370, 16
      %v687 = vrot.slane %v685, 7
      %v688 = vshll.u32 %v370, 16
      %v690 = vor.u32 %v687, %v688
      %v691 = vrot.slane %v687, 4
      %v693 = vshrl.u32 %v371, 16
      %v695 = vrot.slane %v693, 7
      %v696 = vshll.u32 %v371, 16
      %v698 = vor.u32 %v695, %v696
      %v699 = vsel %vm428, %v691, %v698
      %v700 = vrot.slane %v695, 4
      %s749 = scalar_lea.vmem %s170, 12
      %vm750 = vcmask 1043456
      %vm751 = vsmask.f32 7938
      %vm752 = vmand %vm750, %vm751
      %v753 = vld [vmem:[%s749] sm:$0xf]
      %v754 = vsel %vm752, %v435, %v753
      %755 = vst [vmem:[%s749] sm:$0xf] %v754
      %756 = vst [vmem:[%s749 + $0x4] sm:$0xf] %v444
      %vm757 = vcmask 1040384
      %vm758 = vmand %vm757, %vm426
      %v759 = vld [vmem:[%s749 + $0x8] sm:$0x1]
      %v760 = vsel %vm758, %v445, %v759
      %761 = vst [vmem:[%s749 + $0x8] sm:$0x1] %v760
      %v762 = vld [vmem:[%s749 + $0xc] sm:$0xf]
      %v763 = vsel %vm752, %v452, %v762
      %764 = vst [vmem:[%s749 + $0xc] sm:$0xf] %v763
      %765 = vst [vmem:[%s749 + $0x10] sm:$0xf] %v461
      %v766 = vld [vmem:[%s749 + $0x14] sm:$0x1]
      %v767 = vsel %vm758, %v462, %v766
      %768 = vst [vmem:[%s749 + $0x14] sm:$0x1] %v767
      %v769 = vld [vmem:[%s749 + $0x18] sm:$0xf]
      %v770 = vsel %vm752, %v469, %v769
      %771 = vst [vmem:[%s749 + $0x18] sm:$0xf] %v770
      %772 = vst [vmem:[%s749 + $0x1c] sm:$0xf] %v478
      %v773 = vld [vmem:[%s749 + $0x20] sm:$0x1]
      %v774 = vsel %vm758, %v479, %v773
      %775 = vst [vmem:[%s749 + $0x20] sm:$0x1] %v774
      %v776 = vld [vmem:[%s749 + $0x24] sm:$0xf]
      %v777 = vsel %vm752, %v486, %v776
      %778 = vst [vmem:[%s749 + $0x24] sm:$0xf] %v777
      %779 = vst [vmem:[%s749 + $0x28] sm:$0xf] %v495
      %v780 = vld [vmem:[%s749 + $0x2c] sm:$0x1]
      %v781 = vsel %vm758, %v496, %v780
      %782 = vst [vmem:[%s749 + $0x2c] sm:$0x1] %v781
      %v783 = vld [vmem:[%s749 + $0x30] sm:$0xf]
      %v784 = vsel %vm752, %v503, %v783
      %785 = vst [vmem:[%s749 + $0x30] sm:$0xf] %v784
      %786 = vst [vmem:[%s749 + $0x34] sm:$0xf] %v512
      %v787 = vld [vmem:[%s749 + $0x38] sm:$0x1]
      %v788 = vsel %vm758, %v513, %v787
      %789 = vst [vmem:[%s749 + $0x38] sm:$0x1] %v788
      %v790 = vld [vmem:[%s749 + $0x3c] sm:$0xf]
      %v791 = vsel %vm752, %v520, %v790
      %792 = vst [vmem:[%s749 + $0x3c] sm:$0xf] %v791
      %793 = vst [vmem:[%s749 + $0x40] sm:$0xf] %v529
      %v794 = vld [vmem:[%s749 + $0x44] sm:$0x1]
      %v795 = vsel %vm758, %v530, %v794
      %796 = vst [vmem:[%s749 + $0x44] sm:$0x1] %v795
      %v797 = vld [vmem:[%s749 + $0x48] sm:$0xf]
      %v798 = vsel %vm752, %v537, %v797
      %799 = vst [vmem:[%s749 + $0x48] sm:$0xf] %v798
      %800 = vst [vmem:[%s749 + $0x4c] sm:$0xf] %v546
      %v801 = vld [vmem:[%s749 + $0x50] sm:$0x1]
      %v802 = vsel %vm758, %v547, %v801
      %803 = vst [vmem:[%s749 + $0x50] sm:$0x1] %v802
      %v804 = vld [vmem:[%s749 + $0x54] sm:$0xf]
      %v805 = vsel %vm752, %v554, %v804
      %806 = vst [vmem:[%s749 + $0x54] sm:$0xf] %v805
      %807 = vst [vmem:[%s749 + $0x58] sm:$0xf] %v563
      %v808 = vld [vmem:[%s749 + $0x5c] sm:$0x1]
      %v809 = vsel %vm758, %v564, %v808
      %810 = vst [vmem:[%s749 + $0x5c] sm:$0x1] %v809
      %v811 = vld [vmem:[%s749 + $0x60] sm:$0xf]
      %v812 = vsel %vm752, %v571, %v811
      %813 = vst [vmem:[%s749 + $0x60] sm:$0xf] %v812
      %814 = vst [vmem:[%s749 + $0x64] sm:$0xf] %v580
      %v815 = vld [vmem:[%s749 + $0x68] sm:$0x1]
      %v816 = vsel %vm758, %v581, %v815
      %817 = vst [vmem:[%s749 + $0x68] sm:$0x1] %v816
      %v818 = vld [vmem:[%s749 + $0x6c] sm:$0xf]
      %v819 = vsel %vm752, %v588, %v818
      %820 = vst [vmem:[%s749 + $0x6c] sm:$0xf] %v819
      %821 = vst [vmem:[%s749 + $0x70] sm:$0xf] %v597
      %v822 = vld [vmem:[%s749 + $0x74] sm:$0x1]
      %v823 = vsel %vm758, %v598, %v822
      %824 = vst [vmem:[%s749 + $0x74] sm:$0x1] %v823
      %v825 = vld [vmem:[%s749 + $0x78] sm:$0xf]
      %v826 = vsel %vm752, %v605, %v825
      %827 = vst [vmem:[%s749 + $0x78] sm:$0xf] %v826
      %828 = vst [vmem:[%s749 + $0x7c] sm:$0xf] %v614
      %v829 = vld [vmem:[%s749 + $0x80] sm:$0x1]
      %v830 = vsel %vm758, %v615, %v829
      %831 = vst [vmem:[%s749 + $0x80] sm:$0x1] %v830
      %v832 = vld [vmem:[%s749 + $0x84] sm:$0xf]
      %v833 = vsel %vm752, %v622, %v832
      %834 = vst [vmem:[%s749 + $0x84] sm:$0xf] %v833
      %835 = vst [vmem:[%s749 + $0x88] sm:$0xf] %v631
      %v836 = vld [vmem:[%s749 + $0x8c] sm:$0x1]
      %v837 = vsel %vm758, %v632, %v836
      %838 = vst [vmem:[%s749 + $0x8c] sm:$0x1] %v837
      %v839 = vld [vmem:[%s749 + $0x90] sm:$0xf]
      %v840 = vsel %vm752, %v639, %v839
      %841 = vst [vmem:[%s749 + $0x90] sm:$0xf] %v840
      %842 = vst [vmem:[%s749 + $0x94] sm:$0xf] %v648
      %v843 = vld [vmem:[%s749 + $0x98] sm:$0x1]
      %v844 = vsel %vm758, %v649, %v843
      %845 = vst [vmem:[%s749 + $0x98] sm:$0x1] %v844
      %v846 = vld [vmem:[%s749 + $0x9c] sm:$0xf]
      %v847 = vsel %vm752, %v656, %v846
      %848 = vst [vmem:[%s749 + $0x9c] sm:$0xf] %v847
      %849 = vst [vmem:[%s749 + $0xa0] sm:$0xf] %v665
      %v850 = vld [vmem:[%s749 + $0xa4] sm:$0x1]
      %v851 = vsel %vm758, %v666, %v850
      %852 = vst [vmem:[%s749 + $0xa4] sm:$0x1] %v851
      %v853 = vld [vmem:[%s749 + $0xa8] sm:$0xf]
      %v854 = vsel %vm752, %v673, %v853
      %855 = vst [vmem:[%s749 + $0xa8] sm:$0xf] %v854
      %856 = vst [vmem:[%s749 + $0xac] sm:$0xf] %v682
      %v857 = vld [vmem:[%s749 + $0xb0] sm:$0x1]
      %v858 = vsel %vm758, %v683, %v857
      %859 = vst [vmem:[%s749 + $0xb0] sm:$0x1] %v858
      %v860 = vld [vmem:[%s749 + $0xb4] sm:$0xf]
      %v861 = vsel %vm752, %v690, %v860
      %862 = vst [vmem:[%s749 + $0xb4] sm:$0xf] %v861
      %863 = vst [vmem:[%s749 + $0xb8] sm:$0xf] %v699
      %v864 = vld [vmem:[%s749 + $0xbc] sm:$0x1]
      %v865 = vsel %vm758, %v700, %v864
      %866 = vst [vmem:[%s749 + $0xbc] sm:$0x1] %v865
      %p867 = scmp.lt.s32.totalorder %s14, 1
      %s868 = scalar_select %p867, %s14, 1
      %s869 = smul.addr %s868, 54
      %s870 = smul.addr %s869, 4
      %s871 = scalar_lea.vmem %s3, %s870
      // Predicated region
      $region33: #{upconv_fwd.5} parent=31 // pred_check
        %p872 = pneg %p100
      $region34: #{upconv_fwd.5} parent=31 // pred_check_branch
        %874 = sbr.rel (%p872) target = $region36
      $region35: #{upconv_fwd.5} parent=31 // pred_region
        _
      $region36: #{upconv_fwd.5} parent=31 // pred_fallthru
        _
    $region32: #{upconv_fwd.5} parent=5 // pred_fallthru
      _
    %p875 = scmp.le.s32.totalorder 2, %s9
    // Predicated region
    $region37: #{upconv_fwd.5} parent=5 // pred_check
      %p876 = pneg %p875
    $region38: #{upconv_fwd.5} parent=5 // pred_check_branch
      %878 = sbr.rel (%p876) target = $region40
    $region39: #{upconv_fwd.5} parent=5 // pred_region
      %s879 = ssub.s32 %s9, 2
      // Predicated region
      $region41: #{upconv_fwd.5} parent=39 // pred_check
        %p880 = pneg %p106
      $region42: #{upconv_fwd.5} parent=39 // pred_check_branch
        %882 = sbr.rel (%p880) target = $region44
      $region43: #{upconv_fwd.5} parent=39 // pred_region
        %p883 = scmp.lt.s32.totalorder %s15, 1
        %s884 = scalar_select %p883, %s15, 1
        %s885 = smul.addr %s884, 54
        %s886 = smul.addr %s885, 4
        %s887 = scalar_lea.vmem %s3, %s886
      $region44: #{upconv_fwd.5} parent=39 // pred_fallthru
        _
    $region40: #{upconv_fwd.5} parent=5 // pred_fallthru
      _
  $region6: #{upconv_fwd.5} parent=0 // loop_footer
    %s13 = sadd.s32 1, %s9
  $region7: #{upconv_fwd.5} parent=0 // loop_footer_branch
    %8 = sbr.rel target = $region3
  $region8: #{upconv_fwd.5} parent=0 // loop_exit
    _

// kernel: upconv_fwd.6
$region0: #{upconv_fwd.6}
  #allocation0 [shape = 'u32[]', space=smem, size = 0x4, offset = 0x4, fixed_abs, tag = 'smem constant byte address 0x4 - core index']
  #allocation1 [shape = 'u32[72,128]{1,0:T(1,128)}', space=vmem, size = 0x9000, scoped, tag = 'internal scratch']
  %s0 = inlined_call_operand.vmem [shape: bf16[2,18,18,128], index: 0, kind: input, shape index: {}, may-alias: {0,1,2}]
  %s1 = inlined_call_operand.vmem [shape: bf16[2,18,18,128], index: 1, kind: input, shape index: {}, may-alias: {0,1,2}]
  %s2 = inlined_call_operand.vmem [shape: bf16[2,18,18,128], index: 2, kind: input, shape index: {}, may-alias: {0,1,2}]
  %s3 = inlined_call_operand.vmem [shape: bf16[1152,128], index: 3, kind: input, shape index: {}]
  %s4 = inlined_call_operand.vmem [shape: f32[1,128], index: 4, kind: input, shape index: {}]
  %s5 = inlined_call_operand.vmem [shape: bf16[2,16,16,128], index: 5, kind: output, shape index: {0}]
  %s6 = inlined_call_operand.vmem [shape: f32[2,1,128], index: 6, kind: output, shape index: {1}]
  %s7 = inlined_call_operand.vmem [shape: f32[2,1,128], index: 7, kind: output, shape index: {2}]
  %8 = xla_tuple %s5, %s6, %s7
  %s9 = sld [smem:[#allocation0]]
  $region73: #{upconv_fwd.6} parent=0
    _
  %s11 = ssub.s32 1, %s9
  %s12 = scalar_select 0, %s11, %s9
  loop: start=0, step=1, limit=6
  $region2: #{upconv_fwd.6} parent=0 // loop_pre_header
    _
  $region3: #{upconv_fwd.6} parent=0 // loop_header
    %s14 = sphi 0, %s18
    %p15 = scmp.ge.s32.totalorder %s14, 6
    %s21 = sphi 0, %s33
    %s22 = sphi 0, %s29
    %s23 = sphi 0, %s21
    %s24 = sphi 0, %s22
    %s25 = sphi 0, %s23
    %s26 = sphi 0, %s24
    %s38 = sphi 0, %s40
    %s41 = sphi 0, %s38
    %s42 = sphi 0, %s41
    %s58 = sphi 0, %s42
    %s70 = sphi 0, %s72
    %s73 = sphi 0, %s70
    %s74 = sphi 0, %s73
    %s90 = sphi 0, %s74
    %s102 = sphi 0, %s104
    %s105 = sphi 0, %s102
    %s106 = sphi 0, %s105
    %s122 = sphi 0, %s106
    %s126 = sphi 0, %s126
    %s128 = sphi 0, %s126
    %s129 = sphi 0, %s128
    %s143 = sphi 0, %s129
    %s147 = sphi 0, %s147
    %s149 = sphi 0, %s147
    %s150 = sphi 0, %s149
    %s164 = sphi 0, %s150
    %s172 = sphi 0, %s174
    %s175 = sphi 0, %s172
    %s176 = sphi 0, %s175
    %s192 = sphi 0, %s176
    %s198 = sphi 0, %s200
    %s201 = sphi 0, %s198
    %s202 = sphi 0, %s201
    %s218 = sphi 0, %s202
    %s224 = sphi 0, %s226
    %s227 = sphi 0, %s224
    %s228 = sphi 0, %s227
    %s244 = sphi 0, %s228
  $region4: #{upconv_fwd.6} parent=0 // loop_header_branch
    %17 = sbr.rel (%p15) target = $region8
  $region5: #{upconv_fwd.6} parent=0 // loop_body
    %s19 = ssub.s32 %s14, 1
    %s20 = ssub.s32 %s14, 2
    %s27 = sadd.s32 1, %s22
    %p28 = scmp.ge.s32.totalorder %s27, 2
    %s29 = scalar_select %p28, 0, %s27
    %s30 = sadd.s32 1, %s21
    %s31 = scalar_select %p28, %s30, %s21
    %p32 = scmp.ge.s32.totalorder %s31, 2
    %s33 = scalar_select %p32, 0, %s31
    %s34 = ssub.s32 %s21, %s33
    %s35 = ssub.s32 %s22, %s29
    %s36 = sor.u32 %s34, %s35
    %p37 = scmp.eq.s32.totalorder %s36, 0
    %s39 = sadd.s32 %s38, 1
    %s40 = scalar_select %p37, %s38, %s39
    %p43 = pneg %p37
    %p44 = scmp.eq.s32.totalorder %s14, 3
    %p45 = por %p43, %p44
    %p46 = scmp.ne.s32.totalorder %s38, %s41
    %p47 = scmp.eq.s32.totalorder %s14, 0
    %p48 = por %p46, %p47
    %p49 = scmp.ne.s32.totalorder %s38, %s41
    %p50 = scmp.eq.s32.totalorder %s19, 3
    %p51 = por %p49, %p50
    %p52 = scmp.ne.s32.totalorder %s41, %s42
    %p53 = scmp.eq.s32.totalorder %s19, 0
    %p54 = por %p52, %p53
    %p55 = scmp.ne.s32.totalorder %s41, %s42
    %p56 = scmp.eq.s32.totalorder %s20, 3
    %p57 = por %p55, %p56
    %p59 = scmp.ne.s32.totalorder %s42, %s58
    %p60 = scmp.eq.s32.totalorder %s20, 0
    %p61 = por %p59, %p60
    %s62 = smul.u32 %s22, 8
    %s63 = sadd.s32 %s62, 8
    %s64 = smul.u32 %s29, 8
    %s65 = sadd.s32 %s64, 8
    %s66 = ssub.s32 %s21, %s33
    %s67 = ssub.s32 %s63, %s65
    %s68 = sor.u32 %s66, %s67
    %p69 = scmp.eq.s32.totalorder %s68, 0
    %s71 = sadd.s32 %s70, 1
    %s72 = scalar_select %p69, %s70, %s71
    %p75 = pneg %p69
    %p76 = scmp.eq.s32.totalorder %s14, 3
    %p77 = por %p75, %p76
    %p78 = scmp.ne.s32.totalorder %s70, %s73
    %p79 = scmp.eq.s32.totalorder %s14, 0
    %p80 = por %p78, %p79
    %p81 = scmp.ne.s32.totalorder %s70, %s73
    %p82 = scmp.eq.s32.totalorder %s19, 3
    %p83 = por %p81, %p82
    %p84 = scmp.ne.s32.totalorder %s73, %s74
    %p85 = scmp.eq.s32.totalorder %s19, 0
    %p86 = por %p84, %p85
    %p87 = scmp.ne.s32.totalorder %s73, %s74
    %p88 = scmp.eq.s32.totalorder %s20, 3
    %p89 = por %p87, %p88
    %p91 = scmp.ne.s32.totalorder %s74, %s90
    %p92 = scmp.eq.s32.totalorder %s20, 0
    %p93 = por %p91, %p92
    %s94 = smul.u32 %s22, 8
    %s95 = sadd.s32 %s94, 9
    %s96 = smul.u32 %s29, 8
    %s97 = sadd.s32 %s96, 9
    %s98 = ssub.s32 %s21, %s33
    %s99 = ssub.s32 %s95, %s97
    %s100 = sor.u32 %s98, %s99
    %p101 = scmp.eq.s32.totalorder %s100, 0
    %s103 = sadd.s32 %s102, 1
    %s104 = scalar_select %p101, %s102, %s103
    %p107 = pneg %p101
    %p108 = scmp.eq.s32.totalorder %s14, 3
    %p109 = por %p107, %p108
    %p110 = scmp.ne.s32.totalorder %s102, %s105
    %p111 = scmp.eq.s32.totalorder %s14, 0
    %p112 = por %p110, %p111
    %p113 = scmp.ne.s32.totalorder %s102, %s105
    %p114 = scmp.eq.s32.totalorder %s19, 3
    %p115 = por %p113, %p114
    %p116 = scmp.ne.s32.totalorder %s105, %s106
    %p117 = scmp.eq.s32.totalorder %s19, 0
    %p118 = por %p116, %p117
    %p119 = scmp.ne.s32.totalorder %s105, %s106
    %p120 = scmp.eq.s32.totalorder %s20, 3
    %p121 = por %p119, %p120
    %p123 = scmp.ne.s32.totalorder %s106, %s122
    %p124 = scmp.eq.s32.totalorder %s20, 0
    %p125 = por %p123, %p124
    %s127 = sadd.s32 %s126, 1
    %p130 = scmp.eq.s32.totalorder %s14, 3
    %p131 = scmp.ne.s32.totalorder %s126, %s128
    %p132 = scmp.eq.s32.totalorder %s14, 0
    %p133 = por %p131, %p132
    %p134 = scmp.ne.s32.totalorder %s126, %s128
    %p135 = scmp.eq.s32.totalorder %s19, 3
    %p136 = por %p134, %p135
    %p137 = scmp.ne.s32.totalorder %s128, %s129
    %p138 = scmp.eq.s32.totalorder %s19, 0
    %p139 = por %p137, %p138
    %p140 = scmp.ne.s32.totalorder %s128, %s129
    %p141 = scmp.eq.s32.totalorder %s20, 3
    %p142 = por %p140, %p141
    %p144 = scmp.ne.s32.totalorder %s129, %s143
    %p145 = scmp.eq.s32.totalorder %s20, 0
    %p146 = por %p144, %p145
    %s148 = sadd.s32 %s147, 1
    %p151 = scmp.eq.s32.totalorder %s14, 3
    %p152 = scmp.ne.s32.totalorder %s147, %s149
    %p153 = scmp.eq.s32.totalorder %s14, 0
    %p154 = por %p152, %p153
    %p155 = scmp.ne.s32.totalorder %s147, %s149
    %p156 = scmp.eq.s32.totalorder %s19, 3
    %p157 = por %p155, %p156
    %p158 = scmp.ne.s32.totalorder %s149, %s150
    %p159 = scmp.eq.s32.totalorder %s19, 0
    %p160 = por %p158, %p159
    %p161 = scmp.ne.s32.totalorder %s149, %s150
    %p162 = scmp.eq.s32.totalorder %s20, 3
    %p163 = por %p161, %p162
    %p165 = scmp.ne.s32.totalorder %s150, %s164
    %p166 = scmp.eq.s32.totalorder %s20, 0
    %p167 = por %p165, %p166
    %s168 = ssub.s32 %s21, %s33
    %s169 = ssub.s32 %s22, %s29
    %s170 = sor.u32 %s168, %s169
    %p171 = scmp.eq.s32.totalorder %s170, 0
    %s173 = sadd.s32 %s172, 1
    %s174 = scalar_select %p171, %s172, %s173
    %p177 = pneg %p171
    %p178 = scmp.eq.s32.totalorder %s14, 3
    %p179 = por %p177, %p178
    %p180 = scmp.ne.s32.totalorder %s172, %s175
    %p181 = scmp.eq.s32.totalorder %s14, 0
    %p182 = por %p180, %p181
    %p183 = scmp.ne.s32.totalorder %s172, %s175
    %p184 = scmp.eq.s32.totalorder %s19, 3
    %p185 = por %p183, %p184
    %p186 = scmp.ne.s32.totalorder %s175, %s176
    %p187 = scmp.eq.s32.totalorder %s19, 0
    %p188 = por %p186, %p187
    %p189 = scmp.ne.s32.totalorder %s175, %s176
    %p190 = scmp.eq.s32.totalorder %s20, 3
    %p191 = por %p189, %p190
    %p193 = scmp.ne.s32.totalorder %s176, %s192
    %p194 = scmp.eq.s32.totalorder %s20, 0
    %p195 = por %p193, %p194
    %s196 = ssub.s32 %s21, %s33
    %p197 = scmp.eq.s32.totalorder %s196, 0
    %s199 = sadd.s32 %s198, 1
    %s200 = scalar_select %p197, %s198, %s199
    %p203 = pneg %p197
    %p204 = scmp.eq.s32.totalorder %s14, 3
    %p205 = por %p203, %p204
    %p206 = scmp.ne.s32.totalorder %s198, %s201
    %p207 = scmp.eq.s32.totalorder %s14, 0
    %p208 = por %p206, %p207
    %p209 = scmp.ne.s32.totalorder %s198, %s201
    %p210 = scmp.eq.s32.totalorder %s19, 3
    %p211 = por %p209, %p210
    %p212 = scmp.ne.s32.totalorder %s201, %s202
    %p213 = scmp.eq.s32.totalorder %s19, 0
    %p214 = por %p212, %p213
    %p215 = scmp.ne.s32.totalorder %s201, %s202
    %p216 = scmp.eq.s32.totalorder %s20, 3
    %p217 = por %p215, %p216
    %p219 = scmp.ne.s32.totalorder %s202, %s218
    %p220 = scmp.eq.s32.totalorder %s20, 0
    %p221 = por %p219, %p220
    %s222 = ssub.s32 %s21, %s33
    %p223 = scmp.eq.s32.totalorder %s222, 0
    %s225 = sadd.s32 %s224, 1
    %s226 = scalar_select %p223, %s224, %s225
    %p229 = pneg %p223
    %p230 = scmp.eq.s32.totalorder %s14, 3
    %p231 = por %p229, %p230
    %p232 = scmp.ne.s32.totalorder %s224, %s227
    %p233 = scmp.eq.s32.totalorder %s14, 0
    %p234 = por %p232, %p233
    %p235 = scmp.ne.s32.totalorder %s224, %s227
    %p236 = scmp.eq.s32.totalorder %s19, 3
    %p237 = por %p235, %p236
    %p238 = scmp.ne.s32.totalorder %s227, %s228
    %p239 = scmp.eq.s32.totalorder %s19, 0
    %p240 = por %p238, %p239
    %p241 = scmp.ne.s32.totalorder %s227, %s228
    %p242 = scmp.eq.s32.totalorder %s20, 3
    %p243 = por %p241, %p242
    %p245 = scmp.ne.s32.totalorder %s228, %s244
    %p246 = scmp.eq.s32.totalorder %s20, 0
    %p247 = por %p245, %p246
    %p248 = scmp.le.s32.totalorder 1, %s14
    %p249 = scmp.lt.s32.totalorder %s14, 5
    %p250 = pnand %p248, %p249
    %p251 = pneg %p250
    // Predicated region
    $region9: #{upconv_fwd.6} parent=5 // pred_check
      _
    $region10: #{upconv_fwd.6} parent=5 // pred_check_branch
      %253 = sbr.rel (%p250) target = $region12
    $region11: #{upconv_fwd.6} parent=5 // pred_region
      %s254 = ssub.s32 %s14, 1
      // Predicated region
      $region13: #{upconv_fwd.6} parent=11 // pred_check
        %p255 = pneg %p139
      $region14: #{upconv_fwd.6} parent=11 // pred_check_branch
        %257 = sbr.rel (%p255) target = $region16
      $region15: #{upconv_fwd.6} parent=11 // pred_region
        _
      $region16: #{upconv_fwd.6} parent=11 // pred_fallthru
        _
      // Predicated region
      $region17: #{upconv_fwd.6} parent=11 // pred_check
        %p258 = pneg %p160
      $region18: #{upconv_fwd.6} parent=11 // pred_check_branch
        %260 = sbr.rel (%p258) target = $region20
      $region19: #{upconv_fwd.6} parent=11 // pred_region
        _
      $region20: #{upconv_fwd.6} parent=11 // pred_fallthru
        _
    $region12: #{upconv_fwd.6} parent=5 // pred_fallthru
      _
    %p261 = scmp.lt.s32.totalorder %s14, 4
    // Predicated region
    $region21: #{upconv_fwd.6} parent=5 // pred_check
      %p262 = pneg %p261
    $region22: #{upconv_fwd.6} parent=5 // pred_check_branch
      %264 = sbr.rel (%p262) target = $region24
    $region23: #{upconv_fwd.6} parent=5 // pred_region
      // Predicated region
      $region25: #{upconv_fwd.6} parent=23 // pred_check
        %p265 = pneg %p48
      $region26: #{upconv_fwd.6} parent=23 // pred_check_branch
        %267 = sbr.rel (%p265) target = $region28
      $region27: #{upconv_fwd.6} parent=23 // pred_region
        %s268 = smul.u32 8, %s22
        %s269 = ssub.s32 18, %s268
        %p270 = scmp.lt.s32.totalorder %s269, 8
        %s271 = scalar_select %p270, %s269, 8
        %s272 = smul.u32 4, %s271
        %s273 = smul.u32 %s272, 3
        %p274 = scmp.lt.s32.totalorder %s21, 1
        %s275 = scalar_select %p274, %s21, 1
        %p276 = scmp.lt.s32.totalorder %s268, 17
        %s277 = scalar_select %p276, %s268, 17
        %s278 = smul.addr %s277, 3
        %s279 = smul.addr %s275, 54
        %s280 = sadd.s32 %s278, %s279
        %s281 = smul.addr %s280, 4
        %s282 = scalar_lea.vmem %s0, %s281
        %s283 = smul.u32 8, %s22
        %s284 = ssub.s32 18, %s283
        %p285 = scmp.lt.s32.totalorder %s284, 8
        %s286 = scalar_select %p285, %s284, 8
        %s287 = smul.u32 4, %s286
        %s288 = smul.u32 %s287, 3
      $region28: #{upconv_fwd.6} parent=23 // pred_fallthru
        _
      // Predicated region
      $region29: #{upconv_fwd.6} parent=23 // pred_check
        %p289 = pneg %p80
      $region30: #{upconv_fwd.6} parent=23 // pred_check_branch
        %291 = sbr.rel (%p289) target = $region32
      $region31: #{upconv_fwd.6} parent=23 // pred_region
        %s292 = smul.u32 %s22, 8
        %s293 = sadd.s32 %s292, 8
        %p294 = scmp.lt.s32.totalorder %s21, 1
        %s295 = scalar_select %p294, %s21, 1
        %p296 = scmp.lt.s32.totalorder %s293, 17
        %s297 = scalar_select %p296, %s293, 17
        %s298 = smul.addr %s297, 3
        %s299 = smul.addr %s295, 54
        %s300 = sadd.s32 %s298, %s299
        %s301 = smul.addr %s300, 4
        %s302 = scalar_lea.vmem %s1, %s301
        %s303 = smul.u32 %s22, 8
        %s304 = sadd.s32 %s303, 8
      $region32: #{upconv_fwd.6} parent=23 // pred_fallthru
        _
      // Predicated region
      $region33: #{upconv_fwd.6} parent=23 // pred_check
        %p305 = pneg %p112
      $region34: #{upconv_fwd.6} parent=23 // pred_check_branch
        %307 = sbr.rel (%p305) target = $region36
      $region35: #{upconv_fwd.6} parent=23 // pred_region
        %s308 = smul.u32 %s22, 8
        %s309 = sadd.s32 %s308, 9
        %p310 = scmp.lt.s32.totalorder %s21, 1
        %s311 = scalar_select %p310, %s21, 1
        %p312 = scmp.lt.s32.totalorder %s309, 17
        %s313 = scalar_select %p312, %s309, 17
        %s314 = smul.addr %s313, 3
        %s315 = smul.addr %s311, 54
        %s316 = sadd.s32 %s314, %s315
        %s317 = smul.addr %s316, 4
        %s318 = scalar_lea.vmem %s2, %s317
        %s319 = smul.u32 %s22, 8
        %s320 = sadd.s32 %s319, 9
      $region36: #{upconv_fwd.6} parent=23 // pred_fallthru
        _
    $region24: #{upconv_fwd.6} parent=5 // pred_fallthru
      _
    %p321 = scmp.le.s32.totalorder 1, %s14
    %p322 = scmp.lt.s32.totalorder %s14, 5
    %p323 = pnand %p321, %p322
    %p324 = pneg %p323
    // Predicated region
    $region37: #{upconv_fwd.6} parent=5 // pred_check
      _
    $region38: #{upconv_fwd.6} parent=5 // pred_check_branch
      %326 = sbr.rel (%p323) target = $region40
    $region39: #{upconv_fwd.6} parent=5 // pred_region
      %s327 = ssub.s32 %s14, 1
      %s328 = smul.u32 8, %s24
      %s329 = ssub.s32 18, %s328
      %p330 = scmp.lt.s32.totalorder %s329, 8
      %s331 = scalar_select %p330, %s329, 8
      %s332 = smul.u32 4, %s331
      %s333 = smul.u32 %s332, 3
      %p334 = scmp.lt.s32.totalorder %s23, 1
      %s335 = scalar_select %p334, %s23, 1
      %p336 = scmp.lt.s32.totalorder %s328, 17
      %s337 = scalar_select %p336, %s328, 17
      %s338 = smul.addr %s337, 3
      %s339 = smul.addr %s335, 54
      %s340 = sadd.s32 %s338, %s339
      %s341 = smul.addr %s340, 4
      %s342 = scalar_lea.vmem %s0, %s341
      %p343 = pneg %p54
      %p344 = pneg %p51
      %s345 = smul.u32 %s24, 8
      %s346 = sadd.s32 %s345, 8
      %p347 = scmp.lt.s32.totalorder %s23, 1
      %s348 = scalar_select %p347, %s23, 1
      %p349 = scmp.lt.s32.totalorder %s346, 17
      %s350 = scalar_select %p349, %s346, 17
      %s351 = smul.addr %s350, 3
      %s352 = smul.addr %s348, 54
      %s353 = sadd.s32 %s351, %s352
      %s354 = smul.addr %s353, 4
      %s355 = scalar_lea.vmem %s1, %s354
      %p356 = pneg %p86
      %p357 = pneg %p83
      %s358 = smul.u32 %s24, 8
      %s359 = sadd.s32 %s358, 9
      %p360 = scmp.lt.s32.totalorder %s23, 1
      %s361 = scalar_select %p360, %s23, 1
      %p362 = scmp.lt.s32.totalorder %s359, 17
      %s363 = scalar_select %p362, %s359, 17
      %s364 = smul.addr %s363, 3
      %s365 = smul.addr %s361, 54
      %s366 = sadd.s32 %s364, %s365
      %s367 = smul.addr %s366, 4
      %s368 = scalar_lea.vmem %s2, %s367
      %p369 = pneg %p118
      %p370 = pneg %p115
      %p371 = pneg %p139
      %p372 = pneg %p136
      %p373 = pneg %p160
      %p374 = pneg %p157
      %p375 = pneg %p188
      %p376 = pneg %p185
      %s377 = smul.u32 8, %s24
      %p378 = scmp.lt.s32.totalorder %s23, 1
      %s379 = scalar_select %p378, %s23, 1
      %p380 = scmp.lt.s32.totalorder %s377, 15
      %s381 = scalar_select %p380, %s377, 15
      %s382 = smul.addr %s381, 2
      %s383 = smul.addr %s379, 32
      %s384 = sadd.s32 %s382, %s383
      %s385 = smul.addr %s384, 4
      %s386 = scalar_lea.vmem %s5, %s385
      %p387 = pneg %p214
      %p388 = pneg %p211
      %p389 = scmp.lt.s32.totalorder %s23, 1
      %s390 = scalar_select %p389, %s23, 1
      %s391 = scalar_lea.vmem %s6, %s390
      %p392 = pneg %p240
      %p393 = pneg %p237
      %p394 = scmp.lt.s32.totalorder %s23, 1
      %s395 = scalar_select %p394, %s23, 1
      %s396 = scalar_lea.vmem %s7, %s395
      %s397 = smul.u32 8, %s24
      %s398 = ssub.s32 18, %s397
      %p399 = scmp.lt.s32.totalorder %s398, 8
      %s400 = scalar_select %p399, %s398, 8
      %s401 = smul.u32 4, %s400
      %s402 = smul.u32 %s401, 3
      %p403 = scmp.lt.s32.totalorder %s23, 1
      %s404 = scalar_select %p403, %s23, 1
      %p405 = scmp.lt.s32.totalorder %s397, 17
      %s406 = scalar_select %p405, %s397, 17
      %s407 = smul.addr %s406, 3
      %s408 = smul.addr %s404, 54
      %s409 = sadd.s32 %s407, %s408
      %s410 = smul.addr %s409, 4
      %s411 = scalar_lea.vmem %s0, %s410
      %s412 = smul.u32 8, %s24
      %s413 = ssub.s32 18, %s412
      %p414 = scmp.lt.s32.totalorder %s413, 8
      %s415 = scalar_select %p414, %s413, 8
      %s416 = smul.u32 4, %s415
      %s417 = smul.u32 %s416, 3
      %s418 = smul.u32 %s24, 8
      %s419 = sadd.s32 %s418, 8
      %p420 = scmp.lt.s32.totalorder %s23, 1
      %s421 = scalar_select %p420, %s23, 1
      %p422 = scmp.lt.s32.totalorder %s419, 17
      %s423 = scalar_select %p422, %s419, 17
      %s424 = smul.addr %s423, 3
      %s425 = smul.addr %s421, 54
      %s426 = sadd.s32 %s424, %s425
      %s427 = smul.addr %s426, 4
      %s428 = scalar_lea.vmem %s1, %s427
      %s429 = smul.u32 %s24, 8
      %s430 = sadd.s32 %s429, 8
      %s431 = smul.u32 %s24, 8
      %s432 = sadd.s32 %s431, 9
      %p433 = scmp.lt.s32.totalorder %s23, 1
      %s434 = scalar_select %p433, %s23, 1
      %p435 = scmp.lt.s32.totalorder %s432, 17
      %s436 = scalar_select %p435, %s432, 17
      %s437 = smul.addr %s436, 3
      %s438 = smul.addr %s434, 54
      %s439 = sadd.s32 %s437, %s438
      %s440 = smul.addr %s439, 4
      %s441 = scalar_lea.vmem %s2, %s440
      %s442 = smul.u32 %s24, 8
      %s443 = sadd.s32 %s442, 9
      %s444 = smul.u32 8, %s24
      %p445 = scmp.lt.s32.totalorder %s23, 1
      %s446 = scalar_select %p445, %s23, 1
      %p447 = scmp.lt.s32.totalorder %s444, 15
      %s448 = scalar_select %p447, %s444, 15
      %s449 = smul.addr %s448, 2
      %s450 = smul.addr %s446, 32
      %s451 = sadd.s32 %s449, %s450
      %s452 = smul.addr %s451, 4
      %s453 = scalar_lea.vmem %s5, %s452
      %s454 = smul.u32 8, %s24
      %p455 = scmp.lt.s32.totalorder %s23, 1
      %s456 = scalar_select %p455, %s23, 1
      %s457 = scalar_lea.vmem %s6, %s456
      %p458 = scmp.lt.s32.totalorder %s23, 1
      %s459 = scalar_select %p458, %s23, 1
      %s460 = scalar_lea.vmem %s7, %s459
      %p461 = scmp.eq.s32.totalorder %s24, 0
      // Predicated region
      $region41: #{upconv_fwd.6} parent=39 // pred_check
        %p462 = pneg %p461
      $region42: #{upconv_fwd.6} parent=39 // pred_check_branch
        %464 = sbr.rel (%p462) target = $region44
      $region43: #{upconv_fwd.6} parent=39 // pred_region
        %465 = vst [vmem:[%s457] sm:$0x1] 0.0
        %466 = vst [vmem:[%s460] sm:$0x1] 0.0
      $region44: #{upconv_fwd.6} parent=39 // pred_fallthru
        _
      %v467 = vld [vmem:[%s3] sm:$0xf]
      %v468 = vld [vmem:[%s3 + $0x4] sm:$0xf]
      %v469 = vld [vmem:[%s3 + $0x8] sm:$0xf]
      %v470 = vld [vmem:[%s3 + $0xc] sm:$0xf]
      %v471 = vld [vmem:[%s3 + $0x10] sm:$0xf]
      %v472 = vld [vmem:[%s3 + $0x14] sm:$0xf]
      %v473 = vld [vmem:[%s3 + $0x18] sm:$0xf]
      %v474 = vld [vmem:[%s3 + $0x1c] sm:$0xf]
      %v475 = vld [vmem:[%s3 + $0x20] sm:$0xf]
      %v476 = vld [vmem:[%s3 + $0x24] sm:$0xf]
      %v477 = vld [vmem:[%s3 + $0x28] sm:$0xf]
      %v478 = vld [vmem:[%s3 + $0x2c] sm:$0xf]
      %v479 = vld [vmem:[%s3 + $0x30] sm:$0xf]
      %v480 = vld [vmem:[%s3 + $0x34] sm:$0xf]
      %v481 = vld [vmem:[%s3 + $0x38] sm:$0xf]
      %v482 = vld [vmem:[%s3 + $0x3c] sm:$0xf]
      %v483 = vld [vmem:[%s3 + $0x40] sm:$0xf]
      %v484 = vld [vmem:[%s3 + $0x44] sm:$0xf]
      %v485 = vld [vmem:[%s3 + $0x48] sm:$0xf]
      %v486 = vld [vmem:[%s3 + $0x4c] sm:$0xf]
      %v487 = vld [vmem:[%s3 + $0x50] sm:$0xf]
      %v488 = vld [vmem:[%s3 + $0x54] sm:$0xf]
      %v489 = vld [vmem:[%s3 + $0x58] sm:$0xf]
      %v490 = vld [vmem:[%s3 + $0x5c] sm:$0xf]
      %v491 = vld [vmem:[%s3 + $0x60] sm:$0xf]
      %v492 = vld [vmem:[%s3 + $0x64] sm:$0xf]
      %v493 = vld [vmem:[%s3 + $0x68] sm:$0xf]
      %v494 = vld [vmem:[%s3 + $0x6c] sm:$0xf]
      %v495 = vld [vmem:[%s3 + $0x70] sm:$0xf]
      %v496 = vld [vmem:[%s3 + $0x74] sm:$0xf]
      %v497 = vld [vmem:[%s3 + $0x78] sm:$0xf]
      %v498 = vld [vmem:[%s3 + $0x7c] sm:$0xf]
      %v499 = vld [vmem:[%s3 + $0x80] sm:$0xf]
      %v500 = vld [vmem:[%s3 + $0x84] sm:$0xf]
      %v501 = vld [vmem:[%s3 + $0x88] sm:$0xf]
      %v502 = vld [vmem:[%s3 + $0x8c] sm:$0xf]
      %v503 = vld [vmem:[%s3 + $0x90] sm:$0xf]
      %v504 = vld [vmem:[%s3 + $0x94] sm:$0xf]
      %v505 = vld [vmem:[%s3 + $0x98] sm:$0xf]
      %v506 = vld [vmem:[%s3 + $0x9c] sm:$0xf]
      %v507 = vld [vmem:[%s3 + $0xa0] sm:$0xf]
      %v508 = vld [vmem:[%s3 + $0xa4] sm:$0xf]
      %v509 = vld [vmem:[%s3 + $0xa8] sm:$0xf]
      %v510 = vld [vmem:[%s3 + $0xac] sm:$0xf]
      %v511 = vld [vmem:[%s3 + $0xb0] sm:$0xf]
      %v512 = vld [vmem:[%s3 + $0xb4] sm:$0xf]
      %v513 = vld [vmem:[%s3 + $0xb8] sm:$0xf]
      %v514 = vld [vmem:[%s3 + $0xbc] sm:$0xf]
      %v515 = vld [vmem:[%s3 + $0xc0] sm:$0xf]
      %v516 = vld [vmem:[%s3 + $0xc4] sm:$0xf]
      %v517 = vld [vmem:[%s3 + $0xc8] sm:$0xf]
      %v518 = vld [vmem:[%s3 + $0xcc] sm:$0xf]
      %v519 = vld [vmem:[%s3 + $0xd0] sm:$0xf]
      %v520 = vld [vmem:[%s3 + $0xd4] sm:$0xf]
      %v521 = vld [vmem:[%s3 + $0xd8] sm:$0xf]
      %v522 = vld [vmem:[%s3 + $0xdc] sm:$0xf]
      %v523 = vld [vmem:[%s3 + $0xe0] sm:$0xf]
      %v524 = vld [vmem:[%s3 + $0xe4] sm:$0xf]
      %v525 = vld [vmem:[%s3 + $0xe8] sm:$0xf]
      %v526 = vld [vmem:[%s3 + $0xec] sm:$0xf]
      %v527 = vld [vmem:[%s3 + $0xf0] sm:$0xf]
      %v528 = vld [vmem:[%s3 + $0xf4] sm:$0xf]
      %v529 = vld [vmem:[%s3 + $0xf8] sm:$0xf]
      %v530 = vld [vmem:[%s3 + $0xfc] sm:$0xf]
      %v531 = vld [vmem:[%s3 + $0x100] sm:$0xf]
      %v532 = vld [vmem:[%s3 + $0x104] sm:$0xf]
      %v533 = vld [vmem:[%s3 + $0x108] sm:$0xf]
      %v534 = vld [vmem:[%s3 + $0x10c] sm:$0xf]
      %v535 = vld [vmem:[%s3 + $0x110] sm:$0xf]
      %v536 = vld [vmem:[%s3 + $0x114] sm:$0xf]
      %v537 = vld [vmem:[%s3 + $0x118] sm:$0xf]
      %v538 = vld [vmem:[%s3 + $0x11c] sm:$0xf]
      %v539 = vld [vmem:[%s3 + $0x120] sm:$0xf]
      %v540 = vld [vmem:[%s3 + $0x124] sm:$0xf]
      %v541 = vld [vmem:[%s3 + $0x128] sm:$0xf]
      %v542 = vld [vmem:[%s3 + $0x12c] sm:$0xf]
      %v543 = vld [vmem:[%s3 + $0x130] sm:$0xf]
      %v544 = vld [vmem:[%s3 + $0x134] sm:$0xf]
      %v545 = vld [vmem:[%s3 + $0x138] sm:$0xf]
      %v546 = vld [vmem:[%s3 + $0x13c] sm:$0xf]
      %v547 = vld [vmem:[%s3 + $0x140] sm:$0xf]
      %v548 = vld [vmem:[%s3 + $0x144] sm:$0xf]
      %v549 = vld [vmem:[%s3 + $0x148] sm:$0xf]
      %v550 = vld [vmem:[%s3 + $0x14c] sm:$0xf]
      %v551 = vld [vmem:[%s3 + $0x150] sm:$0xf]
      %v552 = vld [vmem:[%s3 + $0x154] sm:$0xf]
      %v553 = vld [vmem:[%s3 + $0x158] sm:$0xf]
      %v554 = vld [vmem:[%s3 + $0x15c] sm:$0xf]
      %v555 = vld [vmem:[%s3 + $0x160] sm:$0xf]
      %v556 = vld [vmem:[%s3 + $0x164] sm:$0xf]
      %v557 = vld [vmem:[%s3 + $0x168] sm:$0xf]
      %v558 = vld [vmem:[%s3 + $0x16c] sm:$0xf]
      %v559 = vld [vmem:[%s3 + $0x170] sm:$0xf]
      %v560 = vld [vmem:[%s3 + $0x174] sm:$0xf]
      %v561 = vld [vmem:[%s3 + $0x178] sm:$0xf]
      %v562 = vld [vmem:[%s3 + $0x17c] sm:$0xf]
      %v563 = vld [vmem:[%s3 + $0x180] sm:$0xf]
      %v564 = vld [vmem:[%s3 + $0x184] sm:$0xf]
      %v565 = vld [vmem:[%s3 + $0x188] sm:$0xf]
      %v566 = vld [vmem:[%s3 + $0x18c] sm:$0xf]
      %v567 = vld [vmem:[%s3 + $0x190] sm:$0xf]
      %v568 = vld [vmem:[%s3 + $0x194] sm:$0xf]
      %v569 = vld [vmem:[%s3 + $0x198] sm:$0xf]
      %v570 = vld [vmem:[%s3 + $0x19c] sm:$0xf]
      %v571 = vld [vmem:[%s3 + $0x1a0] sm:$0xf]
      %v572 = vld [vmem:[%s3 + $0x1a4] sm:$0xf]
      %v573 = vld [vmem:[%s3 + $0x1a8] sm:$0xf]
      %v574 = vld [vmem:[%s3 + $0x1ac] sm:$0xf]
      %v575 = vld [vmem:[%s3 + $0x1b0] sm:$0xf]
      %v576 = vld [vmem:[%s3 + $0x1b4] sm:$0xf]
      %v577 = vld [vmem:[%s3 + $0x1b8] sm:$0xf]
      %v578 = vld [vmem:[%s3 + $0x1bc] sm:$0xf]
      %v579 = vld [vmem:[%s3 + $0x1c0] sm:$0xf]
      %v580 = vld [vmem:[%s3 + $0x1c4] sm:$0xf]
      %v581 = vld [vmem:[%s3 + $0x1c8] sm:$0xf]
      %v582 = vld [vmem:[%s3 + $0x1cc] sm:$0xf]
      %v583 = vld [vmem:[%s3 + $0x1d0] sm:$0xf]
      %v584 = vld [vmem:[%s3 + $0x1d4] sm:$0xf]
      %v585 = vld [vmem:[%s3 + $0x1d8] sm:$0xf]
      %v586 = vld [vmem:[%s3 + $0x1dc] sm:$0xf]
      %v587 = vld [vmem:[%s3 + $0x1e0] sm:$0xf]
      %v588 = vld [vmem:[%s3 + $0x1e4] sm:$0xf]
      %v589 = vld [vmem:[%s3 + $0x1e8] sm:$0xf]
      %v590 = vld [vmem:[%s3 + $0x1ec] sm:$0xf]
      %v591 = vld [vmem:[%s3 + $0x1f0] sm:$0xf]
      %v592 = vld [vmem:[%s3 + $0x1f4] sm:$0xf]
      %v593 = vld [vmem:[%s3 + $0x1f8] sm:$0xf]
      %v594 = vld [vmem:[%s3 + $0x1fc] sm:$0xf]
      %v595 = vld [vmem:[%s3 + $0x200] sm:$0xf]
      %v596 = vld [vmem:[%s3 + $0x204] sm:$0xf]
      %v597 = vld [vmem:[%s3 + $0x208] sm:$0xf]
      %v598 = vld [vmem:[%s3 + $0x20c] sm:$0xf]
      %v599 = vld [vmem:[%s3 + $0x210] sm:$0xf]
      %v600 = vld [vmem:[%s3 + $0x214] sm:$0xf]
      %v601 = vld [vmem:[%s3 + $0x218] sm:$0xf]
      %v602 = vld [vmem:[%s3 + $0x21c] sm:$0xf]
      %v603 = vld [vmem:[%s3 + $0x220] sm:$0xf]
      %v604 = vld [vmem:[%s3 + $0x224] sm:$0xf]
      %v605 = vld [vmem:[%s3 + $0x228] sm:$0xf]
      %v606 = vld [vmem:[%s3 + $0x22c] sm:$0xf]
      %v607 = vld [vmem:[%s3 + $0x230] sm:$0xf]
      %v608 = vld [vmem:[%s3 + $0x234] sm:$0xf]
      %v609 = vld [vmem:[%s3 + $0x238] sm:$0xf]
      %v610 = vld [vmem:[%s3 + $0x23c] sm:$0xf]
      %v611 = vld [vmem:[%s4] sm:$0x1]
      %v612 = vld [vmem:[%s411] sm:$0xf]
      %v613 = vld [vmem:[%s411 + $0x4] sm:$0xf]
      %v614 = vld [vmem:[%s411 + $0x8] sm:$0x1]
      %v615 = vld [vmem:[%s411] sm:$0xe]
      %s616 = scalar_lea.vmem %s411, 12
      %v617 = vld [vmem:[%s616] sm:$0xf]
      %v618 = vld [vmem:[%s616 + $0x4] sm:$0xf]
      %v619 = vld [vmem:[%s616 + $0x8] sm:$0x1]
      %v620 = vld [vmem:[%s616] sm:$0xe]
      %s621 = scalar_lea.vmem %s411, 24
      %v622 = vld [vmem:[%s621] sm:$0xf]
      %v623 = vld [vmem:[%s621 + $0x4] sm:$0xf]
      %v624 = vld [vmem:[%s621 + $0x8] sm:$0x1]
      %v625 = vld [vmem:[%s621] sm:$0xe]
      %v628 = vunpack.c.l.b16 %v612
      %v629 = vunpack.c.l.b16 %v613
      %v630 = vpack.c.b16 %v629, %v628
      %v633 = vunpack.c.l.b16 %v614
      %v634 = vpack.c.b16 %v633, %v633
      %vm635 = vsmask.f32 7424
      %v637 = vshrl.u32 %v630, 16
      %v639 = vshll.u32 %v630, 16
      %v641 = vrot.slane %v639, 1
      %v642 = vor.u32 %v637, %v641
      %v644 = vshll.u32 %v634, 16
      %v646 = vrot.slane %v644, 1
      %v647 = vsel %vm635, %v642, %v646
      %v650 = vunpack.c.l.b16 %v615
      %v651 = vpack.c.b16 %v629, %v650
      %vm652 = vcmask 1046528
      %v653 = vrot.slane %v651, 1
      %v654 = vrot.slane %v634, 1
      %v655 = vsel %vm652, %v653, %v654
      %v659 = vunpack.c.l.b16 %v617
      %v660 = vunpack.c.l.b16 %v618
      %v661 = vpack.c.b16 %v660, %v659
      %v664 = vunpack.c.l.b16 %v619
      %v665 = vpack.c.b16 %v664, %v664
      %v667 = vshrl.u32 %v661, 16
      %v669 = vshll.u32 %v661, 16
      %v671 = vrot.slane %v669, 1
      %v672 = vor.u32 %v667, %v671
      %v674 = vshll.u32 %v665, 16
      %v676 = vrot.slane %v674, 1
      %v677 = vsel %vm635, %v672, %v676
      %v680 = vunpack.c.l.b16 %v620
      %v681 = vpack.c.b16 %v660, %v680
      %v682 = vrot.slane %v681, 1
      %v683 = vrot.slane %v665, 1
      %v684 = vsel %vm652, %v682, %v683
      %v688 = vunpack.c.l.b16 %v622
      %v689 = vunpack.c.l.b16 %v623
      %v690 = vpack.c.b16 %v689, %v688
      %v693 = vunpack.c.l.b16 %v624
      %v694 = vpack.c.b16 %v693, %v693
      %v696 = vshrl.u32 %v690, 16
      %v698 = vshll.u32 %v690, 16
      %v700 = vrot.slane %v698, 1
      %v701 = vor.u32 %v696, %v700
      %v703 = vshll.u32 %v694, 16
      %v705 = vrot.slane %v703, 1
      %v706 = vsel %vm635, %v701, %v705
      %v709 = vunpack.c.l.b16 %v625
      %v710 = vpack.c.b16 %v689, %v709
      %v711 = vrot.slane %v710, 1
      %v712 = vrot.slane %v694, 1
      %v713 = vsel %vm652, %v711, %v712
      %v716 = vperm.slane %v611, 0
      %v862 = vunpack.c.l.b16 %v467
      %v863 = vunpack.c.l.b16 %v468
      %v864 = vunpack.c.l.b16 %v469
      %v865 = vunpack.c.l.b16 %v470
      %v866 = vunpack.c.l.b16 %v471
      %v867 = vunpack.c.l.b16 %v472
      %v868 = vunpack.c.l.b16 %v473
      %v869 = vunpack.c.l.b16 %v474
      %v870 = vunpack.c.l.b16 %v475
      %v871 = vunpack.c.l.b16 %v476
      %v872 = vunpack.c.l.b16 %v477
      %v873 = vunpack.c.l.b16 %v478
      %v874 = vunpack.c.l.b16 %v479
      %v875 = vunpack.c.l.b16 %v480
      %v876 = vunpack.c.l.b16 %v481
      %v877 = vunpack.c.l.b16 %v482
      %v878 = vunpack.c.l.b16 %v483
      %v879 = vunpack.c.l.b16 %v484
      %v880 = vunpack.c.l.b16 %v485
      %v881 = vunpack.c.l.b16 %v486
      %v882 = vunpack.c.l.b16 %v487
      %v883 = vunpack.c.l.b16 %v488
      %v884 = vunpack.c.l.b16 %v489
      %v885 = vunpack.c.l.b16 %v490
      %v886 = vunpack.c.l.b16 %v491
      %v887 = vunpack.c.l.b16 %v492
      %v888 = vunpack.c.l.b16 %v493
      %v889 = vunpack.c.l.b16 %v494
      %v890 = vunpack.c.l.b16 %v495
      %v891 = vunpack.c.l.b16 %v496
      %v892 = vunpack.c.l.b16 %v497
      %v893 = vunpack.c.l.b16 %v498
      %v894 = vunpack.c.l.b16 %v499
      %v895 = vunpack.c.l.b16 %v500
      %v896 = vunpack.c.l.b16 %v501
      %v897 = vunpack.c.l.b16 %v502
      %v898 = vunpack.c.l.b16 %v503
      %v899 = vunpack.c.l.b16 %v504
      %v900 = vunpack.c.l.b16 %v505
      %v901 = vunpack.c.l.b16 %v506
      %v902 = vunpack.c.l.b16 %v507
      %v903 = vunpack.c.l.b16 %v508
      %v904 = vunpack.c.l.b16 %v509
      %v905 = vunpack.c.l.b16 %v510
      %v906 = vunpack.c.l.b16 %v511
      %v907 = vunpack.c.l.b16 %v512
      %v908 = vunpack.c.l.b16 %v513
      %v909 = vunpack.c.l.b16 %v514
      %v910 = vunpack.c.l.b16 %v515
      %v911 = vunpack.c.l.b16 %v516
      %v912 = vunpack.c.l.b16 %v517
      %v913 = vunpack.c.l.b16 %v518
      %v914 = vunpack.c.l.b16 %v519
      %v915 = vunpack.c.l.b16 %v520
      %v916 = vunpack.c.l.b16 %v521
      %v917 = vunpack.c.l.b16 %v522
      %v918 = vunpack.c.l.b16 %v523
      %v919 = vunpack.c.l.b16 %v524
      %v920 = vunpack.c.l.b16 %v525
      %v921 = vunpack.c.l.b16 %v526
      %v922 = vunpack.c.l.b16 %v527
      %v923 = vunpack.c.l.b16 %v528
      %v924 = vunpack.c.l.b16 %v529
      %v925 = vunpack.c.l.b16 %v530
      %v926 = vunpack.c.l.b16 %v531
      %v927 = vunpack.c.l.b16 %v532
      %v928 = vunpack.c.l.b16 %v533
      %v929 = vunpack.c.l.b16 %v534
      %v930 = vunpack.c.l.b16 %v535
      %v931 = vunpack.c.l.b16 %v536
      %v932 = vunpack.c.l.b16 %v537
      %v933 = vunpack.c.l.b16 %v538
      %v934 = vunpack.c.l.b16 %v539
      %v935 = vunpack.c.l.b16 %v540
      %v936 = vunpack.c.l.b16 %v541
      %v937 = vunpack.c.l.b16 %v542
      %v938 = vunpack.c.l.b16 %v543
      %v939 = vunpack.c.l.b16 %v544
      %v940 = vunpack.c.l.b16 %v545
      %v941 = vunpack.c.l.b16 %v546
      %v942 = vunpack.c.l.b16 %v547
      %v943 = vunpack.c.l.b16 %v548
      %v944 = vunpack.c.l.b16 %v549
      %v945 = vunpack.c.l.b16 %v550
      %v946 = vunpack.c.l.b16 %v551
      %v947 = vunpack.c.l.b16 %v552
      %v948 = vunpack.c.l.b16 %v553
      %v949 = vunpack.c.l.b16 %v554
      %v950 = vunpack.c.l.b16 %v555
      %v951 = vunpack.c.l.b16 %v556
      %v952 = vunpack.c.l.b16 %v557
      %v953 = vunpack.c.l.b16 %v558
      %v954 = vunpack.c.l.b16 %v559
      %v955 = vunpack.c.l.b16 %v560
      %v956 = vunpack.c.l.b16 %v561
      %v957 = vunpack.c.l.b16 %v562
      %v958 = vunpack.c.l.b16 %v563
      %v959 = vunpack.c.l.b16 %v564
      %v960 = vunpack.c.l.b16 %v565
      %v961 = vunpack.c.l.b16 %v566
      %v962 = vunpack.c.l.b16 %v567
      %v963 = vunpack.c.l.b16 %v568
      %v964 = vunpack.c.l.b16 %v569
      %v965 = vunpack.c.l.b16 %v570
      %v966 = vunpack.c.l.b16 %v571
      %v967 = vunpack.c.l.b16 %v572
      %v968 = vunpack.c.l.b16 %v573
      %v969 = vunpack.c.l.b16 %v574
      %v970 = vunpack.c.l.b16 %v575
      %v971 = vunpack.c.l.b16 %v576
      %v972 = vunpack.c.l.b16 %v577
      %v973 = vunpack.c.l.b16 %v578
      %v974 = vunpack.c.l.b16 %v579
      %v975 = vunpack.c.l.b16 %v580
      %v976 = vunpack.c.l.b16 %v581
      %v977 = vunpack.c.l.b16 %v582
      %v978 = vunpack.c.l.b16 %v583
      %v979 = vunpack.c.l.b16 %v584
      %v980 = vunpack.c.l.b16 %v585
      %v981 = vunpack.c.l.b16 %v586
      %v982 = vunpack.c.l.b16 %v587
      %v983 = vunpack.c.l.b16 %v588
      %v984 = vunpack.c.l.b16 %v589
      %v985 = vunpack.c.l.b16 %v590
      %v986 = vunpack.c.l.b16 %v591
      %v987 = vunpack.c.l.b16 %v592
      %v988 = vunpack.c.l.b16 %v593
      %v989 = vunpack.c.l.b16 %v594
      %v990 = vunpack.c.l.b16 %v595
      %v991 = vunpack.c.l.b16 %v596
      %v992 = vunpack.c.l.b16 %v597
      %v993 = vunpack.c.l.b16 %v598
      %v994 = vunpack.c.l.b16 %v599
      %v995 = vunpack.c.l.b16 %v600
      %v996 = vunpack.c.l.b16 %v601
      %v997 = vunpack.c.l.b16 %v602
      %v998 = vunpack.c.l.b16 %v603
      %v999 = vunpack.c.l.b16 %v604
      %v1000 = vunpack.c.l.b16 %v605
      %v1001 = vunpack.c.l.b16 %v606
      %v1002 = vunpack.c.l.b16 %v607
      %v1003 = vunpack.c.l.b16 %v608
      %v1004 = vunpack.c.l.b16 %v609
      %v1005 = vunpack.c.l.b16 %v610
      %v1006 = vpack.c.b16 %v863, %v862
      %v1007 = vpack.c.b16 %v865, %v864
      %v1008 = vpack.c.b16 %v867, %v866
      %v1009 = vpack.c.b16 %v869, %v868
      %v1010 = vpack.c.b16 %v871, %v870
      %v1011 = vpack.c.b16 %v873, %v872
      %v1012 = vpack.c.b16 %v875, %v874
      %v1013 = vpack.c.b16 %v877, %v876
      %v1014 = vpack.c.b16 %v879, %v878
      %v1015 = vpack.c.b16 %v881, %v880
      %v1016 = vpack.c.b16 %v883, %v882
      %v1017 = vpack.c.b16 %v885, %v884
      %v1018 = vpack.c.b16 %v887, %v886
      %v1019 = vpack.c.b16 %v889, %v888
      %v1020 = vpack.c.b16 %v891, %v890
      %v1021 = vpack.c.b16 %v893, %v892
      %v1022 = vpack.c.b16 %v895, %v894
      %v1023 = vpack.c.b16 %v897, %v896
      %v1024 = vpack.c.b16 %v899, %v898
      %v1025 = vpack.c.b16 %v901, %v900
      %v1026 = vpack.c.b16 %v903, %v902
      %v1027 = vpack.c.b16 %v905, %v904
      %v1028 = vpack.c.b16 %v907, %v906
      %v1029 = vpack.c.b16 %v909, %v908
      %v1030 = vpack.c.b16 %v911, %v910
      %v1031 = vpack.c.b16 %v913, %v912
      %v1032 = vpack.c.b16 %v915, %v914
      %v1033 = vpack.c.b16 %v917, %v916
      %v1034 = vpack.c.b16 %v919, %v918
      %v1035 = vpack.c.b16 %v921, %v920
      %v1036 = vpack.c.b16 %v923, %v922
      %v1037 = vpack.c.b16 %v925, %v924
      %v1038 = vpack.c.b16 %v927, %v926
      %v1039 = vpack.c.b16 %v929, %v928
      %v1040 = vpack.c.b16 %v931, %v930
      %v1041 = vpack.c.b16 %v933, %v932
      %v1042 = vpack.c.b16 %v935, %v934
      %v1043 = vpack.c.b16 %v937, %v936
      %v1044 = vpack.c.b16 %v939, %v938
      %v1045 = vpack.c.b16 %v941, %v940
      %v1046 = vpack.c.b16 %v943, %v942
      %v1047 = vpack.c.b16 %v945, %v944
      %v1048 = vpack.c.b16 %v947, %v946
      %v1049 = vpack.c.b16 %v949, %v948
      %v1050 = vpack.c.b16 %v951, %v950
      %v1051 = vpack.c.b16 %v953, %v952
      %v1052 = vpack.c.b16 %v955, %v954
      %v1053 = vpack.c.b16 %v957, %v956
      %v1054 = vpack.c.b16 %v959, %v958
      %v1055 = vpack.c.b16 %v961, %v960
      %v1056 = vpack.c.b16 %v963, %v962
      %v1057 = vpack.c.b16 %v965, %v964
      %v1058 = vpack.c.b16 %v967, %v966
      %v1059 = vpack.c.b16 %v969, %v968
      %v1060 = vpack.c.b16 %v971, %v970
      %v1061 = vpack.c.b16 %v973, %v972
      %v1062 = vpack.c.b16 %v975, %v974
      %v1063 = vpack.c.b16 %v977, %v976
      %v1064 = vpack.c.b16 %v979, %v978
      %v1065 = vpack.c.b16 %v981, %v980
      %v1066 = vpack.c.b16 %v983, %v982
      %v1067 = vpack.c.b16 %v985, %v984
      %v1068 = vpack.c.b16 %v987, %v986
      %v1069 = vpack.c.b16 %v989, %v988
      %v1070 = vpack.c.b16 %v991, %v990
      %v1071 = vpack.c.b16 %v993, %v992
      %v1072 = vpack.c.b16 %v995, %v994
      %v1073 = vpack.c.b16 %v997, %v996
      %v1074 = vpack.c.b16 %v999, %v998
      %v1075 = vpack.c.b16 %v1001, %v1000
      %v1076 = vpack.c.b16 %v1003, %v1002
      %v1077 = vpack.c.b16 %v1005, %v1004
      %1150 = vmatpush.bf16.msra.mxu0 %v1013
      %1151 = vmatpush.bf16.msra.mxu0 %v1012
      %1152 = vmatpush.bf16.msra.mxu0 %v1011
      %1153 = vmatpush.bf16.msra.mxu0 %v1010
      %1154 = vmatpush.bf16.msra.mxu0 %v1009
      %1155 = vmatpush.bf16.msra.mxu0 %v1008
      %1156 = vmatpush.bf16.msra.mxu0 %v1007
      %1157 = vmatpush.bf16.msra.mxu0 %v1006
      %1158 = vmatmul.bf16.gmra.mxu0 %v630
      %v1159 = vpop.f32.mrf.mxu0
      %v1160 = vadd.f32 %v716, %v1159
      %v1161 = vpop.f32.mrf.mxu0
      %v1162 = vadd.f32 %v716, %v1161
      %1163 = vdwg.mxu0
      %1164 = vmatpush.bf16.msra.mxu0 %v1021
      %1165 = vmatpush.bf16.msra.mxu0 %v1020
      %1166 = vmatpush.bf16.msra.mxu0 %v1019
      %1167 = vmatpush.bf16.msra.mxu0 %v1018
      %1168 = vmatpush.bf16.msra.mxu0 %v1017
      %1169 = vmatpush.bf16.msra.mxu0 %v1016
      %1170 = vmatpush.bf16.msra.mxu0 %v1015
      %1171 = vmatpush.bf16.msra.mxu0 %v1014
      %1172 = vmatmul.bf16.gmra.mxu0 %v647
      %v1173 = vpop.f32.mrf.mxu0
      %v1174 = vadd.f32 %v1160, %v1173
      %v1175 = vpop.f32.mrf.mxu0
      %v1176 = vadd.f32 %v1162, %v1175
      %1177 = vdwg.mxu0
      %1178 = vmatpush.bf16.msra.mxu0 %v1029
      %1179 = vmatpush.bf16.msra.mxu0 %v1028
      %1180 = vmatpush.bf16.msra.mxu0 %v1027
      %1181 = vmatpush.bf16.msra.mxu0 %v1026
      %1182 = vmatpush.bf16.msra.mxu0 %v1025
      %1183 = vmatpush.bf16.msra.mxu0 %v1024
      %1184 = vmatpush.bf16.msra.mxu0 %v1023
      %1185 = vmatpush.bf16.msra.mxu0 %v1022
      %1186 = vmatmul.bf16.gmra.mxu0 %v655
      %v1187 = vpop.f32.mrf.mxu0
      %v1188 = vadd.f32 %v1174, %v1187
      %v1189 = vpop.f32.mrf.mxu0
      %v1190 = vadd.f32 %v1176, %v1189
      %1191 = vdwg.mxu0
      %1192 = vmatpush.bf16.msra.mxu0 %v1037
      %1193 = vmatpush.bf16.msra.mxu0 %v1036
      %1194 = vmatpush.bf16.msra.mxu0 %v1035
      %1195 = vmatpush.bf16.msra.mxu0 %v1034
      %1196 = vmatpush.bf16.msra.mxu0 %v1033
      %1197 = vmatpush.bf16.msra.mxu0 %v1032
      %1198 = vmatpush.bf16.msra.mxu0 %v1031
      %1199 = vmatpush.bf16.msra.mxu0 %v1030
      %1200 = vmatmul.bf16.gmra.mxu0 %v661
      %v1201 = vpop.f32.mrf.mxu0
      %v1202 = vadd.f32 %v1188, %v1201
      %v1203 = vpop.f32.mrf.mxu0
      %v1204 = vadd.f32 %v1190, %v1203
      %1205 = vdwg.mxu0
      %1206 = vmatpush.bf16.msra.mxu0 %v1045
      %1207 = vmatpush.bf16.msra.mxu0 %v1044
      %1208 = vmatpush.bf16.msra.mxu0 %v1043
      %1209 = vmatpush.bf16.msra.mxu0 %v1042
      %1210 = vmatpush.bf16.msra.mxu0 %v1041
      %1211 = vmatpush.bf16.msra.mxu0 %v1040
      %1212 = vmatpush.bf16.msra.mxu0 %v1039
      %1213 = vmatpush.bf16.msra.mxu0 %v1038
      %1214 = vmatmul.bf16.gmra.mxu0 %v677
      %v1215 = vpop.f32.mrf.mxu0
      %v1216 = vadd.f32 %v1202, %v1215
      %v1217 = vpop.f32.mrf.mxu0
      %v1218 = vadd.f32 %v1204, %v1217
      %1219 = vdwg.mxu0
      %1220 = vmatpush.bf16.msra.mxu0 %v1053
      %1221 = vmatpush.bf16.msra.mxu0 %v1052
      %1222 = vmatpush.bf16.msra.mxu0 %v1051
      %1223 = vmatpush.bf16.msra.mxu0 %v1050
      %1224 = vmatpush.bf16.msra.mxu0 %v1049
      %1225 = vmatpush.bf16.msra.mxu0 %v1048
      %1226 = vmatpush.bf16.msra.mxu0 %v1047
      %1227 = vmatpush.bf16.msra.mxu0 %v1046
      %1228 = vmatmul.bf16.gmra.mxu0 %v684
      %v1229 = vpop.f32.mrf.mxu0
      %v1230 = vadd.f32 %v1216, %v1229
      %v1231 = vpop.f32.mrf.mxu0
      %v1232 = vadd.f32 %v1218, %v1231
      %1233 = vdwg.mxu0
      %1234 = vmatpush.bf16.msra.mxu0 %v1061
      %1235 = vmatpush.bf16.msra.mxu0 %v1060
      %1236 = vmatpush.bf16.msra.mxu0 %v1059
      %1237 = vmatpush.bf16.msra.mxu0 %v1058
      %1238 = vmatpush.bf16.msra.mxu0 %v1057
      %1239 = vmatpush.bf16.msra.mxu0 %v1056
      %1240 = vmatpush.bf16.msra.mxu0 %v1055
      %1241 = vmatpush.bf16.msra.mxu0 %v1054
      %1242 = vmatmul.bf16.gmra.mxu0 %v690
      %v1243 = vpop.f32.mrf.mxu0
      %v1244 = vadd.f32 %v1230, %v1243
      %v1245 = vpop.f32.mrf.mxu0
      %v1246 = vadd.f32 %v1232, %v1245
      %1247 = vdwg.mxu0
      %1248 = vmatpush.bf16.msra.mxu0 %v1069
      %1249 = vmatpush.bf16.msra.mxu0 %v1068
      %1250 = vmatpush.bf16.msra.mxu0 %v1067
      %1251 = vmatpush.bf16.msra.mxu0 %v1066
      %1252 = vmatpush.bf16.msra.mxu0 %v1065
      %1253 = vmatpush.bf16.msra.mxu0 %v1064
      %1254 = vmatpush.bf16.msra.mxu0 %v1063
      %1255 = vmatpush.bf16.msra.mxu0 %v1062
      %1256 = vmatmul.bf16.gmra.mxu0 %v706
      %v1257 = vpop.f32.mrf.mxu0
      %v1258 = vadd.f32 %v1244, %v1257
      %v1259 = vpop.f32.mrf.mxu0
      %v1260 = vadd.f32 %v1246, %v1259
      %1261 = vdwg.mxu0
      %1262 = vmatpush.bf16.msra.mxu0 %v1077
      %1263 = vmatpush.bf16.msra.mxu0 %v1076
      %1264 = vmatpush.bf16.msra.mxu0 %v1075
      %1265 = vmatpush.bf16.msra.mxu0 %v1074
      %1266 = vmatpush.bf16.msra.mxu0 %v1073
      %1267 = vmatpush.bf16.msra.mxu0 %v1072
      %1268 = vmatpush.bf16.msra.mxu0 %v1071
      %1269 = vmatpush.bf16.msra.mxu0 %v1070
      %1270 = vmatmul.bf16.gmra.mxu0 %v713
      %v1271 = vpop.f32.mrf.mxu0
      %v1272 = vadd.f32 %v1258, %v1271
      %v1273 = vpop.f32.mrf.mxu0
      %v1274 = vadd.f32 %v1260, %v1273
      %1275 = vdwg.mxu0
      %v1276 = vpack.c.bf16 %v1272, %v1272
      %v1277 = vpack.c.bf16 %v1274, %v1274
      %1278 = vst [vmem:[%s453] sm:$0xf] %v1276
      %1279 = vst [vmem:[%s453 + $0x4] sm:$0xf] %v1277
      %v1280 = vadd.f32 %v1272, %v1274
      %v1281 = vrot.slane %v1280, 4
      %v1282 = vadd.f32 %v1280, %v1281
      %v1283 = vrot.slane %v1282, 2
      %v1284 = vadd.f32 %v1282, %v1283
      %v1285 = vrot.slane %v1284, 1
      %v1286 = vadd.f32 %v1284, %v1285
      %v1287 = vadd.f32 %v1286, 0.0
      %v1288 = vmul.f32 %v1272, %v1272
      %v1289 = vmul.f32 %v1274, %v1274
      %v1290 = vadd.f32 %v1288, %v1289
      %v1291 = vrot.slane %v1290, 4
      %v1292 = vadd.f32 %v1290, %v1291
      %v1293 = vrot.slane %v1292, 2
      %v1294 = vadd.f32 %v1292, %v1293
      %v1295 = vrot.slane %v1294, 1
      %v1296 = vadd.f32 %v1294, %v1295
      %v1297 = vadd.f32 %v1296, 0.0
      %v1298 = vld [vmem:[%s616] sm:$0xf]
      %v1299 = vld [vmem:[%s616 + $0x4] sm:$0xf]
      %v1300 = vld [vmem:[%s616 + $0x8] sm:$0x1]
      %v1301 = vld [vmem:[%s616] sm:$0xe]
      %v1302 = vld [vmem:[%s621] sm:$0xf]
      %v1303 = vld [vmem:[%s621 + $0x4] sm:$0xf]
      %v1304 = vld [vmem:[%s621 + $0x8] sm:$0x1]
      %v1305 = vld [vmem:[%s621] sm:$0xe]
      %s1306 = scalar_lea.vmem %s411, 36
      %v1307 = vld [vmem:[%s1306] sm:$0xf]
      %v1308 = vld [vmem:[%s1306 + $0x4] sm:$0xf]
      %v1309 = vld [vmem:[%s1306 + $0x8] sm:$0x1]
      %v1310 = vld [vmem:[%s1306] sm:$0xe]
      %v1313 = vunpack.c.l.b16 %v1298
      %v1314 = vunpack.c.l.b16 %v1299
      %v1315 = vpack.c.b16 %v1314, %v1313
      %v1318 = vunpack.c.l.b16 %v1300
      %v1319 = vpack.c.b16 %v1318, %v1318
      %v1321 = vshrl.u32 %v1315, 16
      %v1323 = vshll.u32 %v1315, 16
      %v1325 = vrot.slane %v1323, 1
      %v1326 = vor.u32 %v1321, %v1325
      %v1328 = vshll.u32 %v1319, 16
      %v1330 = vrot.slane %v1328, 1
      %v1331 = vsel %vm635, %v1326, %v1330
      %v1334 = vunpack.c.l.b16 %v1301
      %v1335 = vpack.c.b16 %v1314, %v1334
      %v1336 = vrot.slane %v1335, 1
      %v1337 = vrot.slane %v1319, 1
      %v1338 = vsel %vm652, %v1336, %v1337
      %v1342 = vunpack.c.l.b16 %v1302
      %v1343 = vunpack.c.l.b16 %v1303
      %v1344 = vpack.c.b16 %v1343, %v1342
      %v1347 = vunpack.c.l.b16 %v1304
      %v1348 = vpack.c.b16 %v1347, %v1347
      %v1350 = vshrl.u32 %v1344, 16
      %v1352 = vshll.u32 %v1344, 16
      %v1354 = vrot.slane %v1352, 1
      %v1355 = vor.u32 %v1350, %v1354
      %v1357 = vshll.u32 %v1348, 16
      %v1359 = vrot.slane %v1357, 1
      %v1360 = vsel %vm635, %v1355, %v1359
      %v1363 = vunpack.c.l.b16 %v1305
      %v1364 = vpack.c.b16 %v1343, %v1363
      %v1365 = vrot.slane %v1364, 1
      %v1366 = vrot.slane %v1348, 1
      %v1367 = vsel %vm652, %v1365, %v1366
      %v1371 = vunpack.c.l.b16 %v1307
      %v1372 = vunpack.c.l.b16 %v1308
      %v1373 = vpack.c.b16 %v1372, %v1371
      %v1376 = vunpack.c.l.b16 %v1309
      %v1377 = vpack.c.b16 %v1376, %v1376
      %v1379 = vshrl.u32 %v1373, 16
      %v1381 = vshll.u32 %v1373, 16
      %v1383 = vrot.slane %v1381, 1
      %v1384 = vor.u32 %v1379, %v1383
      %v1386 = vshll.u32 %v1377, 16
      %v1388 = vrot.slane %v1386, 1
      %v1389 = vsel %vm635, %v1384, %v1388
      %v1392 = vunpack.c.l.b16 %v1310
      %v1393 = vpack.c.b16 %v1372, %v1392
      %v1394 = vrot.slane %v1393, 1
      %v1395 = vrot.slane %v1377, 1
      %v1396 = vsel %vm652, %v1394, %v1395
      %1398 = vmatpush.bf16.msra.mxu0 %v1013
      %1399 = vmatpush.bf16.msra.mxu0 %v1012
      %1400 = vmatpush.bf16.msra.mxu0 %v1011
      %1401 = vmatpush.bf16.msra.mxu0 %v1010
      %1402 = vmatpush.bf16.msra.mxu0 %v1009
      %1403 = vmatpush.bf16.msra.mxu0 %v1008
      %1404 = vmatpush.bf16.msra.mxu0 %v1007
      %1405 = vmatpush.bf16.msra.mxu0 %v1006
      %1406 = vmatmul.bf16.gmra.mxu0 %v1315
      %v1407 = vpop.f32.mrf.mxu0
      %v1408 = vadd.f32 %v716, %v1407
      %v1409 = vpop.f32.mrf.mxu0
      %v1410 = vadd.f32 %v716, %v1409
      %1411 = vdwg.mxu0
      %1412 = vmatpush.bf16.msra.mxu0 %v1021
      %1413 = vmatpush.bf16.msra.mxu0 %v1020
      %1414 = vmatpush.bf16.msra.mxu0 %v1019
      %1415 = vmatpush.bf16.msra.mxu0 %v1018
      %1416 = vmatpush.bf16.msra.mxu0 %v1017
      %1417 = vmatpush.bf16.msra.mxu0 %v1016
      %1418 = vmatpush.bf16.msra.mxu0 %v1015
      %1419 = vmatpush.bf16.msra.mxu0 %v1014
      %1420 = vmatmul.bf16.gmra.mxu0 %v1331
      %v1421 = vpop.f32.mrf.mxu0
      %v1422 = vadd.f32 %v1408, %v1421
      %v1423 = vpop.f32.mrf.mxu0
      %v1424 = vadd.f32 %v1410, %v1423
      %1425 = vdwg.mxu0
      %1426 = vmatpush.bf16.msra.mxu0 %v1029
      %1427 = vmatpush.bf16.msra.mxu0 %v1028
      %1428 = vmatpush.bf16.msra.mxu0 %v1027
      %1429 = vmatpush.bf16.msra.mxu0 %v1026
      %1430 = vmatpush.bf16.msra.mxu0 %v1025
      %1431 = vmatpush.bf16.msra.mxu0 %v1024
      %1432 = vmatpush.bf16.msra.mxu0 %v1023
      %1433 = vmatpush.bf16.msra.mxu0 %v1022
      %1434 = vmatmul.bf16.gmra.mxu0 %v1338
      %v1435 = vpop.f32.mrf.mxu0
      %v1436 = vadd.f32 %v1422, %v1435
      %v1437 = vpop.f32.mrf.mxu0
      %v1438 = vadd.f32 %v1424, %v1437
      %1439 = vdwg.mxu0
      %1440 = vmatpush.bf16.msra.mxu0 %v1037
      %1441 = vmatpush.bf16.msra.mxu0 %v1036
      %1442 = vmatpush.bf16.msra.mxu0 %v1035
      %1443 = vmatpush.bf16.msra.mxu0 %v1034
      %1444 = vmatpush.bf16.msra.mxu0 %v1033
      %1445 = vmatpush.bf16.msra.mxu0 %v1032
      %1446 = vmatpush.bf16.msra.mxu0 %v1031
      %1447 = vmatpush.bf16.msra.mxu0 %v1030
      %1448 = vmatmul.bf16.gmra.mxu0 %v1344
      %v1449 = vpop.f32.mrf.mxu0
      %v1450 = vadd.f32 %v1436, %v1449
      %v1451 = vpop.f32.mrf.mxu0
      %v1452 = vadd.f32 %v1438, %v1451
      %1453 = vdwg.mxu0
      %1454 = vmatpush.bf16.msra.mxu0 %v1045
      %1455 = vmatpush.bf16.msra.mxu0 %v1044
      %1456 = vmatpush.bf16.msra.mxu0 %v1043
      %1457 = vmatpush.bf16.msra.mxu0 %v1042
      %1458 = vmatpush.bf16.msra.mxu0 %v1041
      %1459 = vmatpush.bf16.msra.mxu0 %v1040
      %1460 = vmatpush.bf16.msra.mxu0 %v1039
      %1461 = vmatpush.bf16.msra.mxu0 %v1038
      %1462 = vmatmul.bf16.gmra.mxu0 %v1360
      %v1463 = vpop.f32.mrf.mxu0
      %v1464 = vadd.f32 %v1450, %v1463
      %v1465 = vpop.f32.mrf.mxu0
      %v1466 = vadd.f32 %v1452, %v1465
      %1467 = vdwg.mxu0
      %1468 = vmatpush.bf16.msra.mxu0 %v1053
      %1469 = vmatpush.bf16.msra.mxu0 %v1052
      %1470 = vmatpush.bf16.msra.mxu0 %v1051
      %1471 = vmatpush.bf16.msra.mxu0 %v1050
      %1472 = vmatpush.bf16.msra.mxu0 %v1049
      %1473 = vmatpush.bf16.msra.mxu0 %v1048
      %1474 = vmatpush.bf16.msra.mxu0 %v1047
      %1475 = vmatpush.bf16.msra.mxu0 %v1046
      %1476 = vmatmul.bf16.gmra.mxu0 %v1367
      %v1477 = vpop.f32.mrf.mxu0
      %v1478 = vadd.f32 %v1464, %v1477
      %v1479 = vpop.f32.mrf.mxu0
      %v1480 = vadd.f32 %v1466, %v1479
      %1481 = vdwg.mxu0
      %1482 = vmatpush.bf16.msra.mxu0 %v1061
      %1483 = vmatpush.bf16.msra.mxu0 %v1060
      %1484 = vmatpush.bf16.msra.mxu0 %v1059
      %1485 = vmatpush.bf16.msra.mxu0 %v1058
      %1486 = vmatpush.bf16.msra.mxu0 %v1057
      %1487 = vmatpush.bf16.msra.mxu0 %v1056
      %1488 = vmatpush.bf16.msra.mxu0 %v1055
      %1489 = vmatpush.bf16.msra.mxu0 %v1054
      %1490 = vmatmul.bf16.gmra.mxu0 %v1373
      %v1491 = vpop.f32.mrf.mxu0
      %v1492 = vadd.f32 %v1478, %v1491
      %v1493 = vpop.f32.mrf.mxu0
      %v1494 = vadd.f32 %v1480, %v1493
      %1495 = vdwg.mxu0
      %1496 = vmatpush.bf16.msra.mxu0 %v1069
      %1497 = vmatpush.bf16.msra.mxu0 %v1068
      %1498 = vmatpush.bf16.msra.mxu0 %v1067
      %1499 = vmatpush.bf16.msra.mxu0 %v1066
      %1500 = vmatpush.bf16.msra.mxu0 %v1065
      %1501 = vmatpush.bf16.msra.mxu0 %v1064
      %1502 = vmatpush.bf16.msra.mxu0 %v1063
      %1503 = vmatpush.bf16.msra.mxu0 %v1062
      %1504 = vmatmul.bf16.gmra.mxu0 %v1389
      %v1505 = vpop.f32.mrf.mxu0
      %v1506 = vadd.f32 %v1492, %v1505
      %v1507 = vpop.f32.mrf.mxu0
      %v1508 = vadd.f32 %v1494, %v1507
      %1509 = vdwg.mxu0
      %1510 = vmatpush.bf16.msra.mxu0 %v1077
      %1511 = vmatpush.bf16.msra.mxu0 %v1076
      %1512 = vmatpush.bf16.msra.mxu0 %v1075
      %1513 = vmatpush.bf16.msra.mxu0 %v1074
      %1514 = vmatpush.bf16.msra.mxu0 %v1073
      %1515 = vmatpush.bf16.msra.mxu0 %v1072
      %1516 = vmatpush.bf16.msra.mxu0 %v1071
      %1517 = vmatpush.bf16.msra.mxu0 %v1070
      %1518 = vmatmul.bf16.gmra.mxu0 %v1396
      %v1519 = vpop.f32.mrf.mxu0
      %v1520 = vadd.f32 %v1506, %v1519
      %v1521 = vpop.f32.mrf.mxu0
      %v1522 = vadd.f32 %v1508, %v1521
      %1523 = vdwg.mxu0
      %v1524 = vpack.c.bf16 %v1520, %v1520
      %v1525 = vpack.c.bf16 %v1522, %v1522
      %s1526 = scalar_lea.vmem %s453, 8
      %1527 = vst [vmem:[%s1526] sm:$0xf] %v1524
      %1528 = vst [vmem:[%s1526 + $0x4] sm:$0xf] %v1525
      %v1529 = vadd.f32 %v1520, %v1522
      %v1530 = vrot.slane %v1529, 4
      %v1531 = vadd.f32 %v1529, %v1530
      %v1532 = vrot.slane %v1531, 2
      %v1533 = vadd.f32 %v1531, %v1532
      %v1534 = vrot.slane %v1533, 1
      %v1535 = vadd.f32 %v1533, %v1534
      %v1536 = vadd.f32 %v1287, %v1535
      %v1537 = vmul.f32 %v1520, %v1520
      %v1538 = vmul.f32 %v1522, %v1522
      %v1539 = vadd.f32 %v1537, %v1538
      %v1540 = vrot.slane %v1539, 4
      %v1541 = vadd.f32 %v1539, %v1540
      %v1542 = vrot.slane %v1541, 2
      %v1543 = vadd.f32 %v1541, %v1542
      %v1544 = vrot.slane %v1543, 1
      %v1545 = vadd.f32 %v1543, %v1544
      %v1546 = vadd.f32 %v1297, %v1545
      %v1547 = vld [vmem:[%s621] sm:$0xf]
      %v1548 = vld [vmem:[%s621 + $0x4] sm:$0xf]
      %v1549 = vld [vmem:[%s621 + $0x8] sm:$0x1]
      %v1550 = vld [vmem:[%s621] sm:$0xe]
      %v1551 = vld [vmem:[%s1306] sm:$0xf]
      %v1552 = vld [vmem:[%s1306 + $0x4] sm:$0xf]
      %v1553 = vld [vmem:[%s1306 + $0x8] sm:$0x1]
      %v1554 = vld [vmem:[%s1306] sm:$0xe]
      %s1555 = scalar_lea.vmem %s411, 48
      %v1556 = vld [vmem:[%s1555] sm:$0xf]
      %v1557 = vld [vmem:[%s1555 + $0x4] sm:$0xf]
      %v1558 = vld [vmem:[%s1555 + $0x8] sm:$0x1]
      %v1559 = vld [vmem:[%s1555] sm:$0xe]
      %v1562 = vunpack.c.l.b16 %v1547
      %v1563 = vunpack.c.l.b16 %v1548
      %v1564 = vpack.c.b16 %v1563, %v1562
      %v1567 = vunpack.c.l.b16 %v1549
      %v1568 = vpack.c.b16 %v1567, %v1567
      %v1570 = vshrl.u32 %v1564, 16
      %v1572 = vshll.u32 %v1564, 16
      %v1574 = vrot.slane %v1572, 1
      %v1575 = vor.u32 %v1570, %v1574
      %v1577 = vshll.u32 %v1568, 16
      %v1579 = vrot.slane %v1577, 1
      %v1580 = vsel %vm635, %v1575, %v1579
      %v1583 = vunpack.c.l.b16 %v1550
      %v1584 = vpack.c.b16 %v1563, %v1583
      %v1585 = vrot.slane %v1584, 1
      %v1586 = vrot.slane %v1568, 1
      %v1587 = vsel %vm652, %v1585, %v1586
      %v1591 = vunpack.c.l.b16 %v1551
      %v1592 = vunpack.c.l.b16 %v1552
      %v1593 = vpack.c.b16 %v1592, %v1591
      %v1596 = vunpack.c.l.b16 %v1553
      %v1597 = vpack.c.b16 %v1596, %v1596
      %v1599 = vshrl.u32 %v1593, 16
      %v1601 = vshll.u32 %v1593, 16
      %v1603 = vrot.slane %v1601, 1
      %v1604 = vor.u32 %v1599, %v1603
      %v1606 = vshll.u32 %v1597, 16
      %v1608 = vrot.slane %v1606, 1
      %v1609 = vsel %vm635, %v1604, %v1608
      %v1612 = vunpack.c.l.b16 %v1554
      %v1613 = vpack.c.b16 %v1592, %v1612
      %v1614 = vrot.slane %v1613, 1
      %v1615 = vrot.slane %v1597, 1
      %v1616 = vsel %vm652, %v1614, %v1615
      %v1620 = vunpack.c.l.b16 %v1556
      %v1621 = vunpack.c.l.b16 %v1557
      %v1622 = vpack.c.b16 %v1621, %v1620
      %v1625 = vunpack.c.l.b16 %v1558
      %v1626 = vpack.c.b16 %v1625, %v1625
      %v1628 = vshrl.u32 %v1622, 16
      %v1630 = vshll.u32 %v1622, 16
      %v1632 = vrot.slane %v1630, 1
      %v1633 = vor.u32 %v1628, %v1632
      %v1635 = vshll.u32 %v1626, 16
      %v1637 = vrot.slane %v1635, 1
      %v1638 = vsel %vm635, %v1633, %v1637
      %v1641 = vunpack.c.l.b16 %v1559
      %v1642 = vpack.c.b16 %v1621, %v1641
      %v1643 = vrot.slane %v1642, 1
      %v1644 = vrot.slane %v1626, 1
      %v1645 = vsel %vm652, %v1643, %v1644
      %1647 = vmatpush.bf16.msra.mxu0 %v1013
      %1648 = vmatpush.bf16.msra.mxu0 %v1012
      %1649 = vmatpush.bf16.msra.mxu0 %v1011
      %1650 = vmatpush.bf16.msra.mxu0 %v1010
      %1651 = vmatpush.bf16.msra.mxu0 %v1009
      %1652 = vmatpush.bf16.msra.mxu0 %v1008
      %1653 = vmatpush.bf16.msra.mxu0 %v1007
      %1654 = vmatpush.bf16.msra.mxu0 %v1006
      %1655 = vmatmul.bf16.gmra.mxu0 %v1564
      %v1656 = vpop.f32.mrf.mxu0
      %v1657 = vadd.f32 %v716, %v1656
      %v1658 = vpop.f32.mrf.mxu0
      %v1659 = vadd.f32 %v716, %v1658
      %1660 = vdwg.mxu0
      %1661 = vmatpush.bf16.msra.mxu0 %v1021
      %1662 = vmatpush.bf16.msra.mxu0 %v1020
      %1663 = vmatpush.bf16.msra.mxu0 %v1019
      %1664 = vmatpush.bf16.msra.mxu0 %v1018
      %1665 = vmatpush.bf16.msra.mxu0 %v1017
      %1666 = vmatpush.bf16.msra.mxu0 %v1016
      %1667 = vmatpush.bf16.msra.mxu0 %v1015
      %1668 = vmatpush.bf16.msra.mxu0 %v1014
      %1669 = vmatmul.bf16.gmra.mxu0 %v1580
      %v1670 = vpop.f32.mrf.mxu0
      %v1671 = vadd.f32 %v1657, %v1670
      %v1672 = vpop.f32.mrf.mxu0
      %v1673 = vadd.f32 %v1659, %v1672
      %1674 = vdwg.mxu0
      %1675 = vmatpush.bf16.msra.mxu0 %v1029
      %1676 = vmatpush.bf16.msra.mxu0 %v1028
      %1677 = vmatpush.bf16.msra.mxu0 %v1027
      %1678 = vmatpush.bf16.msra.mxu0 %v1026
      %1679 = vmatpush.bf16.msra.mxu0 %v1025
      %1680 = vmatpush.bf16.msra.mxu0 %v1024
      %1681 = vmatpush.bf16.msra.mxu0 %v1023
      %1682 = vmatpush.bf16.msra.mxu0 %v1022
      %1683 = vmatmul.bf16.gmra.mxu0 %v1587
      %v1684 = vpop.f32.mrf.mxu0
      %v1685 = vadd.f32 %v1671, %v1684
      %v1686 = vpop.f32.mrf.mxu0
      %v1687 = vadd.f32 %v1673, %v1686
      %1688 = vdwg.mxu0
      %1689 = vmatpush.bf16.msra.mxu0 %v1037
      %1690 = vmatpush.bf16.msra.mxu0 %v1036
      %1691 = vmatpush.bf16.msra.mxu0 %v1035
      %1692 = vmatpush.bf16.msra.mxu0 %v1034
      %1693 = vmatpush.bf16.msra.mxu0 %v1033
      %1694 = vmatpush.bf16.msra.mxu0 %v1032
      %1695 = vmatpush.bf16.msra.mxu0 %v1031
      %1696 = vmatpush.bf16.msra.mxu0 %v1030
      %1697 = vmatmul.bf16.gmra.mxu0 %v1593
      %v1698 = vpop.f32.mrf.mxu0
      %v1699 = vadd.f32 %v1685, %v1698
      %v1700 = vpop.f32.mrf.mxu0
      %v1701 = vadd.f32 %v1687, %v1700
      %1702 = vdwg.mxu0
      %1703 = vmatpush.bf16.msra.mxu0 %v1045
      %1704 = vmatpush.bf16.msra.mxu0 %v1044
      %1705 = vmatpush.bf16.msra.mxu0 %v1043
      %1706 = vmatpush.bf16.msra.mxu0 %v1042
      %1707 = vmatpush.bf16.msra.mxu0 %v1041
      %1708 = vmatpush.bf16.msra.mxu0 %v1040
      %1709 = vmatpush.bf16.msra.mxu0 %v1039
      %1710 = vmatpush.bf16.msra.mxu0 %v1038
      %1711 = vmatmul.bf16.gmra.mxu0 %v1609
      %v1712 = vpop.f32.mrf.mxu0
      %v1713 = vadd.f32 %v1699, %v1712
      %v1714 = vpop.f32.mrf.mxu0
      %v1715 = vadd.f32 %v1701, %v1714
      %1716 = vdwg.mxu0
      %1717 = vmatpush.bf16.msra.mxu0 %v1053
      %1718 = vmatpush.bf16.msra.mxu0 %v1052
      %1719 = vmatpush.bf16.msra.mxu0 %v1051
      %1720 = vmatpush.bf16.msra.mxu0 %v1050
      %1721 = vmatpush.bf16.msra.mxu0 %v1049
      %1722 = vmatpush.bf16.msra.mxu0 %v1048
      %1723 = vmatpush.bf16.msra.mxu0 %v1047
      %1724 = vmatpush.bf16.msra.mxu0 %v1046
      %1725 = vmatmul.bf16.gmra.mxu0 %v1616
      %v1726 = vpop.f32.mrf.mxu0
      %v1727 = vadd.f32 %v1713, %v1726
      %v1728 = vpop.f32.mrf.mxu0
      %v1729 = vadd.f32 %v1715, %v1728
      %1730 = vdwg.mxu0
      %1731 = vmatpush.bf16.msra.mxu0 %v1061
      %1732 = vmatpush.bf16.msra.mxu0 %v1060
      %1733 = vmatpush.bf16.msra.mxu0 %v1059
      %1734 = vmatpush.bf16.msra.mxu0 %v1058
      %1735 = vmatpush.bf16.msra.mxu0 %v1057
      %1736 = vmatpush.bf16.msra.mxu0 %v1056
      %1737 = vmatpush.bf16.msra.mxu0 %v1055
      %1738 = vmatpush.bf16.msra.mxu0 %v1054
      %1739 = vmatmul.bf16.gmra.mxu0 %v1622
      %v1740 = vpop.f32.mrf.mxu0
      %v1741 = vadd.f32 %v1727, %v1740
      %v1742 = vpop.f32.mrf.mxu0
      %v1743 = vadd.f32 %v1729, %v1742
      %1744 = vdwg.mxu0
      %1745 = vmatpush.bf16.msra.mxu0 %v1069
      %1746 = vmatpush.bf16.msra.mxu0 %v1068
      %1747 = vmatpush.bf16.msra.mxu0 %v1067
      %1748 = vmatpush.bf16.msra.mxu0 %v1066
      %1749 = vmatpush.bf16.msra.mxu0 %v1065
      %1750 = vmatpush.bf16.msra.mxu0 %v1064
      %1751 = vmatpush.bf16.msra.mxu0 %v1063
      %1752 = vmatpush.bf16.msra.mxu0 %v1062
      %1753 = vmatmul.bf16.gmra.mxu0 %v1638
      %v1754 = vpop.f32.mrf.mxu0
      %v1755 = vadd.f32 %v1741, %v1754
      %v1756 = vpop.f32.mrf.mxu0
      %v1757 = vadd.f32 %v1743, %v1756
      %1758 = vdwg.mxu0
      %1759 = vmatpush.bf16.msra.mxu0 %v1077
      %1760 = vmatpush.bf16.msra.mxu0 %v1076
      %1761 = vmatpush.bf16.msra.mxu0 %v1075
      %1762 = vmatpush.bf16.msra.mxu0 %v1074
      %1763 = vmatpush.bf16.msra.mxu0 %v1073
      %1764 = vmatpush.bf16.msra.mxu0 %v1072
      %1765 = vmatpush.bf16.msra.mxu0 %v1071
      %1766 = vmatpush.bf16.msra.mxu0 %v1070
      %1767 = vmatmul.bf16.gmra.mxu0 %v1645
      %v1768 = vpop.f32.mrf.mxu0
      %v1769 = vadd.f32 %v1755, %v1768
      %v1770 = vpop.f32.mrf.mxu0
      %v1771 = vadd.f32 %v1757, %v1770
      %1772 = vdwg.mxu0
      %v1773 = vpack.c.bf16 %v1769, %v1769
      %v1774 = vpack.c.bf16 %v1771, %v1771
      %s1775 = scalar_lea.vmem %s453, 16
      %1776 = vst [vmem:[%s1775] sm:$0xf] %v1773
      %1777 = vst [vmem:[%s1775 + $0x4] sm:$0xf] %v1774
      %v1778 = vadd.f32 %v1769, %v1771
      %v1779 = vrot.slane %v1778, 4
      %v1780 = vadd.f32 %v1778, %v1779
      %v1781 = vrot.slane %v1780, 2
      %v1782 = vadd.f32 %v1780, %v1781
      %v1783 = vrot.slane %v1782, 1
      %v1784 = vadd.f32 %v1782, %v1783
      %v1785 = vadd.f32 %v1536, %v1784
      %v1786 = vmul.f32 %v1769, %v1769
      %v1787 = vmul.f32 %v1771, %v1771
      %v1788 = vadd.f32 %v1786, %v1787
      %v1789 = vrot.slane %v1788, 4
      %v1790 = vadd.f32 %v1788, %v1789
      %v1791 = vrot.slane %v1790, 2
      %v1792 = vadd.f32 %v1790, %v1791
      %v1793 = vrot.slane %v1792, 1
      %v1794 = vadd.f32 %v1792, %v1793
      %v1795 = vadd.f32 %v1546, %v1794
      %v1796 = vld [vmem:[%s1306] sm:$0xf]
      %v1797 = vld [vmem:[%s1306 + $0x4] sm:$0xf]
      %v1798 = vld [vmem:[%s1306 + $0x8] sm:$0x1]
      %v1799 = vld [vmem:[%s1306] sm:$0xe]
      %v1800 = vld [vmem:[%s1555] sm:$0xf]
      %v1801 = vld [vmem:[%s1555 + $0x4] sm:$0xf]
      %v1802 = vld [vmem:[%s1555 + $0x8] sm:$0x1]
      %v1803 = vld [vmem:[%s1555] sm:$0xe]
      %s1804 = scalar_lea.vmem %s411, 60
      %v1805 = vld [vmem:[%s1804] sm:$0xf]
      %v1806 = vld [vmem:[%s1804 + $0x4] sm:$0xf]
      %v1807 = vld [vmem:[%s1804 + $0x8] sm:$0x1]
      %v1808 = vld [vmem:[%s1804] sm:$0xe]
      %v1811 = vunpack.c.l.b16 %v1796
      %v1812 = vunpack.c.l.b16 %v1797
      %v1813 = vpack.c.b16 %v1812, %v1811
      %v1816 = vunpack.c.l.b16 %v1798
      %v1817 = vpack.c.b16 %v1816, %v1816
      %v1819 = vshrl.u32 %v1813, 16
      %v1821 = vshll.u32 %v1813, 16
      %v1823 = vrot.slane %v1821, 1
      %v1824 = vor.u32 %v1819, %v1823
      %v1826 = vshll.u32 %v1817, 16
      %v1828 = vrot.slane %v1826, 1
      %v1829 = vsel %vm635, %v1824, %v1828
      %v1832 = vunpack.c.l.b16 %v1799
      %v1833 = vpack.c.b16 %v1812, %v1832
      %v1834 = vrot.slane %v1833, 1
      %v1835 = vrot.slane %v1817, 1
      %v1836 = vsel %vm652, %v1834, %v1835
      %v1840 = vunpack.c.l.b16 %v1800
      %v1841 = vunpack.c.l.b16 %v1801
      %v1842 = vpack.c.b16 %v1841, %v1840
      %v1845 = vunpack.c.l.b16 %v1802
      %v1846 = vpack.c.b16 %v1845, %v1845
      %v1848 = vshrl.u32 %v1842, 16
      %v1850 = vshll.u32 %v1842, 16
      %v1852 = vrot.slane %v1850, 1
      %v1853 = vor.u32 %v1848, %v1852
      %v1855 = vshll.u32 %v1846, 16
      %v1857 = vrot.slane %v1855, 1
      %v1858 = vsel %vm635, %v1853, %v1857
      %v1861 = vunpack.c.l.b16 %v1803
      %v1862 = vpack.c.b16 %v1841, %v1861
      %v1863 = vrot.slane %v1862, 1
      %v1864 = vrot.slane %v1846, 1
      %v1865 = vsel %vm652, %v1863, %v1864
      %v1869 = vunpack.c.l.b16 %v1805
      %v1870 = vunpack.c.l.b16 %v1806
      %v1871 = vpack.c.b16 %v1870, %v1869
      %v1874 = vunpack.c.l.b16 %v1807
      %v1875 = vpack.c.b16 %v1874, %v1874
      %v1877 = vshrl.u32 %v1871, 16
      %v1879 = vshll.u32 %v1871, 16
      %v1881 = vrot.slane %v1879, 1
      %v1882 = vor.u32 %v1877, %v1881
      %v1884 = vshll.u32 %v1875, 16
      %v1886 = vrot.slane %v1884, 1
      %v1887 = vsel %vm635, %v1882, %v1886
      %v1890 = vunpack.c.l.b16 %v1808
      %v1891 = vpack.c.b16 %v1870, %v1890
      %v1892 = vrot.slane %v1891, 1
      %v1893 = vrot.slane %v1875, 1
      %v1894 = vsel %vm652, %v1892, %v1893
      %1896 = vmatpush.bf16.msra.mxu0 %v1013
      %1897 = vmatpush.bf16.msra.mxu0 %v1012
      %1898 = vmatpush.bf16.msra.mxu0 %v1011
      %1899 = vmatpush.bf16.msra.mxu0 %v1010
      %1900 = vmatpush.bf16.msra.mxu0 %v1009
      %1901 = vmatpush.bf16.msra.mxu0 %v1008
      %1902 = vmatpush.bf16.msra.mxu0 %v1007
      %1903 = vmatpush.bf16.msra.mxu0 %v1006
      %1904 = vmatmul.bf16.gmra.mxu0 %v1813
      %v1905 = vpop.f32.mrf.mxu0
      %v1906 = vadd.f32 %v716, %v1905
      %v1907 = vpop.f32.mrf.mxu0
      %v1908 = vadd.f32 %v716, %v1907
      %1909 = vdwg.mxu0
      %1910 = vmatpush.bf16.msra.mxu0 %v1021
      %1911 = vmatpush.bf16.msra.mxu0 %v1020
      %1912 = vmatpush.bf16.msra.mxu0 %v1019
      %1913 = vmatpush.bf16.msra.mxu0 %v1018
      %1914 = vmatpush.bf16.msra.mxu0 %v1017
      %1915 = vmatpush.bf16.msra.mxu0 %v1016
      %1916 = vmatpush.bf16.msra.mxu0 %v1015
      %1917 = vmatpush.bf16.msra.mxu0 %v1014
      %1918 = vmatmul.bf16.gmra.mxu0 %v1829
      %v1919 = vpop.f32.mrf.mxu0
      %v1920 = vadd.f32 %v1906, %v1919
      %v1921 = vpop.f32.mrf.mxu0
      %v1922 = vadd.f32 %v1908, %v1921
      %1923 = vdwg.mxu0
      %1924 = vmatpush.bf16.msra.mxu0 %v1029
      %1925 = vmatpush.bf16.msra.mxu0 %v1028
      %1926 = vmatpush.bf16.msra.mxu0 %v1027
      %1927 = vmatpush.bf16.msra.mxu0 %v1026
      %1928 = vmatpush.bf16.msra.mxu0 %v1025
      %1929 = vmatpush.bf16.msra.mxu0 %v1024
      %1930 = vmatpush.bf16.msra.mxu0 %v1023
      %1931 = vmatpush.bf16.msra.mxu0 %v1022
      %1932 = vmatmul.bf16.gmra.mxu0 %v1836
      %v1933 = vpop.f32.mrf.mxu0
      %v1934 = vadd.f32 %v1920, %v1933
      %v1935 = vpop.f32.mrf.mxu0
      %v1936 = vadd.f32 %v1922, %v1935
      %1937 = vdwg.mxu0
      %1938 = vmatpush.bf16.msra.mxu0 %v1037
      %1939 = vmatpush.bf16.msra.mxu0 %v1036
      %1940 = vmatpush.bf16.msra.mxu0 %v1035
      %1941 = vmatpush.bf16.msra.mxu0 %v1034
      %1942 = vmatpush.bf16.msra.mxu0 %v1033
      %1943 = vmatpush.bf16.msra.mxu0 %v1032
      %1944 = vmatpush.bf16.msra.mxu0 %v1031
      %1945 = vmatpush.bf16.msra.mxu0 %v1030
      %1946 = vmatmul.bf16.gmra.mxu0 %v1842
      %v1947 = vpop.f32.mrf.mxu0
      %v1948 = vadd.f32 %v1934, %v1947
      %v1949 = vpop.f32.mrf.mxu0
      %v1950 = vadd.f32 %v1936, %v1949
      %1951 = vdwg.mxu0
      %1952 = vmatpush.bf16.msra.mxu0 %v1045
      %1953 = vmatpush.bf16.msra.mxu0 %v1044
      %1954 = vmatpush.bf16.msra.mxu0 %v1043
      %1955 = vmatpush.bf16.msra.mxu0 %v1042
      %1956 = vmatpush.bf16.msra.mxu0 %v1041
      %1957 = vmatpush.bf16.msra.mxu0 %v1040
      %1958 = vmatpush.bf16.msra.mxu0 %v1039
      %1959 = vmatpush.bf16.msra.mxu0 %v1038
      %1960 = vmatmul.bf16.gmra.mxu0 %v1858
      %v1961 = vpop.f32.mrf.mxu0
      %v1962 = vadd.f32 %v1948, %v1961
      %v1963 = vpop.f32.mrf.mxu0
      %v1964 = vadd.f32 %v1950, %v1963
      %1965 = vdwg.mxu0
      %1966 = vmatpush.bf16.msra.mxu0 %v1053
      %1967 = vmatpush.bf16.msra.mxu0 %v1052
      %1968 = vmatpush.bf16.msra.mxu0 %v1051
      %1969 = vmatpush.bf16.msra.mxu0 %v1050
      %1970 = vmatpush.bf16.msra.mxu0 %v1049
      %1971 = vmatpush.bf16.msra.mxu0 %v1048
      %1972 = vmatpush.bf16.msra.mxu0 %v1047
      %1973 = vmatpush.bf16.msra.mxu0 %v1046
      %1974 = vmatmul.bf16.gmra.mxu0 %v1865
      %v1975 = vpop.f32.mrf.mxu0
      %v1976 = vadd.f32 %v1962, %v1975
      %v1977 = vpop.f32.mrf.mxu0
      %v1978 = vadd.f32 %v1964, %v1977
      %1979 = vdwg.mxu0
      %1980 = vmatpush.bf16.msra.mxu0 %v1061
      %1981 = vmatpush.bf16.msra.mxu0 %v1060
      %1982 = vmatpush.bf16.msra.mxu0 %v1059
      %1983 = vmatpush.bf16.msra.mxu0 %v1058
      %1984 = vmatpush.bf16.msra.mxu0 %v1057
      %1985 = vmatpush.bf16.msra.mxu0 %v1056
      %1986 = vmatpush.bf16.msra.mxu0 %v1055
      %1987 = vmatpush.bf16.msra.mxu0 %v1054
      %1988 = vmatmul.bf16.gmra.mxu0 %v1871
      %v1989 = vpop.f32.mrf.mxu0
      %v1990 = vadd.f32 %v1976, %v1989
      %v1991 = vpop.f32.mrf.mxu0
      %v1992 = vadd.f32 %v1978, %v1991
      %1993 = vdwg.mxu0
      %1994 = vmatpush.bf16.msra.mxu0 %v1069
      %1995 = vmatpush.bf16.msra.mxu0 %v1068
      %1996 = vmatpush.bf16.msra.mxu0 %v1067
      %1997 = vmatpush.bf16.msra.mxu0 %v1066
      %1998 = vmatpush.bf16.msra.mxu0 %v1065
      %1999 = vmatpush.bf16.msra.mxu0 %v1064
      %2000 = vmatpush.bf16.msra.mxu0 %v1063
      %2001 = vmatpush.bf16.msra.mxu0 %v1062
      %2002 = vmatmul.bf16.gmra.mxu0 %v1887
      %v2003 = vpop.f32.mrf.mxu0
      %v2004 = vadd.f32 %v1990, %v2003
      %v2005 = vpop.f32.mrf.mxu0
      %v2006 = vadd.f32 %v1992, %v2005
      %2007 = vdwg.mxu0
      %2008 = vmatpush.bf16.msra.mxu0 %v1077
      %2009 = vmatpush.bf16.msra.mxu0 %v1076
      %2010 = vmatpush.bf16.msra.mxu0 %v1075
      %2011 = vmatpush.bf16.msra.mxu0 %v1074
      %2012 = vmatpush.bf16.msra.mxu0 %v1073
      %2013 = vmatpush.bf16.msra.mxu0 %v1072
      %2014 = vmatpush.bf16.msra.mxu0 %v1071
      %2015 = vmatpush.bf16.msra.mxu0 %v1070
      %2016 = vmatmul.bf16.gmra.mxu0 %v1894
      %v2017 = vpop.f32.mrf.mxu0
      %v2018 = vadd.f32 %v2004, %v2017
      %v2019 = vpop.f32.mrf.mxu0
      %v2020 = vadd.f32 %v2006, %v2019
      %2021 = vdwg.mxu0
      %v2022 = vpack.c.bf16 %v2018, %v2018
      %v2023 = vpack.c.bf16 %v2020, %v2020
      %s2024 = scalar_lea.vmem %s453, 24
      %2025 = vst [vmem:[%s2024] sm:$0xf] %v2022
      %2026 = vst [vmem:[%s2024 + $0x4] sm:$0xf] %v2023
      %v2027 = vadd.f32 %v2018, %v2020
      %v2028 = vrot.slane %v2027, 4
      %v2029 = vadd.f32 %v2027, %v2028
      %v2030 = vrot.slane %v2029, 2
      %v2031 = vadd.f32 %v2029, %v2030
      %v2032 = vrot.slane %v2031, 1
      %v2033 = vadd.f32 %v2031, %v2032
      %v2034 = vadd.f32 %v1785, %v2033
      %v2035 = vmul.f32 %v2018, %v2018
      %v2036 = vmul.f32 %v2020, %v2020
      %v2037 = vadd.f32 %v2035, %v2036
      %v2038 = vrot.slane %v2037, 4
      %v2039 = vadd.f32 %v2037, %v2038
      %v2040 = vrot.slane %v2039, 2
      %v2041 = vadd.f32 %v2039, %v2040
      %v2042 = vrot.slane %v2041, 1
      %v2043 = vadd.f32 %v2041, %v2042
      %v2044 = vadd.f32 %v1795, %v2043
      %v2045 = vld [vmem:[%s1555] sm:$0xf]
      %v2046 = vld [vmem:[%s1555 + $0x4] sm:$0xf]
      %v2047 = vld [vmem:[%s1555 + $0x8] sm:$0x1]
      %v2048 = vld [vmem:[%s1555] sm:$0xe]
      %v2049 = vld [vmem:[%s1804] sm:$0xf]
      %v2050 = vld [vmem:[%s1804 + $0x4] sm:$0xf]
      %v2051 = vld [vmem:[%s1804 + $0x8] sm:$0x1]
      %v2052 = vld [vmem:[%s1804] sm:$0xe]
      %s2053 = scalar_lea.vmem %s411, 72
      %v2054 = vld [vmem:[%s2053] sm:$0xf]
      %v2055 = vld [vmem:[%s2053 + $0x4] sm:$0xf]
      %v2056 = vld [vmem:[%s2053 + $0x8] sm:$0x1]
      %v2057 = vld [vmem:[%s2053] sm:$0xe]
      %v2060 = vunpack.c.l.b16 %v2045
      %v2061 = vunpack.c.l.b16 %v2046
      %v2062 = vpack.c.b16 %v2061, %v2060
      %v2065 = vunpack.c.l.b16 %v2047
      %v2066 = vpack.c.b16 %v2065, %v2065
      %v2068 = vshrl.u32 %v2062, 16
      %v2070 = vshll.u32 %v2062, 16
      %v2072 = vrot.slane %v2070, 1
      %v2073 = vor.u32 %v2068, %v2072
      %v2075 = vshll.u32 %v2066, 16
      %v2077 = vrot.slane %v2075, 1
      %v2078 = vsel %vm635, %v2073, %v2077
      %v2081 = vunpack.c.l.b16 %v2048
      %v2082 = vpack.c.b16 %v2061, %v2081
      %v2083 = vrot.slane %v2082, 1
      %v2084 = vrot.slane %v2066, 1
      %v2085 = vsel %vm652, %v2083, %v2084
      %v2089 = vunpack.c.l.b16 %v2049
      %v2090 = vunpack.c.l.b16 %v2050
      %v2091 = vpack.c.b16 %v2090, %v2089
      %v2094 = vunpack.c.l.b16 %v2051
      %v2095 = vpack.c.b16 %v2094, %v2094
      %v2097 = vshrl.u32 %v2091, 16
      %v2099 = vshll.u32 %v2091, 16
      %v2101 = vrot.slane %v2099, 1
      %v2102 = vor.u32 %v2097, %v2101
      %v2104 = vshll.u32 %v2095, 16
      %v2106 = vrot.slane %v2104, 1
      %v2107 = vsel %vm635, %v2102, %v2106
      %v2110 = vunpack.c.l.b16 %v2052
      %v2111 = vpack.c.b16 %v2090, %v2110
      %v2112 = vrot.slane %v2111, 1
      %v2113 = vrot.slane %v2095, 1
      %v2114 = vsel %vm652, %v2112, %v2113
      %v2118 = vunpack.c.l.b16 %v2054
      %v2119 = vunpack.c.l.b16 %v2055
      %v2120 = vpack.c.b16 %v2119, %v2118
      %v2123 = vunpack.c.l.b16 %v2056
      %v2124 = vpack.c.b16 %v2123, %v2123
      %v2126 = vshrl.u32 %v2120, 16
      %v2128 = vshll.u32 %v2120, 16
      %v2130 = vrot.slane %v2128, 1
      %v2131 = vor.u32 %v2126, %v2130
      %v2133 = vshll.u32 %v2124, 16
      %v2135 = vrot.slane %v2133, 1
      %v2136 = vsel %vm635, %v2131, %v2135
      %v2139 = vunpack.c.l.b16 %v2057
      %v2140 = vpack.c.b16 %v2119, %v2139
      %v2141 = vrot.slane %v2140, 1
      %v2142 = vrot.slane %v2124, 1
      %v2143 = vsel %vm652, %v2141, %v2142
      %2145 = vmatpush.bf16.msra.mxu0 %v1013
      %2146 = vmatpush.bf16.msra.mxu0 %v1012
      %2147 = vmatpush.bf16.msra.mxu0 %v1011
      %2148 = vmatpush.bf16.msra.mxu0 %v1010
      %2149 = vmatpush.bf16.msra.mxu0 %v1009
      %2150 = vmatpush.bf16.msra.mxu0 %v1008
      %2151 = vmatpush.bf16.msra.mxu0 %v1007
      %2152 = vmatpush.bf16.msra.mxu0 %v1006
      %2153 = vmatmul.bf16.gmra.mxu0 %v2062
      %v2154 = vpop.f32.mrf.mxu0
      %v2155 = vadd.f32 %v716, %v2154
      %v2156 = vpop.f32.mrf.mxu0
      %v2157 = vadd.f32 %v716, %v2156
      %2158 = vdwg.mxu0
      %2159 = vmatpush.bf16.msra.mxu0 %v1021
      %2160 = vmatpush.bf16.msra.mxu0 %v1020
      %2161 = vmatpush.bf16.msra.mxu0 %v1019
      %2162 = vmatpush.bf16.msra.mxu0 %v1018
      %2163 = vmatpush.bf16.msra.mxu0 %v1017
      %2164 = vmatpush.bf16.msra.mxu0 %v1016
      %2165 = vmatpush.bf16.msra.mxu0 %v1015
      %2166 = vmatpush.bf16.msra.mxu0 %v1014
      %2167 = vmatmul.bf16.gmra.mxu0 %v2078
      %v2168 = vpop.f32.mrf.mxu0
      %v2169 = vadd.f32 %v2155, %v2168
      %v2170 = vpop.f32.mrf.mxu0
      %v2171 = vadd.f32 %v2157, %v2170
      %2172 = vdwg.mxu0
      %2173 = vmatpush.bf16.msra.mxu0 %v1029
      %2174 = vmatpush.bf16.msra.mxu0 %v1028
      %2175 = vmatpush.bf16.msra.mxu0 %v1027
      %2176 = vmatpush.bf16.msra.mxu0 %v1026
      %2177 = vmatpush.bf16.msra.mxu0 %v1025
      %2178 = vmatpush.bf16.msra.mxu0 %v1024
      %2179 = vmatpush.bf16.msra.mxu0 %v1023
      %2180 = vmatpush.bf16.msra.mxu0 %v1022
      %2181 = vmatmul.bf16.gmra.mxu0 %v2085
      %v2182 = vpop.f32.mrf.mxu0
      %v2183 = vadd.f32 %v2169, %v2182
      %v2184 = vpop.f32.mrf.mxu0
      %v2185 = vadd.f32 %v2171, %v2184
      %2186 = vdwg.mxu0
      %2187 = vmatpush.bf16.msra.mxu0 %v1037
      %2188 = vmatpush.bf16.msra.mxu0 %v1036
      %2189 = vmatpush.bf16.msra.mxu0 %v1035
      %2190 = vmatpush.bf16.msra.mxu0 %v1034
      %2191 = vmatpush.bf16.msra.mxu0 %v1033
      %2192 = vmatpush.bf16.msra.mxu0 %v1032
      %2193 = vmatpush.bf16.msra.mxu0 %v1031
      %2194 = vmatpush.bf16.msra.mxu0 %v1030
      %2195 = vmatmul.bf16.gmra.mxu0 %v2091
      %v2196 = vpop.f32.mrf.mxu0
      %v2197 = vadd.f32 %v2183, %v2196
      %v2198 = vpop.f32.mrf.mxu0
      %v2199 = vadd.f32 %v2185, %v2198
      %2200 = vdwg.mxu0
      %2201 = vmatpush.bf16.msra.mxu0 %v1045
      %2202 = vmatpush.bf16.msra.mxu0 %v1044
      %2203 = vmatpush.bf16.msra.mxu0 %v1043
      %2204 = vmatpush.bf16.msra.mxu0 %v1042
      %2205 = vmatpush.bf16.msra.mxu0 %v1041
      %2206 = vmatpush.bf16.msra.mxu0 %v1040
      %2207 = vmatpush.bf16.msra.mxu0 %v1039
      %2208 = vmatpush.bf16.msra.mxu0 %v1038
      %2209 = vmatmul.bf16.gmra.mxu0 %v2107
      %v2210 = vpop.f32.mrf.mxu0
      %v2211 = vadd.f32 %v2197, %v2210
      %v2212 = vpop.f32.mrf.mxu0
      %v2213 = vadd.f32 %v2199, %v2212
      %2214 = vdwg.mxu0
      %2215 = vmatpush.bf16.msra.mxu0 %v1053
      %2216 = vmatpush.bf16.msra.mxu0 %v1052
      %2217 = vmatpush.bf16.msra.mxu0 %v1051
      %2218 = vmatpush.bf16.msra.mxu0 %v1050
      %2219 = vmatpush.bf16.msra.mxu0 %v1049
      %2220 = vmatpush.bf16.msra.mxu0 %v1048
      %2221 = vmatpush.bf16.msra.mxu0 %v1047
      %2222 = vmatpush.bf16.msra.mxu0 %v1046
      %2223 = vmatmul.bf16.gmra.mxu0 %v2114
      %v2224 = vpop.f32.mrf.mxu0
      %v2225 = vadd.f32 %v2211, %v2224
      %v2226 = vpop.f32.mrf.mxu0
      %v2227 = vadd.f32 %v2213, %v2226
      %2228 = vdwg.mxu0
      %2229 = vmatpush.bf16.msra.mxu0 %v1061
      %2230 = vmatpush.bf16.msra.mxu0 %v1060
      %2231 = vmatpush.bf16.msra.mxu0 %v1059
      %2232 = vmatpush.bf16.msra.mxu0 %v1058
      %2233 = vmatpush.bf16.msra.mxu0 %v1057
      %2234 = vmatpush.bf16.msra.mxu0 %v1056
      %2235 = vmatpush.bf16.msra.mxu0 %v1055
      %2236 = vmatpush.bf16.msra.mxu0 %v1054
      %2237 = vmatmul.bf16.gmra.mxu0 %v2120
      %v2238 = vpop.f32.mrf.mxu0
      %v2239 = vadd.f32 %v2225, %v2238
      %v2240 = vpop.f32.mrf.mxu0
      %v2241 = vadd.f32 %v2227, %v2240
      %2242 = vdwg.mxu0
      %2243 = vmatpush.bf16.msra.mxu0 %v1069
      %2244 = vmatpush.bf16.msra.mxu0 %v1068
      %2245 = vmatpush.bf16.msra.mxu0 %v1067
      %2246 = vmatpush.bf16.msra.mxu0 %v1066
      %2247 = vmatpush.bf16.msra.mxu0 %v1065
      %2248 = vmatpush.bf16.msra.mxu0 %v1064
      %2249 = vmatpush.bf16.msra.mxu0 %v1063
      %2250 = vmatpush.bf16.msra.mxu0 %v1062
      %2251 = vmatmul.bf16.gmra.mxu0 %v2136
      %v2252 = vpop.f32.mrf.mxu0
      %v2253 = vadd.f32 %v2239, %v2252
      %v2254 = vpop.f32.mrf.mxu0
      %v2255 = vadd.f32 %v2241, %v2254
      %2256 = vdwg.mxu0
      %2257 = vmatpush.bf16.msra.mxu0 %v1077
      %2258 = vmatpush.bf16.msra.mxu0 %v1076
      %2259 = vmatpush.bf16.msra.mxu0 %v1075
      %2260 = vmatpush.bf16.msra.mxu0 %v1074
      %2261 = vmatpush.bf16.msra.mxu0 %v1073
      %2262 = vmatpush.bf16.msra.mxu0 %v1072
      %2263 = vmatpush.bf16.msra.mxu0 %v1071
      %2264 = vmatpush.bf16.msra.mxu0 %v1070
      %2265 = vmatmul.bf16.gmra.mxu0 %v2143
      %v2266 = vpop.f32.mrf.mxu0
      %v2267 = vadd.f32 %v2253, %v2266
      %v2268 = vpop.f32.mrf.mxu0
      %v2269 = vadd.f32 %v2255, %v2268
      %2270 = vdwg.mxu0
      %v2271 = vpack.c.bf16 %v2267, %v2267
      %v2272 = vpack.c.bf16 %v2269, %v2269
      %s2273 = scalar_lea.vmem %s453, 32
      %2274 = vst [vmem:[%s2273] sm:$0xf] %v2271
      %2275 = vst [vmem:[%s2273 + $0x4] sm:$0xf] %v2272
      %v2276 = vadd.f32 %v2267, %v2269
      %v2277 = vrot.slane %v2276, 4
      %v2278 = vadd.f32 %v2276, %v2277
      %v2279 = vrot.slane %v2278, 2
      %v2280 = vadd.f32 %v2278, %v2279
      %v2281 = vrot.slane %v2280, 1
      %v2282 = vadd.f32 %v2280, %v2281
      %v2283 = vadd.f32 %v2034, %v2282
      %v2284 = vmul.f32 %v2267, %v2267
      %v2285 = vmul.f32 %v2269, %v2269
      %v2286 = vadd.f32 %v2284, %v2285
      %v2287 = vrot.slane %v2286, 4
      %v2288 = vadd.f32 %v2286, %v2287
      %v2289 = vrot.slane %v2288, 2
      %v2290 = vadd.f32 %v2288, %v2289
      %v2291 = vrot.slane %v2290, 1
      %v2292 = vadd.f32 %v2290, %v2291
      %v2293 = vadd.f32 %v2044, %v2292
      %v2294 = vld [vmem:[%s1804] sm:$0xf]
      %v2295 = vld [vmem:[%s1804 + $0x4] sm:$0xf]
      %v2296 = vld [vmem:[%s1804 + $0x8] sm:$0x1]
      %v2297 = vld [vmem:[%s1804] sm:$0xe]
      %v2298 = vld [vmem:[%s2053] sm:$0xf]
      %v2299 = vld [vmem:[%s2053 + $0x4] sm:$0xf]
      %v2300 = vld [vmem:[%s2053 + $0x8] sm:$0x1]
      %v2301 = vld [vmem:[%s2053] sm:$0xe]
      %s2302 = scalar_lea.vmem %s411, 84
      %v2303 = vld [vmem:[%s2302] sm:$0xf]
      %v2304 = vld [vmem:[%s2302 + $0x4] sm:$0xf]
      %v2305 = vld [vmem:[%s2302 + $0x8] sm:$0x1]
      %v2306 = vld [vmem:[%s2302] sm:$0xe]
      %v2309 = vunpack.c.l.b16 %v2294
      %v2310 = vunpack.c.l.b16 %v2295
      %v2311 = vpack.c.b16 %v2310, %v2309
      %v2314 = vunpack.c.l.b16 %v2296
      %v2315 = vpack.c.b16 %v2314, %v2314
      %v2317 = vshrl.u32 %v2311, 16
      %v2319 = vshll.u32 %v2311, 16
      %v2321 = vrot.slane %v2319, 1
      %v2322 = vor.u32 %v2317, %v2321
      %v2324 = vshll.u32 %v2315, 16
      %v2326 = vrot.slane %v2324, 1
      %v2327 = vsel %vm635, %v2322, %v2326
      %v2330 = vunpack.c.l.b16 %v2297
      %v2331 = vpack.c.b16 %v2310, %v2330
      %v2332 = vrot.slane %v2331, 1
      %v2333 = vrot.slane %v2315, 1
      %v2334 = vsel %vm652, %v2332, %v2333
      %v2338 = vunpack.c.l.b16 %v2298
      %v2339 = vunpack.c.l.b16 %v2299
      %v2340 = vpack.c.b16 %v2339, %v2338
      %v2343 = vunpack.c.l.b16 %v2300
      %v2344 = vpack.c.b16 %v2343, %v2343
      %v2346 = vshrl.u32 %v2340, 16
      %v2348 = vshll.u32 %v2340, 16
      %v2350 = vrot.slane %v2348, 1
      %v2351 = vor.u32 %v2346, %v2350
      %v2353 = vshll.u32 %v2344, 16
      %v2355 = vrot.slane %v2353, 1
      %v2356 = vsel %vm635, %v2351, %v2355
      %v2359 = vunpack.c.l.b16 %v2301
      %v2360 = vpack.c.b16 %v2339, %v2359
      %v2361 = vrot.slane %v2360, 1
      %v2362 = vrot.slane %v2344, 1
      %v2363 = vsel %vm652, %v2361, %v2362
      %v2367 = vunpack.c.l.b16 %v2303
      %v2368 = vunpack.c.l.b16 %v2304
      %v2369 = vpack.c.b16 %v2368, %v2367
      %v2372 = vunpack.c.l.b16 %v2305
      %v2373 = vpack.c.b16 %v2372, %v2372
      %v2375 = vshrl.u32 %v2369, 16
      %v2377 = vshll.u32 %v2369, 16
      %v2379 = vrot.slane %v2377, 1
      %v2380 = vor.u32 %v2375, %v2379
      %v2382 = vshll.u32 %v2373, 16
      %v2384 = vrot.slane %v2382, 1
      %v2385 = vsel %vm635, %v2380, %v2384
      %v2388 = vunpack.c.l.b16 %v2306
      %v2389 = vpack.c.b16 %v2368, %v2388
      %v2390 = vrot.slane %v2389, 1
      %v2391 = vrot.slane %v2373, 1
      %v2392 = vsel %vm652, %v2390, %v2391
      %2394 = vmatpush.bf16.msra.mxu0 %v1013
      %2395 = vmatpush.bf16.msra.mxu0 %v1012
      %2396 = vmatpush.bf16.msra.mxu0 %v1011
      %2397 = vmatpush.bf16.msra.mxu0 %v1010
      %2398 = vmatpush.bf16.msra.mxu0 %v1009
      %2399 = vmatpush.bf16.msra.mxu0 %v1008
      %2400 = vmatpush.bf16.msra.mxu0 %v1007
      %2401 = vmatpush.bf16.msra.mxu0 %v1006
      %2402 = vmatmul.bf16.gmra.mxu0 %v2311
      %v2403 = vpop.f32.mrf.mxu0
      %v2404 = vadd.f32 %v716, %v2403
      %v2405 = vpop.f32.mrf.mxu0
      %v2406 = vadd.f32 %v716, %v2405
      %2407 = vdwg.mxu0
      %2408 = vmatpush.bf16.msra.mxu0 %v1021
      %2409 = vmatpush.bf16.msra.mxu0 %v1020
      %2410 = vmatpush.bf16.msra.mxu0 %v1019
      %2411 = vmatpush.bf16.msra.mxu0 %v1018
      %2412 = vmatpush.bf16.msra.mxu0 %v1017
      %2413 = vmatpush.bf16.msra.mxu0 %v1016
      %2414 = vmatpush.bf16.msra.mxu0 %v1015
      %2415 = vmatpush.bf16.msra.mxu0 %v1014
      %2416 = vmatmul.bf16.gmra.mxu0 %v2327
      %v2417 = vpop.f32.mrf.mxu0
      %v2418 = vadd.f32 %v2404, %v2417
      %v2419 = vpop.f32.mrf.mxu0
      %v2420 = vadd.f32 %v2406, %v2419
      %2421 = vdwg.mxu0
      %2422 = vmatpush.bf16.msra.mxu0 %v1029
      %2423 = vmatpush.bf16.msra.mxu0 %v1028
      %2424 = vmatpush.bf16.msra.mxu0 %v1027
      %2425 = vmatpush.bf16.msra.mxu0 %v1026
      %2426 = vmatpush.bf16.msra.mxu0 %v1025
      %2427 = vmatpush.bf16.msra.mxu0 %v1024
      %2428 = vmatpush.bf16.msra.mxu0 %v1023
      %2429 = vmatpush.bf16.msra.mxu0 %v1022
      %2430 = vmatmul.bf16.gmra.mxu0 %v2334
      %v2431 = vpop.f32.mrf.mxu0
      %v2432 = vadd.f32 %v2418, %v2431
      %v2433 = vpop.f32.mrf.mxu0
      %v2434 = vadd.f32 %v2420, %v2433
      %2435 = vdwg.mxu0
      %2436 = vmatpush.bf16.msra.mxu0 %v1037
      %2437 = vmatpush.bf16.msra.mxu0 %v1036
      %2438 = vmatpush.bf16.msra.mxu0 %v1035
      %2439 = vmatpush.bf16.msra.mxu0 %v1034
      %2440 = vmatpush.bf16.msra.mxu0 %v1033
      %2441 = vmatpush.bf16.msra.mxu0 %v1032
      %2442 = vmatpush.bf16.msra.mxu0 %v1031
      %2443 = vmatpush.bf16.msra.mxu0 %v1030
      %2444 = vmatmul.bf16.gmra.mxu0 %v2340
      %v2445 = vpop.f32.mrf.mxu0
      %v2446 = vadd.f32 %v2432, %v2445
      %v2447 = vpop.f32.mrf.mxu0
      %v2448 = vadd.f32 %v2434, %v2447
      %2449 = vdwg.mxu0
      %2450 = vmatpush.bf16.msra.mxu0 %v1045
      %2451 = vmatpush.bf16.msra.mxu0 %v1044
      %2452 = vmatpush.bf16.msra.mxu0 %v1043
      %2453 = vmatpush.bf16.msra.mxu0 %v1042
      %2454 = vmatpush.bf16.msra.mxu0 %v1041
      %2455 = vmatpush.bf16.msra.mxu0 %v1040
      %2456 = vmatpush.bf16.msra.mxu0 %v1039
      %2457 = vmatpush.bf16.msra.mxu0 %v1038
      %2458 = vmatmul.bf16.gmra.mxu0 %v2356
      %v2459 = vpop.f32.mrf.mxu0
      %v2460 = vadd.f32 %v2446, %v2459
      %v2461 = vpop.f32.mrf.mxu0
      %v2462 = vadd.f32 %v2448, %v2461
      %2463 = vdwg.mxu0
      %2464 = vmatpush.bf16.msra.mxu0 %v1053
      %2465 = vmatpush.bf16.msra.mxu0 %v1052
      %2466 = vmatpush.bf16.msra.mxu0 %v1051
      %2467 = vmatpush.bf16.msra.mxu0 %v1050
      %2468 = vmatpush.bf16.msra.mxu0 %v1049
      %2469 = vmatpush.bf16.msra.mxu0 %v1048
      %2470 = vmatpush.bf16.msra.mxu0 %v1047
      %2471 = vmatpush.bf16.msra.mxu0 %v1046
      %2472 = vmatmul.bf16.gmra.mxu0 %v2363
      %v2473 = vpop.f32.mrf.mxu0
      %v2474 = vadd.f32 %v2460, %v2473
      %v2475 = vpop.f32.mrf.mxu0
      %v2476 = vadd.f32 %v2462, %v2475
      %2477 = vdwg.mxu0
      %2478 = vmatpush.bf16.msra.mxu0 %v1061
      %2479 = vmatpush.bf16.msra.mxu0 %v1060
      %2480 = vmatpush.bf16.msra.mxu0 %v1059
      %2481 = vmatpush.bf16.msra.mxu0 %v1058
      %2482 = vmatpush.bf16.msra.mxu0 %v1057
      %2483 = vmatpush.bf16.msra.mxu0 %v1056
      %2484 = vmatpush.bf16.msra.mxu0 %v1055
      %2485 = vmatpush.bf16.msra.mxu0 %v1054
      %2486 = vmatmul.bf16.gmra.mxu0 %v2369
      %v2487 = vpop.f32.mrf.mxu0
      %v2488 = vadd.f32 %v2474, %v2487
      %v2489 = vpop.f32.mrf.mxu0
      %v2490 = vadd.f32 %v2476, %v2489
      %2491 = vdwg.mxu0
      %2492 = vmatpush.bf16.msra.mxu0 %v1069
      %2493 = vmatpush.bf16.msra.mxu0 %v1068
      %2494 = vmatpush.bf16.msra.mxu0 %v1067
      %2495 = vmatpush.bf16.msra.mxu0 %v1066
      %2496 = vmatpush.bf16.msra.mxu0 %v1065
      %2497 = vmatpush.bf16.msra.mxu0 %v1064
      %2498 = vmatpush.bf16.msra.mxu0 %v1063
      %2499 = vmatpush.bf16.msra.mxu0 %v1062
      %2500 = vmatmul.bf16.gmra.mxu0 %v2385
      %v2501 = vpop.f32.mrf.mxu0
      %v2502 = vadd.f32 %v2488, %v2501
      %v2503 = vpop.f32.mrf.mxu0
      %v2504 = vadd.f32 %v2490, %v2503
      %2505 = vdwg.mxu0
      %2506 = vmatpush.bf16.msra.mxu0 %v1077
      %2507 = vmatpush.bf16.msra.mxu0 %v1076
      %2508 = vmatpush.bf16.msra.mxu0 %v1075
      %2509 = vmatpush.bf16.msra.mxu0 %v1074
      %2510 = vmatpush.bf16.msra.mxu0 %v1073
      %2511 = vmatpush.bf16.msra.mxu0 %v1072
      %2512 = vmatpush.bf16.msra.mxu0 %v1071
      %2513 = vmatpush.bf16.msra.mxu0 %v1070
      %2514 = vmatmul.bf16.gmra.mxu0 %v2392
      %v2515 = vpop.f32.mrf.mxu0
      %v2516 = vadd.f32 %v2502, %v2515
      %v2517 = vpop.f32.mrf.mxu0
      %v2518 = vadd.f32 %v2504, %v2517
      %2519 = vdwg.mxu0
      %v2520 = vpack.c.bf16 %v2516, %v2516
      %v2521 = vpack.c.bf16 %v2518, %v2518
      %s2522 = scalar_lea.vmem %s453, 40
      %2523 = vst [vmem:[%s2522] sm:$0xf] %v2520
      %2524 = vst [vmem:[%s2522 + $0x4] sm:$0xf] %v2521
      %v2525 = vadd.f32 %v2516, %v2518
      %v2526 = vrot.slane %v2525, 4
      %v2527 = vadd.f32 %v2525, %v2526
      %v2528 = vrot.slane %v2527, 2
      %v2529 = vadd.f32 %v2527, %v2528
      %v2530 = vrot.slane %v2529, 1
      %v2531 = vadd.f32 %v2529, %v2530
      %v2532 = vadd.f32 %v2283, %v2531
      %v2533 = vmul.f32 %v2516, %v2516
      %v2534 = vmul.f32 %v2518, %v2518
      %v2535 = vadd.f32 %v2533, %v2534
      %v2536 = vrot.slane %v2535, 4
      %v2537 = vadd.f32 %v2535, %v2536
      %v2538 = vrot.slane %v2537, 2
      %v2539 = vadd.f32 %v2537, %v2538
      %v2540 = vrot.slane %v2539, 1
      %v2541 = vadd.f32 %v2539, %v2540
      %v2542 = vadd.f32 %v2293, %v2541
      %v2543 = vld [vmem:[%s2053] sm:$0xf]
      %v2544 = vld [vmem:[%s2053 + $0x4] sm:$0xf]
      %v2545 = vld [vmem:[%s2053 + $0x8] sm:$0x1]
      %v2546 = vld [vmem:[%s2053] sm:$0xe]
      %v2547 = vld [vmem:[%s2302] sm:$0xf]
      %v2548 = vld [vmem:[%s2302 + $0x4] sm:$0xf]
      %v2549 = vld [vmem:[%s2302 + $0x8] sm:$0x1]
      %v2550 = vld [vmem:[%s2302] sm:$0xe]
      %v2551 = vld [vmem:[%s428] sm:$0xf]
      %v2552 = vld [vmem:[%s428 + $0x4] sm:$0xf]
      %v2553 = vld [vmem:[%s428 + $0x8] sm:$0x1]
      %v2554 = vld [vmem:[%s428] sm:$0xe]
      %v2557 = vunpack.c.l.b16 %v2543
      %v2558 = vunpack.c.l.b16 %v2544
      %v2559 = vpack.c.b16 %v2558, %v2557
      %v2562 = vunpack.c.l.b16 %v2545
      %v2563 = vpack.c.b16 %v2562, %v2562
      %v2565 = vshrl.u32 %v2559, 16
      %v2567 = vshll.u32 %v2559, 16
      %v2569 = vrot.slane %v2567, 1
      %v2570 = vor.u32 %v2565, %v2569
      %v2572 = vshll.u32 %v2563, 16
      %v2574 = vrot.slane %v2572, 1
      %v2575 = vsel %vm635, %v2570, %v2574
      %v2578 = vunpack.c.l.b16 %v2546
      %v2579 = vpack.c.b16 %v2558, %v2578
      %v2580 = vrot.slane %v2579, 1
      %v2581 = vrot.slane %v2563, 1
      %v2582 = vsel %vm652, %v2580, %v2581
      %v2586 = vunpack.c.l.b16 %v2547
      %v2587 = vunpack.c.l.b16 %v2548
      %v2588 = vpack.c.b16 %v2587, %v2586
      %v2591 = vunpack.c.l.b16 %v2549
      %v2592 = vpack.c.b16 %v2591, %v2591
      %v2594 = vshrl.u32 %v2588, 16
      %v2596 = vshll.u32 %v2588, 16
      %v2598 = vrot.slane %v2596, 1
      %v2599 = vor.u32 %v2594, %v2598
      %v2601 = vshll.u32 %v2592, 16
      %v2603 = vrot.slane %v2601, 1
      %v2604 = vsel %vm635, %v2599, %v2603
      %v2607 = vunpack.c.l.b16 %v2550
      %v2608 = vpack.c.b16 %v2587, %v2607
      %v2609 = vrot.slane %v2608, 1
      %v2610 = vrot.slane %v2592, 1
      %v2611 = vsel %vm652, %v2609, %v2610
      %v2615 = vunpack.c.l.b16 %v2551
      %v2616 = vunpack.c.l.b16 %v2552
      %v2617 = vpack.c.b16 %v2616, %v2615
      %v2620 = vunpack.c.l.b16 %v2553
      %v2621 = vpack.c.b16 %v2620, %v2620
      %v2623 = vshrl.u32 %v2617, 16
      %v2625 = vshll.u32 %v2617, 16
      %v2627 = vrot.slane %v2625, 1
      %v2628 = vor.u32 %v2623, %v2627
      %v2630 = vshll.u32 %v2621, 16
      %v2632 = vrot.slane %v2630, 1
      %v2633 = vsel %vm635, %v2628, %v2632
      %v2636 = vunpack.c.l.b16 %v2554
      %v2637 = vpack.c.b16 %v2616, %v2636
      %v2638 = vrot.slane %v2637, 1
      %v2639 = vrot.slane %v2621, 1
      %v2640 = vsel %vm652, %v2638, %v2639
      %2642 = vmatpush.bf16.msra.mxu0 %v1013
      %2643 = vmatpush.bf16.msra.mxu0 %v1012
      %2644 = vmatpush.bf16.msra.mxu0 %v1011
      %2645 = vmatpush.bf16.msra.mxu0 %v1010
      %2646 = vmatpush.bf16.msra.mxu0 %v1009
      %2647 = vmatpush.bf16.msra.mxu0 %v1008
      %2648 = vmatpush.bf16.msra.mxu0 %v1007
      %2649 = vmatpush.bf16.msra.mxu0 %v1006
      %2650 = vmatmul.bf16.gmra.mxu0 %v2559
      %v2651 = vpop.f32.mrf.mxu0
      %v2652 = vadd.f32 %v716, %v2651
      %v2653 = vpop.f32.mrf.mxu0
      %v2654 = vadd.f32 %v716, %v2653
      %2655 = vdwg.mxu0
      %2656 = vmatpush.bf16.msra.mxu0 %v1021
      %2657 = vmatpush.bf16.msra.mxu0 %v1020
      %2658 = vmatpush.bf16.msra.mxu0 %v1019
      %2659 = vmatpush.bf16.msra.mxu0 %v1018
      %2660 = vmatpush.bf16.msra.mxu0 %v1017
      %2661 = vmatpush.bf16.msra.mxu0 %v1016
      %2662 = vmatpush.bf16.msra.mxu0 %v1015
      %2663 = vmatpush.bf16.msra.mxu0 %v1014
      %2664 = vmatmul.bf16.gmra.mxu0 %v2575
      %v2665 = vpop.f32.mrf.mxu0
      %v2666 = vadd.f32 %v2652, %v2665
      %v2667 = vpop.f32.mrf.mxu0
      %v2668 = vadd.f32 %v2654, %v2667
      %2669 = vdwg.mxu0
      %2670 = vmatpush.bf16.msra.mxu0 %v1029
      %2671 = vmatpush.bf16.msra.mxu0 %v1028
      %2672 = vmatpush.bf16.msra.mxu0 %v1027
      %2673 = vmatpush.bf16.msra.mxu0 %v1026
      %2674 = vmatpush.bf16.msra.mxu0 %v1025
      %2675 = vmatpush.bf16.msra.mxu0 %v1024
      %2676 = vmatpush.bf16.msra.mxu0 %v1023
      %2677 = vmatpush.bf16.msra.mxu0 %v1022
      %2678 = vmatmul.bf16.gmra.mxu0 %v2582
      %v2679 = vpop.f32.mrf.mxu0
      %v2680 = vadd.f32 %v2666, %v2679
      %v2681 = vpop.f32.mrf.mxu0
      %v2682 = vadd.f32 %v2668, %v2681
      %2683 = vdwg.mxu0
      %2684 = vmatpush.bf16.msra.mxu0 %v1037
      %2685 = vmatpush.bf16.msra.mxu0 %v1036
      %2686 = vmatpush.bf16.msra.mxu0 %v1035
      %2687 = vmatpush.bf16.msra.mxu0 %v1034
      %2688 = vmatpush.bf16.msra.mxu0 %v1033
      %2689 = vmatpush.bf16.msra.mxu0 %v1032
      %2690 = vmatpush.bf16.msra.mxu0 %v1031
      %2691 = vmatpush.bf16.msra.mxu0 %v1030
      %2692 = vmatmul.bf16.gmra.mxu0 %v2588
      %v2693 = vpop.f32.mrf.mxu0
      %v2694 = vadd.f32 %v2680, %v2693
      %v2695 = vpop.f32.mrf.mxu0
      %v2696 = vadd.f32 %v2682, %v2695
      %2697 = vdwg.mxu0
      %2698 = vmatpush.bf16.msra.mxu0 %v1045
      %2699 = vmatpush.bf16.msra.mxu0 %v1044
      %2700 = vmatpush.bf16.msra.mxu0 %v1043
      %2701 = vmatpush.bf16.msra.mxu0 %v1042
      %2702 = vmatpush.bf16.msra.mxu0 %v1041
      %2703 = vmatpush.bf16.msra.mxu0 %v1040
      %2704 = vmatpush.bf16.msra.mxu0 %v1039
      %2705 = vmatpush.bf16.msra.mxu0 %v1038
      %2706 = vmatmul.bf16.gmra.mxu0 %v2604
      %v2707 = vpop.f32.mrf.mxu0
      %v2708 = vadd.f32 %v2694, %v2707
      %v2709 = vpop.f32.mrf.mxu0
      %v2710 = vadd.f32 %v2696, %v2709
      %2711 = vdwg.mxu0
      %2712 = vmatpush.bf16.msra.mxu0 %v1053
      %2713 = vmatpush.bf16.msra.mxu0 %v1052
      %2714 = vmatpush.bf16.msra.mxu0 %v1051
      %2715 = vmatpush.bf16.msra.mxu0 %v1050
      %2716 = vmatpush.bf16.msra.mxu0 %v1049
      %2717 = vmatpush.bf16.msra.mxu0 %v1048
      %2718 = vmatpush.bf16.msra.mxu0 %v1047
      %2719 = vmatpush.bf16.msra.mxu0 %v1046
      %2720 = vmatmul.bf16.gmra.mxu0 %v2611
      %v2721 = vpop.f32.mrf.mxu0
      %v2722 = vadd.f32 %v2708, %v2721
      %v2723 = vpop.f32.mrf.mxu0
      %v2724 = vadd.f32 %v2710, %v2723
      %2725 = vdwg.mxu0
      %2726 = vmatpush.bf16.msra.mxu0 %v1061
      %2727 = vmatpush.bf16.msra.mxu0 %v1060
      %2728 = vmatpush.bf16.msra.mxu0 %v1059
      %2729 = vmatpush.bf16.msra.mxu0 %v1058
      %2730 = vmatpush.bf16.msra.mxu0 %v1057
      %2731 = vmatpush.bf16.msra.mxu0 %v1056
      %2732 = vmatpush.bf16.msra.mxu0 %v1055
      %2733 = vmatpush.bf16.msra.mxu0 %v1054
      %2734 = vmatmul.bf16.gmra.mxu0 %v2617
      %v2735 = vpop.f32.mrf.mxu0
      %v2736 = vadd.f32 %v2722, %v2735
      %v2737 = vpop.f32.mrf.mxu0
      %v2738 = vadd.f32 %v2724, %v2737
      %2739 = vdwg.mxu0
      %2740 = vmatpush.bf16.msra.mxu0 %v1069
      %2741 = vmatpush.bf16.msra.mxu0 %v1068
      %2742 = vmatpush.bf16.msra.mxu0 %v1067
      %2743 = vmatpush.bf16.msra.mxu0 %v1066
      %2744 = vmatpush.bf16.msra.mxu0 %v1065
      %2745 = vmatpush.bf16.msra.mxu0 %v1064
      %2746 = vmatpush.bf16.msra.mxu0 %v1063
      %2747 = vmatpush.bf16.msra.mxu0 %v1062
      %2748 = vmatmul.bf16.gmra.mxu0 %v2633
      %v2749 = vpop.f32.mrf.mxu0
      %v2750 = vadd.f32 %v2736, %v2749
      %v2751 = vpop.f32.mrf.mxu0
      %v2752 = vadd.f32 %v2738, %v2751
      %2753 = vdwg.mxu0
      %2754 = vmatpush.bf16.msra.mxu0 %v1077
      %2755 = vmatpush.bf16.msra.mxu0 %v1076
      %2756 = vmatpush.bf16.msra.mxu0 %v1075
      %2757 = vmatpush.bf16.msra.mxu0 %v1074
      %2758 = vmatpush.bf16.msra.mxu0 %v1073
      %2759 = vmatpush.bf16.msra.mxu0 %v1072
      %2760 = vmatpush.bf16.msra.mxu0 %v1071
      %2761 = vmatpush.bf16.msra.mxu0 %v1070
      %2762 = vmatmul.bf16.gmra.mxu0 %v2640
      %v2763 = vpop.f32.mrf.mxu0
      %v2764 = vadd.f32 %v2750, %v2763
      %v2765 = vpop.f32.mrf.mxu0
      %v2766 = vadd.f32 %v2752, %v2765
      %2767 = vdwg.mxu0
      %v2768 = vpack.c.bf16 %v2764, %v2764
      %v2769 = vpack.c.bf16 %v2766, %v2766
      %s2770 = scalar_lea.vmem %s453, 48
      %2771 = vst [vmem:[%s2770] sm:$0xf] %v2768
      %2772 = vst [vmem:[%s2770 + $0x4] sm:$0xf] %v2769
      %v2773 = vadd.f32 %v2764, %v2766
      %v2774 = vrot.slane %v2773, 4
      %v2775 = vadd.f32 %v2773, %v2774
      %v2776 = vrot.slane %v2775, 2
      %v2777 = vadd.f32 %v2775, %v2776
      %v2778 = vrot.slane %v2777, 1
      %v2779 = vadd.f32 %v2777, %v2778
      %v2780 = vadd.f32 %v2532, %v2779
      %v2781 = vmul.f32 %v2764, %v2764
      %v2782 = vmul.f32 %v2766, %v2766
      %v2783 = vadd.f32 %v2781, %v2782
      %v2784 = vrot.slane %v2783, 4
      %v2785 = vadd.f32 %v2783, %v2784
      %v2786 = vrot.slane %v2785, 2
      %v2787 = vadd.f32 %v2785, %v2786
      %v2788 = vrot.slane %v2787, 1
      %v2789 = vadd.f32 %v2787, %v2788
      %v2790 = vadd.f32 %v2542, %v2789
      %v2791 = vld [vmem:[%s2302] sm:$0xf]
      %v2792 = vld [vmem:[%s2302 + $0x4] sm:$0xf]
      %v2793 = vld [vmem:[%s2302 + $0x8] sm:$0x1]
      %v2794 = vld [vmem:[%s2302] sm:$0xe]
      %v2795 = vld [vmem:[%s428] sm:$0xf]
      %v2796 = vld [vmem:[%s428 + $0x4] sm:$0xf]
      %v2797 = vld [vmem:[%s428 + $0x8] sm:$0x1]
      %v2798 = vld [vmem:[%s428] sm:$0xe]
      %v2799 = vld [vmem:[%s441] sm:$0xf]
      %v2800 = vld [vmem:[%s441 + $0x4] sm:$0xf]
      %v2801 = vld [vmem:[%s441 + $0x8] sm:$0x1]
      %v2802 = vld [vmem:[%s441] sm:$0xe]
      %v2805 = vunpack.c.l.b16 %v2791
      %v2806 = vunpack.c.l.b16 %v2792
      %v2807 = vpack.c.b16 %v2806, %v2805
      %v2810 = vunpack.c.l.b16 %v2793
      %v2811 = vpack.c.b16 %v2810, %v2810
      %v2813 = vshrl.u32 %v2807, 16
      %v2815 = vshll.u32 %v2807, 16
      %v2817 = vrot.slane %v2815, 1
      %v2818 = vor.u32 %v2813, %v2817
      %v2820 = vshll.u32 %v2811, 16
      %v2822 = vrot.slane %v2820, 1
      %v2823 = vsel %vm635, %v2818, %v2822
      %v2826 = vunpack.c.l.b16 %v2794
      %v2827 = vpack.c.b16 %v2806, %v2826
      %v2828 = vrot.slane %v2827, 1
      %v2829 = vrot.slane %v2811, 1
      %v2830 = vsel %vm652, %v2828, %v2829
      %v2834 = vunpack.c.l.b16 %v2795
      %v2835 = vunpack.c.l.b16 %v2796
      %v2836 = vpack.c.b16 %v2835, %v2834
      %v2839 = vunpack.c.l.b16 %v2797
      %v2840 = vpack.c.b16 %v2839, %v2839
      %v2842 = vshrl.u32 %v2836, 16
      %v2844 = vshll.u32 %v2836, 16
      %v2846 = vrot.slane %v2844, 1
      %v2847 = vor.u32 %v2842, %v2846
      %v2849 = vshll.u32 %v2840, 16
      %v2851 = vrot.slane %v2849, 1
      %v2852 = vsel %vm635, %v2847, %v2851
      %v2855 = vunpack.c.l.b16 %v2798
      %v2856 = vpack.c.b16 %v2835, %v2855
      %v2857 = vrot.slane %v2856, 1
      %v2858 = vrot.slane %v2840, 1
      %v2859 = vsel %vm652, %v2857, %v2858
      %v2863 = vunpack.c.l.b16 %v2799
      %v2864 = vunpack.c.l.b16 %v2800
      %v2865 = vpack.c.b16 %v2864, %v2863
      %v2868 = vunpack.c.l.b16 %v2801
      %v2869 = vpack.c.b16 %v2868, %v2868
      %v2871 = vshrl.u32 %v2865, 16
      %v2873 = vshll.u32 %v2865, 16
      %v2875 = vrot.slane %v2873, 1
      %v2876 = vor.u32 %v2871, %v2875
      %v2878 = vshll.u32 %v2869, 16
      %v2880 = vrot.slane %v2878, 1
      %v2881 = vsel %vm635, %v2876, %v2880
      %v2884 = vunpack.c.l.b16 %v2802
      %v2885 = vpack.c.b16 %v2864, %v2884
      %v2886 = vrot.slane %v2885, 1
      %v2887 = vrot.slane %v2869, 1
      %v2888 = vsel %vm652, %v2886, %v2887
      %2890 = vmatpush.bf16.msra.mxu0 %v1013
      %2891 = vmatpush.bf16.msra.mxu0 %v1012
      %2892 = vmatpush.bf16.msra.mxu0 %v1011
      %2893 = vmatpush.bf16.msra.mxu0 %v1010
      %2894 = vmatpush.bf16.msra.mxu0 %v1009
      %2895 = vmatpush.bf16.msra.mxu0 %v1008
      %2896 = vmatpush.bf16.msra.mxu0 %v1007
      %2897 = vmatpush.bf16.msra.mxu0 %v1006
      %2898 = vmatmul.bf16.gmra.mxu0 %v2807
      %v2899 = vpop.f32.mrf.mxu0
      %v2900 = vadd.f32 %v716, %v2899
      %v2901 = vpop.f32.mrf.mxu0
      %v2902 = vadd.f32 %v716, %v2901
      %2903 = vdwg.mxu0
      %2904 = vmatpush.bf16.msra.mxu0 %v1021
      %2905 = vmatpush.bf16.msra.mxu0 %v1020
      %2906 = vmatpush.bf16.msra.mxu0 %v1019
      %2907 = vmatpush.bf16.msra.mxu0 %v1018
      %2908 = vmatpush.bf16.msra.mxu0 %v1017
      %2909 = vmatpush.bf16.msra.mxu0 %v1016
      %2910 = vmatpush.bf16.msra.mxu0 %v1015
      %2911 = vmatpush.bf16.msra.mxu0 %v1014
      %2912 = vmatmul.bf16.gmra.mxu0 %v2823
      %v2913 = vpop.f32.mrf.mxu0
      %v2914 = vadd.f32 %v2900, %v2913
      %v2915 = vpop.f32.mrf.mxu0
      %v2916 = vadd.f32 %v2902, %v2915
      %2917 = vdwg.mxu0
      %2918 = vmatpush.bf16.msra.mxu0 %v1029
      %2919 = vmatpush.bf16.msra.mxu0 %v1028
      %2920 = vmatpush.bf16.msra.mxu0 %v1027
      %2921 = vmatpush.bf16.msra.mxu0 %v1026
      %2922 = vmatpush.bf16.msra.mxu0 %v1025
      %2923 = vmatpush.bf16.msra.mxu0 %v1024
      %2924 = vmatpush.bf16.msra.mxu0 %v1023
      %2925 = vmatpush.bf16.msra.mxu0 %v1022
      %2926 = vmatmul.bf16.gmra.mxu0 %v2830
      %v2927 = vpop.f32.mrf.mxu0
      %v2928 = vadd.f32 %v2914, %v2927
      %v2929 = vpop.f32.mrf.mxu0
      %v2930 = vadd.f32 %v2916, %v2929
      %2931 = vdwg.mxu0
      %2932 = vmatpush.bf16.msra.mxu0 %v1037
      %2933 = vmatpush.bf16.msra.mxu0 %v1036
      %2934 = vmatpush.bf16.msra.mxu0 %v1035
      %2935 = vmatpush.bf16.msra.mxu0 %v1034
      %2936 = vmatpush.bf16.msra.mxu0 %v1033
      %2937 = vmatpush.bf16.msra.mxu0 %v1032
      %2938 = vmatpush.bf16.msra.mxu0 %v1031
      %2939 = vmatpush.bf16.msra.mxu0 %v1030
      %2940 = vmatmul.bf16.gmra.mxu0 %v2836
      %v2941 = vpop.f32.mrf.mxu0
      %v2942 = vadd.f32 %v2928, %v2941
      %v2943 = vpop.f32.mrf.mxu0
      %v2944 = vadd.f32 %v2930, %v2943
      %2945 = vdwg.mxu0
      %2946 = vmatpush.bf16.msra.mxu0 %v1045
      %2947 = vmatpush.bf16.msra.mxu0 %v1044
      %2948 = vmatpush.bf16.msra.mxu0 %v1043
      %2949 = vmatpush.bf16.msra.mxu0 %v1042
      %2950 = vmatpush.bf16.msra.mxu0 %v1041
      %2951 = vmatpush.bf16.msra.mxu0 %v1040
      %2952 = vmatpush.bf16.msra.mxu0 %v1039
      %2953 = vmatpush.bf16.msra.mxu0 %v1038
      %2954 = vmatmul.bf16.gmra.mxu0 %v2852
      %v2955 = vpop.f32.mrf.mxu0
      %v2956 = vadd.f32 %v2942, %v2955
      %v2957 = vpop.f32.mrf.mxu0
      %v2958 = vadd.f32 %v2944, %v2957
      %2959 = vdwg.mxu0
      %2960 = vmatpush.bf16.msra.mxu0 %v1053
      %2961 = vmatpush.bf16.msra.mxu0 %v1052
      %2962 = vmatpush.bf16.msra.mxu0 %v1051
      %2963 = vmatpush.bf16.msra.mxu0 %v1050
      %2964 = vmatpush.bf16.msra.mxu0 %v1049
      %2965 = vmatpush.bf16.msra.mxu0 %v1048
      %2966 = vmatpush.bf16.msra.mxu0 %v1047
      %2967 = vmatpush.bf16.msra.mxu0 %v1046
      %2968 = vmatmul.bf16.gmra.mxu0 %v2859
      %v2969 = vpop.f32.mrf.mxu0
      %v2970 = vadd.f32 %v2956, %v2969
      %v2971 = vpop.f32.mrf.mxu0
      %v2972 = vadd.f32 %v2958, %v2971
      %2973 = vdwg.mxu0
      %2974 = vmatpush.bf16.msra.mxu0 %v1061
      %2975 = vmatpush.bf16.msra.mxu0 %v1060
      %2976 = vmatpush.bf16.msra.mxu0 %v1059
      %2977 = vmatpush.bf16.msra.mxu0 %v1058
      %2978 = vmatpush.bf16.msra.mxu0 %v1057
      %2979 = vmatpush.bf16.msra.mxu0 %v1056
      %2980 = vmatpush.bf16.msra.mxu0 %v1055
      %2981 = vmatpush.bf16.msra.mxu0 %v1054
      %2982 = vmatmul.bf16.gmra.mxu0 %v2865
      %v2983 = vpop.f32.mrf.mxu0
      %v2984 = vadd.f32 %v2970, %v2983
      %v2985 = vpop.f32.mrf.mxu0
      %v2986 = vadd.f32 %v2972, %v2985
      %2987 = vdwg.mxu0
      %2988 = vmatpush.bf16.msra.mxu0 %v1069
      %2989 = vmatpush.bf16.msra.mxu0 %v1068
      %2990 = vmatpush.bf16.msra.mxu0 %v1067
      %2991 = vmatpush.bf16.msra.mxu0 %v1066
      %2992 = vmatpush.bf16.msra.mxu0 %v1065
      %2993 = vmatpush.bf16.msra.mxu0 %v1064
      %2994 = vmatpush.bf16.msra.mxu0 %v1063
      %2995 = vmatpush.bf16.msra.mxu0 %v1062
      %2996 = vmatmul.bf16.gmra.mxu0 %v2881
      %v2997 = vpop.f32.mrf.mxu0
      %v2998 = vadd.f32 %v2984, %v2997
      %v2999 = vpop.f32.mrf.mxu0
      %v3000 = vadd.f32 %v2986, %v2999
      %3001 = vdwg.mxu0
      %3002 = vmatpush.bf16.msra.mxu0 %v1077
      %3003 = vmatpush.bf16.msra.mxu0 %v1076
      %3004 = vmatpush.bf16.msra.mxu0 %v1075
      %3005 = vmatpush.bf16.msra.mxu0 %v1074
      %3006 = vmatpush.bf16.msra.mxu0 %v1073
      %3007 = vmatpush.bf16.msra.mxu0 %v1072
      %3008 = vmatpush.bf16.msra.mxu0 %v1071
      %3009 = vmatpush.bf16.msra.mxu0 %v1070
      %3010 = vmatmul.bf16.gmra.mxu0 %v2888
      %v3011 = vpop.f32.mrf.mxu0
      %v3012 = vadd.f32 %v2998, %v3011
      %v3013 = vpop.f32.mrf.mxu0
      %v3014 = vadd.f32 %v3000, %v3013
      %3015 = vdwg.mxu0
      %v3016 = vpack.c.bf16 %v3012, %v3012
      %v3017 = vpack.c.bf16 %v3014, %v3014
      %s3018 = scalar_lea.vmem %s453, 56
      %3019 = vst [vmem:[%s3018] sm:$0xf] %v3016
      %3020 = vst [vmem:[%s3018 + $0x4] sm:$0xf] %v3017
      %v3021 = vadd.f32 %v3012, %v3014
      %v3022 = vrot.slane %v3021, 4
      %v3023 = vadd.f32 %v3021, %v3022
      %v3024 = vrot.slane %v3023, 2
      %v3025 = vadd.f32 %v3023, %v3024
      %v3026 = vrot.slane %v3025, 1
      %v3027 = vadd.f32 %v3025, %v3026
      %v3028 = vadd.f32 %v2780, %v3027
      %v3029 = vmul.f32 %v3012, %v3012
      %v3030 = vmul.f32 %v3014, %v3014
      %v3031 = vadd.f32 %v3029, %v3030
      %v3032 = vrot.slane %v3031, 4
      %v3033 = vadd.f32 %v3031, %v3032
      %v3034 = vrot.slane %v3033, 2
      %v3035 = vadd.f32 %v3033, %v3034
      %v3036 = vrot.slane %v3035, 1
      %v3037 = vadd.f32 %v3035, %v3036
      %v3038 = vadd.f32 %v2790, %v3037
      %v3039 = vld [vmem:[%s457] sm:$0x1]
      %v3040 = vadd.f32 %v3039, %v3028
      %3041 = vst [vmem:[%s457] sm:$0x1] %v3040
      %v3042 = vld [vmem:[%s460] sm:$0x1]
      %v3043 = vadd.f32 %v3042, %v3038
      %3044 = vst [vmem:[%s460] sm:$0x1] %v3043
      %s3045 = smul.u32 8, %s24
      %p3046 = scmp.lt.s32.totalorder %s23, 1
      %s3047 = scalar_select %p3046, %s23, 1
      %p3048 = scmp.lt.s32.totalorder %s3045, 15
      %s3049 = scalar_select %p3048, %s3045, 15
      %s3050 = smul.addr %s3049, 2
      %s3051 = smul.addr %s3047, 32
      %s3052 = sadd.s32 %s3050, %s3051
      %s3053 = smul.addr %s3052, 4
      %s3054 = scalar_lea.vmem %s5, %s3053
      %p3055 = scmp.lt.s32.totalorder %s23, 1
      %s3056 = scalar_select %p3055, %s23, 1
      %s3057 = scalar_lea.vmem %s6, %s3056
      %p3058 = scmp.lt.s32.totalorder %s23, 1
      %s3059 = scalar_select %p3058, %s23, 1
      %s3060 = scalar_lea.vmem %s7, %s3059
      // Predicated region
      $region45: #{upconv_fwd.6} parent=39 // pred_check
        %p3061 = pneg %p185
      $region46: #{upconv_fwd.6} parent=39 // pred_check_branch
        %3063 = sbr.rel (%p3061) target = $region48
      $region47: #{upconv_fwd.6} parent=39 // pred_region
        %s3064 = smul.u32 8, %s24
      $region48: #{upconv_fwd.6} parent=39 // pred_fallthru
        _
      // Predicated region
      $region49: #{upconv_fwd.6} parent=39 // pred_check
        %p3065 = pneg %p211
      $region50: #{upconv_fwd.6} parent=39 // pred_check_branch
        %3067 = sbr.rel (%p3065) target = $region52
      $region51: #{upconv_fwd.6} parent=39 // pred_region
        _
      $region52: #{upconv_fwd.6} parent=39 // pred_fallthru
        _
      // Predicated region
      $region53: #{upconv_fwd.6} parent=39 // pred_check
        %p3068 = pneg %p237
      $region54: #{upconv_fwd.6} parent=39 // pred_check_branch
        %3070 = sbr.rel (%p3068) target = $region56
      $region55: #{upconv_fwd.6} parent=39 // pred_region
        _
      $region56: #{upconv_fwd.6} parent=39 // pred_fallthru
        _
    $region40: #{upconv_fwd.6} parent=5 // pred_fallthru
      _
    %p3071 = scmp.le.s32.totalorder 2, %s14
    // Predicated region
    $region57: #{upconv_fwd.6} parent=5 // pred_check
      %p3072 = pneg %p3071
    $region58: #{upconv_fwd.6} parent=5 // pred_check_branch
      %3074 = sbr.rel (%p3072) target = $region60
    $region59: #{upconv_fwd.6} parent=5 // pred_region
      %s3075 = ssub.s32 %s14, 2
      // Predicated region
      $region61: #{upconv_fwd.6} parent=59 // pred_check
        %p3076 = pneg %p191
      $region62: #{upconv_fwd.6} parent=59 // pred_check_branch
        %3078 = sbr.rel (%p3076) target = $region64
      $region63: #{upconv_fwd.6} parent=59 // pred_region
        %s3079 = smul.u32 8, %s26
        %p3080 = scmp.lt.s32.totalorder %s25, 1
        %s3081 = scalar_select %p3080, %s25, 1
        %p3082 = scmp.lt.s32.totalorder %s3079, 15
        %s3083 = scalar_select %p3082, %s3079, 15
        %s3084 = smul.addr %s3083, 2
        %s3085 = smul.addr %s3081, 32
        %s3086 = sadd.s32 %s3084, %s3085
        %s3087 = smul.addr %s3086, 4
        %s3088 = scalar_lea.vmem %s5, %s3087
      $region64: #{upconv_fwd.6} parent=59 // pred_fallthru
        _
      // Predicated region
      $region65: #{upconv_fwd.6} parent=59 // pred_check
        %p3089 = pneg %p217
      $region66: #{upconv_fwd.6} parent=59 // pred_check_branch
        %3091 = sbr.rel (%p3089) target = $region68
      $region67: #{upconv_fwd.6} parent=59 // pred_region
        %p3092 = scmp.lt.s32.totalorder %s25, 1
        %s3093 = scalar_select %p3092, %s25, 1
        %s3094 = scalar_lea.vmem %s6, %s3093
      $region68: #{upconv_fwd.6} parent=59 // pred_fallthru
        _
      // Predicated region
      $region69: #{upconv_fwd.6} parent=59 // pred_check
        %p3095 = pneg %p243
      $region70: #{upconv_fwd.6} parent=59 // pred_check_branch
        %3097 = sbr.rel (%p3095) target = $region72
      $region71: #{upconv_fwd.6} parent=59 // pred_region
        %p3098 = scmp.lt.s32.totalorder %s25, 1
        %s3099 = scalar_select %p3098, %s25, 1
        %s3100 = scalar_lea.vmem %s7, %s3099
      $region72: #{upconv_fwd.6} parent=59 // pred_fallthru
        _
    $region60: #{upconv_fwd.6} parent=5 // pred_fallthru
      _
  $region6: #{upconv_fwd.6} parent=0 // loop_footer
    %s18 = sadd.s32 1, %s14
  $region7: #{upconv_fwd.6} parent=0 // loop_footer_branch
    %13 = sbr.rel target = $region3
  $region8: #{upconv_fwd.6} parent=0 // loop_exit
    _

// kernel: upconv_fwd.7
$region0: #{upconv_fwd.7}
  #allocation0 [shape = 'u32[]', space=smem, size = 0x4, offset = 0x4, fixed_abs, tag = 'smem constant byte address 0x4 - core index']
  #allocation1 [shape = 'u32[72,128]{1,0:T(1,128)}', space=vmem, size = 0x9000, scoped, tag = 'internal scratch']
  %s0 = inlined_call_operand.vmem [shape: bf16[512,128], index: 0, kind: input, shape index: {}]
  %s1 = inlined_call_operand.vmem [shape: f32[1,128], index: 1, kind: input, shape index: {}]
  %s2 = inlined_call_operand.vmem [shape: f32[1,128], index: 2, kind: input, shape index: {}]
  %s3 = inlined_call_operand.vmem [shape: bf16[128,128], index: 3, kind: input, shape index: {}]
  %s4 = inlined_call_operand.vmem [shape: f32[1,128], index: 4, kind: input, shape index: {}]
  %s5 = inlined_call_operand.vmem [shape: f32[512,128], index: 5, kind: output, shape index: {}]
  %s6 = sld [smem:[#allocation0]]
  $region53: #{upconv_fwd.7} parent=0
    _
  %s8 = ssub.s32 1, %s6
  %s9 = scalar_select 0, %s8, %s6
  loop: start=0, step=1, limit=4
  $region2: #{upconv_fwd.7} parent=0 // loop_pre_header
    _
  $region3: #{upconv_fwd.7} parent=0 // loop_header
    %s11 = sphi 0, %s15
    %p12 = scmp.ge.s32.totalorder %s11, 4
    %s21 = sphi 0, %s23
    %s24 = sphi 0, %s21
    %s25 = sphi 0, %s24
    %s41 = sphi 0, %s25
    %s45 = sphi 0, %s45
    %s47 = sphi 0, %s45
    %s48 = sphi 0, %s47
    %s62 = sphi 0, %s48
    %s66 = sphi 0, %s66
    %s68 = sphi 0, %s66
    %s69 = sphi 0, %s68
    %s83 = sphi 0, %s69
    %s87 = sphi 0, %s87
    %s89 = sphi 0, %s87
    %s90 = sphi 0, %s89
    %s104 = sphi 0, %s90
    %s108 = sphi 0, %s108
    %s110 = sphi 0, %s108
    %s111 = sphi 0, %s110
    %s125 = sphi 0, %s111
    %s131 = sphi 0, %s133
    %s134 = sphi 0, %s131
    %s135 = sphi 0, %s134
    %s151 = sphi 0, %s135
  $region4: #{upconv_fwd.7} parent=0 // loop_header_branch
    %14 = sbr.rel (%p12) target = $region8
  $region5: #{upconv_fwd.7} parent=0 // loop_body
    %s16 = ssub.s32 %s11, 1
    %s17 = ssub.s32 %s11, 2
    %s18 = sadd.s32 %s11, 1
    %s19 = ssub.s32 %s11, %s18
    %p20 = scmp.eq.s32.totalorder %s19, 0
    %s22 = sadd.s32 %s21, 1
    %s23 = scalar_select %p20, %s21, %s22
    %p26 = pneg %p20
    %p27 = scmp.eq.s32.totalorder %s11, 1
    %p28 = por %p26, %p27
    %p29 = scmp.ne.s32.totalorder %s21, %s24
    %p30 = scmp.eq.s32.totalorder %s11, 0
    %p31 = por %p29, %p30
    %p32 = scmp.ne.s32.totalorder %s21, %s24
    %p33 = scmp.eq.s32.totalorder %s16, 1
    %p34 = por %p32, %p33
    %p35 = scmp.ne.s32.totalorder %s24, %s25
    %p36 = scmp.eq.s32.totalorder %s16, 0
    %p37 = por %p35, %p36
    %p38 = scmp.ne.s32.totalorder %s24, %s25
    %p39 = scmp.eq.s32.totalorder %s17, 1
    %p40 = por %p38, %p39
    %p42 = scmp.ne.s32.totalorder %s25, %s41
    %p43 = scmp.eq.s32.totalorder %s17, 0
    %p44 = por %p42, %p43
    %s46 = sadd.s32 %s45, 1
    %p49 = scmp.eq.s32.totalorder %s11, 1
    %p50 = scmp.ne.s32.totalorder %s45, %s47
    %p51 = scmp.eq.s32.totalorder %s11, 0
    %p52 = por %p50, %p51
    %p53 = scmp.ne.s32.totalorder %s45, %s47
    %p54 = scmp.eq.s32.totalorder %s16, 1
    %p55 = por %p53, %p54
    %p56 = scmp.ne.s32.totalorder %s47, %s48
    %p57 = scmp.eq.s32.totalorder %s16, 0
    %p58 = por %p56, %p57
    %p59 = scmp.ne.s32.totalorder %s47, %s48
    %p60 = scmp.eq.s32.totalorder %s17, 1
    %p61 = por %p59, %p60
    %p63 = scmp.ne.s32.totalorder %s48, %s62
    %p64 = scmp.eq.s32.totalorder %s17, 0
    %p65 = por %p63, %p64
    %s67 = sadd.s32 %s66, 1
    %p70 = scmp.eq.s32.totalorder %s11, 1
    %p71 = scmp.ne.s32.totalorder %s66, %s68
    %p72 = scmp.eq.s32.totalorder %s11, 0
    %p73 = por %p71, %p72
    %p74 = scmp.ne.s32.totalorder %s66, %s68
    %p75 = scmp.eq.s32.totalorder %s16, 1
    %p76 = por %p74, %p75
    %p77 = scmp.ne.s32.totalorder %s68, %s69
    %p78 = scmp.eq.s32.totalorder %s16, 0
    %p79 = por %p77, %p78
    %p80 = scmp.ne.s32.totalorder %s68, %s69
    %p81 = scmp.eq.s32.totalorder %s17, 1
    %p82 = por %p80, %p81
    %p84 = scmp.ne.s32.totalorder %s69, %s83
    %p85 = scmp.eq.s32.totalorder %s17, 0
    %p86 = por %p84, %p85
    %s88 = sadd.s32 %s87, 1
    %p91 = scmp.eq.s32.totalorder %s11, 1
    %p92 = scmp.ne.s32.totalorder %s87, %s89
    %p93 = scmp.eq.s32.totalorder %s11, 0
    %p94 = por %p92, %p93
    %p95 = scmp.ne.s32.totalorder %s87, %s89
    %p96 = scmp.eq.s32.totalorder %s16, 1
    %p97 = por %p95, %p96
    %p98 = scmp.ne.s32.totalorder %s89, %s90
    %p99 = scmp.eq.s32.totalorder %s16, 0
    %p100 = por %p98, %p99
    %p101 = scmp.ne.s32.totalorder %s89, %s90
    %p102 = scmp.eq.s32.totalorder %s17, 1
    %p103 = por %p101, %p102
    %p105 = scmp.ne.s32.totalorder %s90, %s104
    %p106 = scmp.eq.s32.totalorder %s17, 0
    %p107 = por %p105, %p106
    %s109 = sadd.s32 %s108, 1
    %p112 = scmp.eq.s32.totalorder %s11, 1
    %p113 = scmp.ne.s32.totalorder %s108, %s110
    %p114 = scmp.eq.s32.totalorder %s11, 0
    %p115 = por %p113, %p114
    %p116 = scmp.ne.s32.totalorder %s108, %s110
    %p117 = scmp.eq.s32.totalorder %s16, 1
    %p118 = por %p116, %p117
    %p119 = scmp.ne.s32.totalorder %s110, %s111
    %p120 = scmp.eq.s32.totalorder %s16, 0
    %p121 = por %p119, %p120
    %p122 = scmp.ne.s32.totalorder %s110, %s111
    %p123 = scmp.eq.s32.totalorder %s17, 1
    %p124 = por %p122, %p123
    %p126 = scmp.ne.s32.totalorder %s111, %s125
    %p127 = scmp.eq.s32.totalorder %s17, 0
    %p128 = por %p126, %p127
    %s129 = ssub.s32 %s11, %s18
    %p130 = scmp.eq.s32.totalorder %s129, 0
    %s132 = sadd.s32 %s131, 1
    %s133 = scalar_select %p130, %s131, %s132
    %p136 = pneg %p130
    %p137 = scmp.eq.s32.totalorder %s11, 1
    %p138 = por %p136, %p137
    %p139 = scmp.ne.s32.totalorder %s131, %s134
    %p140 = scmp.eq.s32.totalorder %s11, 0
    %p141 = por %p139, %p140
    %p142 = scmp.ne.s32.totalorder %s131, %s134
    %p143 = scmp.eq.s32.totalorder %s16, 1
    %p144 = por %p142, %p143
    %p145 = scmp.ne.s32.totalorder %s134, %s135
    %p146 = scmp.eq.s32.totalorder %s16, 0
    %p147 = por %p145, %p146
    %p148 = scmp.ne.s32.totalorder %s134, %s135
    %p149 = scmp.eq.s32.totalorder %s17, 1
    %p150 = por %p148, %p149
    %p152 = scmp.ne.s32.totalorder %s135, %s151
    %p153 = scmp.eq.s32.totalorder %s17, 0
    %p154 = por %p152, %p153
    %p155 = scmp.le.s32.totalorder 1, %s11
    %p156 = scmp.lt.s32.totalorder %s11, 3
    %p157 = pnand %p155, %p156
    %p158 = pneg %p157
    // Predicated region
    $region9: #{upconv_fwd.7} parent=5 // pred_check
      _
    $region10: #{upconv_fwd.7} parent=5 // pred_check_branch
      %160 = sbr.rel (%p157) target = $region12
    $region11: #{upconv_fwd.7} parent=5 // pred_region
      %s161 = ssub.s32 %s11, 1
      // Predicated region
      $region13: #{upconv_fwd.7} parent=11 // pred_check
        %p162 = pneg %p58
      $region14: #{upconv_fwd.7} parent=11 // pred_check_branch
        %164 = sbr.rel (%p162) target = $region16
      $region15: #{upconv_fwd.7} parent=11 // pred_region
        _
      $region16: #{upconv_fwd.7} parent=11 // pred_fallthru
        _
      // Predicated region
      $region17: #{upconv_fwd.7} parent=11 // pred_check
        %p165 = pneg %p79
      $region18: #{upconv_fwd.7} parent=11 // pred_check_branch
        %167 = sbr.rel (%p165) target = $region20
      $region19: #{upconv_fwd.7} parent=11 // pred_region
        _
      $region20: #{upconv_fwd.7} parent=11 // pred_fallthru
        _
      // Predicated region
      $region21: #{upconv_fwd.7} parent=11 // pred_check
        %p168 = pneg %p100
      $region22: #{upconv_fwd.7} parent=11 // pred_check_branch
        %170 = sbr.rel (%p168) target = $region24
      $region23: #{upconv_fwd.7} parent=11 // pred_region
        _
      $region24: #{upconv_fwd.7} parent=11 // pred_fallthru
        _
      // Predicated region
      $region25: #{upconv_fwd.7} parent=11 // pred_check
        %p171 = pneg %p121
      $region26: #{upconv_fwd.7} parent=11 // pred_check_branch
        %173 = sbr.rel (%p171) target = $region28
      $region27: #{upconv_fwd.7} parent=11 // pred_region
        _
      $region28: #{upconv_fwd.7} parent=11 // pred_fallthru
        _
    $region12: #{upconv_fwd.7} parent=5 // pred_fallthru
      _
    %p174 = scmp.lt.s32.totalorder %s11, 2
    // Predicated region
    $region29: #{upconv_fwd.7} parent=5 // pred_check
      %p175 = pneg %p174
    $region30: #{upconv_fwd.7} parent=5 // pred_check_branch
      %177 = sbr.rel (%p175) target = $region32
    $region31: #{upconv_fwd.7} parent=5 // pred_region
      // Predicated region
      $region33: #{upconv_fwd.7} parent=31 // pred_check
        %p178 = pneg %p31
      $region34: #{upconv_fwd.7} parent=31 // pred_check_branch
        %180 = sbr.rel (%p178) target = $region36
      $region35: #{upconv_fwd.7} parent=31 // pred_region
        %s181 = smul.u32 32, %s11
        %p182 = scmp.lt.s32.totalorder %s181, 63
        %s183 = scalar_select %p182, %s181, 63
        %s184 = smul.addr %s183, 4
        %s185 = scalar_lea.vmem %s0, %s184
        %s186 = smul.u32 32, %s11
      $region36: #{upconv_fwd.7} parent=31 // pred_fallthru
        _
    $region32: #{upconv_fwd.7} parent=5 // pred_fallthru
      _
    %p187 = scmp.le.s32.totalorder 1, %s11
    %p188 = scmp.lt.s32.totalorder %s11, 3
    %p189 = pnand %p187, %p188
    %p190 = pneg %p189
    // Predicated region
    $region37: #{upconv_fwd.7} parent=5 // pred_check
      _
    $region38: #{upconv_fwd.7} parent=5 // pred_check_branch
      %192 = sbr.rel (%p189) target = $region40
    $region39: #{upconv_fwd.7} parent=5 // pred_region
      %s193 = ssub.s32 %s11, 1
      %s194 = smul.u32 32, %s16
      %p195 = scmp.lt.s32.totalorder %s194, 63
      %s196 = scalar_select %p195, %s194, 63
      %s197 = smul.addr %s196, 4
      %s198 = scalar_lea.vmem %s0, %s197
      %p199 = pneg %p37
      %p200 = pneg %p34
      %p201 = pneg %p58
      %p202 = pneg %p55
      %p203 = pneg %p79
      %p204 = pneg %p76
      %p205 = pneg %p100
      %p206 = pneg %p97
      %p207 = pneg %p121
      %p208 = pneg %p118
      %p209 = pneg %p147
      %p210 = pneg %p144
      %s211 = smul.u32 32, %s16
      %p212 = scmp.lt.s32.totalorder %s211, 63
      %s213 = scalar_select %p212, %s211, 63
      %s214 = smul.addr %s213, 8
      %s215 = scalar_lea.vmem %s5, %s214
      %s216 = smul.u32 32, %s16
      %p217 = scmp.lt.s32.totalorder %s216, 63
      %s218 = scalar_select %p217, %s216, 63
      %s219 = smul.addr %s218, 4
      %s220 = scalar_lea.vmem %s0, %s219
      %s221 = smul.u32 32, %s16
      %s222 = smul.u32 32, %s16
      %p223 = scmp.lt.s32.totalorder %s222, 63
      %s224 = scalar_select %p223, %s222, 63
      %s225 = smul.addr %s224, 8
      %s226 = scalar_lea.vmem %s5, %s225
      %s227 = smul.u32 32, %s16
      %v228 = vld [vmem:[%s220] sm:$0xf]
      %v229 = vld [vmem:[%s220 + $0x4] sm:$0xf]
      %v230 = vld [vmem:[%s220 + $0x8] sm:$0xf]
      %v231 = vld [vmem:[%s220 + $0xc] sm:$0xf]
      %v232 = vld [vmem:[%s220 + $0x10] sm:$0xf]
      %v233 = vld [vmem:[%s220 + $0x14] sm:$0xf]
      %v234 = vld [vmem:[%s220 + $0x18] sm:$0xf]
      %v235 = vld [vmem:[%s220 + $0x1c] sm:$0xf]
      %v236 = vld [vmem:[%s220 + $0x20] sm:$0xf]
      %v237 = vld [vmem:[%s220 + $0x24] sm:$0xf]
      %v238 = vld [vmem:[%s220 + $0x28] sm:$0xf]
      %v239 = vld [vmem:[%s220 + $0x2c] sm:$0xf]
      %v240 = vld [vmem:[%s220 + $0x30] sm:$0xf]
      %v241 = vld [vmem:[%s220 + $0x34] sm:$0xf]
      %v242 = vld [vmem:[%s220 + $0x38] sm:$0xf]
      %v243 = vld [vmem:[%s220 + $0x3c] sm:$0xf]
      %v244 = vld [vmem:[%s220 + $0x40] sm:$0xf]
      %v245 = vld [vmem:[%s220 + $0x44] sm:$0xf]
      %v246 = vld [vmem:[%s220 + $0x48] sm:$0xf]
      %v247 = vld [vmem:[%s220 + $0x4c] sm:$0xf]
      %v248 = vld [vmem:[%s220 + $0x50] sm:$0xf]
      %v249 = vld [vmem:[%s220 + $0x54] sm:$0xf]
      %v250 = vld [vmem:[%s220 + $0x58] sm:$0xf]
      %v251 = vld [vmem:[%s220 + $0x5c] sm:$0xf]
      %v252 = vld [vmem:[%s220 + $0x60] sm:$0xf]
      %v253 = vld [vmem:[%s220 + $0x64] sm:$0xf]
      %v254 = vld [vmem:[%s220 + $0x68] sm:$0xf]
      %v255 = vld [vmem:[%s220 + $0x6c] sm:$0xf]
      %v256 = vld [vmem:[%s220 + $0x70] sm:$0xf]
      %v257 = vld [vmem:[%s220 + $0x74] sm:$0xf]
      %v258 = vld [vmem:[%s220 + $0x78] sm:$0xf]
      %v259 = vld [vmem:[%s220 + $0x7c] sm:$0xf]
      %v260 = vunpack.c.l.bf16 %v228
      %v261 = vunpack.c.l.bf16 %v229
      %v262 = vunpack.c.l.bf16 %v230
      %v263 = vunpack.c.l.bf16 %v231
      %v264 = vunpack.c.l.bf16 %v232
      %v265 = vunpack.c.l.bf16 %v233
      %v266 = vunpack.c.l.bf16 %v234
      %v267 = vunpack.c.l.bf16 %v235
      %v268 = vunpack.c.l.bf16 %v236
      %v269 = vunpack.c.l.bf16 %v237
      %v270 = vunpack.c.l.bf16 %v238
      %v271 = vunpack.c.l.bf16 %v239
      %v272 = vunpack.c.l.bf16 %v240
      %v273 = vunpack.c.l.bf16 %v241
      %v274 = vunpack.c.l.bf16 %v242
      %v275 = vunpack.c.l.bf16 %v243
      %v276 = vunpack.c.l.bf16 %v244
      %v277 = vunpack.c.l.bf16 %v245
      %v278 = vunpack.c.l.bf16 %v246
      %v279 = vunpack.c.l.bf16 %v247
      %v280 = vunpack.c.l.bf16 %v248
      %v281 = vunpack.c.l.bf16 %v249
      %v282 = vunpack.c.l.bf16 %v250
      %v283 = vunpack.c.l.bf16 %v251
      %v284 = vunpack.c.l.bf16 %v252
      %v285 = vunpack.c.l.bf16 %v253
      %v286 = vunpack.c.l.bf16 %v254
      %v287 = vunpack.c.l.bf16 %v255
      %v288 = vunpack.c.l.bf16 %v256
      %v289 = vunpack.c.l.bf16 %v257
      %v290 = vunpack.c.l.bf16 %v258
      %v291 = vunpack.c.l.bf16 %v259
      %v292 = vld [vmem:[%s1] sm:$0x1]
      %v294 = vperm.slane %v292, 0
      %v296 = vmul.f32 %v260, %v294
      %v297 = vmul.f32 %v261, %v294
      %v298 = vmul.f32 %v262, %v294
      %v299 = vmul.f32 %v263, %v294
      %v300 = vmul.f32 %v264, %v294
      %v301 = vmul.f32 %v265, %v294
      %v302 = vmul.f32 %v266, %v294
      %v303 = vmul.f32 %v267, %v294
      %v304 = vmul.f32 %v268, %v294
      %v305 = vmul.f32 %v269, %v294
      %v306 = vmul.f32 %v270, %v294
      %v307 = vmul.f32 %v271, %v294
      %v308 = vmul.f32 %v272, %v294
      %v309 = vmul.f32 %v273, %v294
      %v310 = vmul.f32 %v274, %v294
      %v311 = vmul.f32 %v275, %v294
      %v312 = vmul.f32 %v276, %v294
      %v313 = vmul.f32 %v277, %v294
      %v314 = vmul.f32 %v278, %v294
      %v315 = vmul.f32 %v279, %v294
      %v316 = vmul.f32 %v280, %v294
      %v317 = vmul.f32 %v281, %v294
      %v318 = vmul.f32 %v282, %v294
      %v319 = vmul.f32 %v283, %v294
      %v320 = vmul.f32 %v284, %v294
      %v321 = vmul.f32 %v285, %v294
      %v322 = vmul.f32 %v286, %v294
      %v323 = vmul.f32 %v287, %v294
      %v324 = vmul.f32 %v288, %v294
      %v325 = vmul.f32 %v289, %v294
      %v326 = vmul.f32 %v290, %v294
      %v327 = vmul.f32 %v291, %v294
      %v328 = vld [vmem:[%s2] sm:$0x1]
      %v330 = vperm.slane %v328, 0
      %v332 = vadd.f32 %v296, %v330
      %v333 = vadd.f32 %v297, %v330
      %v334 = vadd.f32 %v298, %v330
      %v335 = vadd.f32 %v299, %v330
      %v336 = vadd.f32 %v300, %v330
      %v337 = vadd.f32 %v301, %v330
      %v338 = vadd.f32 %v302, %v330
      %v339 = vadd.f32 %v303, %v330
      %v340 = vadd.f32 %v304, %v330
      %v341 = vadd.f32 %v305, %v330
      %v342 = vadd.f32 %v306, %v330
      %v343 = vadd.f32 %v307, %v330
      %v344 = vadd.f32 %v308, %v330
      %v345 = vadd.f32 %v309, %v330
      %v346 = vadd.f32 %v310, %v330
      %v347 = vadd.f32 %v311, %v330
      %v348 = vadd.f32 %v312, %v330
      %v349 = vadd.f32 %v313, %v330
      %v350 = vadd.f32 %v314, %v330
      %v351 = vadd.f32 %v315, %v330
      %v352 = vadd.f32 %v316, %v330
      %v353 = vadd.f32 %v317, %v330
      %v354 = vadd.f32 %v318, %v330
      %v355 = vadd.f32 %v319, %v330
      %v356 = vadd.f32 %v320, %v330
      %v357 = vadd.f32 %v321, %v330
      %v358 = vadd.f32 %v322, %v330
      %v359 = vadd.f32 %v323, %v330
      %v360 = vadd.f32 %v324, %v330
      %v361 = vadd.f32 %v325, %v330
      %v362 = vadd.f32 %v326, %v330
      %v363 = vadd.f32 %v327, %v330
      %v364 = vmax.f32 %v332, 0.0
      %v365 = vmax.f32 %v333, 0.0
      %v366 = vmax.f32 %v334, 0.0
      %v367 = vmax.f32 %v335, 0.0
      %v368 = vmax.f32 %v336, 0.0
      %v369 = vmax.f32 %v337, 0.0
      %v370 = vmax.f32 %v338, 0.0
      %v371 = vmax.f32 %v339, 0.0
      %v372 = vmax.f32 %v340, 0.0
      %v373 = vmax.f32 %v341, 0.0
      %v374 = vmax.f32 %v342, 0.0
      %v375 = vmax.f32 %v343, 0.0
      %v376 = vmax.f32 %v344, 0.0
      %v377 = vmax.f32 %v345, 0.0
      %v378 = vmax.f32 %v346, 0.0
      %v379 = vmax.f32 %v347, 0.0
      %v380 = vmax.f32 %v348, 0.0
      %v381 = vmax.f32 %v349, 0.0
      %v382 = vmax.f32 %v350, 0.0
      %v383 = vmax.f32 %v351, 0.0
      %v384 = vmax.f32 %v352, 0.0
      %v385 = vmax.f32 %v353, 0.0
      %v386 = vmax.f32 %v354, 0.0
      %v387 = vmax.f32 %v355, 0.0
      %v388 = vmax.f32 %v356, 0.0
      %v389 = vmax.f32 %v357, 0.0
      %v390 = vmax.f32 %v358, 0.0
      %v391 = vmax.f32 %v359, 0.0
      %v392 = vmax.f32 %v360, 0.0
      %v393 = vmax.f32 %v361, 0.0
      %v394 = vmax.f32 %v362, 0.0
      %v395 = vmax.f32 %v363, 0.0
      %v396 = vpack.c.bf16 %v365, %v364
      %v397 = vpack.c.bf16 %v367, %v366
      %v398 = vpack.c.bf16 %v369, %v368
      %v399 = vpack.c.bf16 %v371, %v370
      %v400 = vpack.c.bf16 %v373, %v372
      %v401 = vpack.c.bf16 %v375, %v374
      %v402 = vpack.c.bf16 %v377, %v376
      %v403 = vpack.c.bf16 %v379, %v378
      %v404 = vpack.c.bf16 %v381, %v380
      %v405 = vpack.c.bf16 %v383, %v382
      %v406 = vpack.c.bf16 %v385, %v384
      %v407 = vpack.c.bf16 %v387, %v386
      %v408 = vpack.c.bf16 %v389, %v388
      %v409 = vpack.c.bf16 %v391, %v390
      %v410 = vpack.c.bf16 %v393, %v392
      %v411 = vpack.c.bf16 %v395, %v394
      %v412 = vld [vmem:[%s3] sm:$0xf]
      %v413 = vld [vmem:[%s3 + $0x4] sm:$0xf]
      %v414 = vld [vmem:[%s3 + $0x8] sm:$0xf]
      %v415 = vld [vmem:[%s3 + $0xc] sm:$0xf]
      %v416 = vld [vmem:[%s3 + $0x10] sm:$0xf]
      %v417 = vld [vmem:[%s3 + $0x14] sm:$0xf]
      %v418 = vld [vmem:[%s3 + $0x18] sm:$0xf]
      %v419 = vld [vmem:[%s3 + $0x1c] sm:$0xf]
      %v420 = vld [vmem:[%s3 + $0x20] sm:$0xf]
      %v421 = vld [vmem:[%s3 + $0x24] sm:$0xf]
      %v422 = vld [vmem:[%s3 + $0x28] sm:$0xf]
      %v423 = vld [vmem:[%s3 + $0x2c] sm:$0xf]
      %v424 = vld [vmem:[%s3 + $0x30] sm:$0xf]
      %v425 = vld [vmem:[%s3 + $0x34] sm:$0xf]
      %v426 = vld [vmem:[%s3 + $0x38] sm:$0xf]
      %v427 = vld [vmem:[%s3 + $0x3c] sm:$0xf]
      %v428 = vld [vmem:[%s4] sm:$0x1]
      %v430 = vperm.slane %v428, 0
      %v448 = vunpack.c.l.b16 %v412
      %v449 = vunpack.c.l.b16 %v413
      %v450 = vunpack.c.l.b16 %v414
      %v451 = vunpack.c.l.b16 %v415
      %v452 = vunpack.c.l.b16 %v416
      %v453 = vunpack.c.l.b16 %v417
      %v454 = vunpack.c.l.b16 %v418
      %v455 = vunpack.c.l.b16 %v419
      %v456 = vunpack.c.l.b16 %v420
      %v457 = vunpack.c.l.b16 %v421
      %v458 = vunpack.c.l.b16 %v422
      %v459 = vunpack.c.l.b16 %v423
      %v460 = vunpack.c.l.b16 %v424
      %v461 = vunpack.c.l.b16 %v425
      %v462 = vunpack.c.l.b16 %v426
      %v463 = vunpack.c.l.b16 %v427
      %v464 = vpack.c.b16 %v449, %v448
      %v465 = vpack.c.b16 %v451, %v450
      %v466 = vpack.c.b16 %v453, %v452
      %v467 = vpack.c.b16 %v455, %v454
      %v468 = vpack.c.b16 %v457, %v456
      %v469 = vpack.c.b16 %v459, %v458
      %v470 = vpack.c.b16 %v461, %v460
      %v471 = vpack.c.b16 %v463, %v462
      %480 = vmatpush.bf16.msra.mxu0 %v471
      %481 = vmatpush.bf16.msra.mxu0 %v470
      %482 = vmatpush.bf16.msra.mxu0 %v469
      %483 = vmatpush.bf16.msra.mxu0 %v468
      %484 = vmatpush.bf16.msra.mxu0 %v467
      %485 = vmatpush.bf16.msra.mxu0 %v466
      %486 = vmatpush.bf16.msra.mxu0 %v465
      %487 = vmatpush.bf16.msra.mxu0 %v464
      %488 = vmatmul.bf16.gmra.mxu0 %v396
      %v489 = vpop.f32.mrf.mxu0
      %v490 = vadd.f32 %v430, %v489
      %v491 = vpop.f32.mrf.mxu0
      %v492 = vadd.f32 %v430, %v491
      %493 = vmatmul.bf16.gmra.mxu0 %v397
      %v494 = vpop.f32.mrf.mxu0
      %v495 = vadd.f32 %v430, %v494
      %v496 = vpop.f32.mrf.mxu0
      %v497 = vadd.f32 %v430, %v496
      %498 = vmatmul.bf16.gmra.mxu0 %v398
      %v499 = vpop.f32.mrf.mxu0
      %v500 = vadd.f32 %v430, %v499
      %v501 = vpop.f32.mrf.mxu0
      %v502 = vadd.f32 %v430, %v501
      %503 = vmatmul.bf16.gmra.mxu0 %v399
      %v504 = vpop.f32.mrf.mxu0
      %v505 = vadd.f32 %v430, %v504
      %v506 = vpop.f32.mrf.mxu0
      %v507 = vadd.f32 %v430, %v506
      %508 = vmatmul.bf16.gmra.mxu0 %v400
      %v509 = vpop.f32.mrf.mxu0
      %v510 = vadd.f32 %v430, %v509
      %v511 = vpop.f32.mrf.mxu0
      %v512 = vadd.f32 %v430, %v511
      %513 = vmatmul.bf16.gmra.mxu0 %v401
      %v514 = vpop.f32.mrf.mxu0
      %v515 = vadd.f32 %v430, %v514
      %v516 = vpop.f32.mrf.mxu0
      %v517 = vadd.f32 %v430, %v516
      %518 = vmatmul.bf16.gmra.mxu0 %v402
      %v519 = vpop.f32.mrf.mxu0
      %v520 = vadd.f32 %v430, %v519
      %v521 = vpop.f32.mrf.mxu0
      %v522 = vadd.f32 %v430, %v521
      %523 = vmatmul.bf16.gmra.mxu0 %v403
      %v524 = vpop.f32.mrf.mxu0
      %v525 = vadd.f32 %v430, %v524
      %v526 = vpop.f32.mrf.mxu0
      %v527 = vadd.f32 %v430, %v526
      %528 = vmatmul.bf16.gmra.mxu0 %v404
      %v529 = vpop.f32.mrf.mxu0
      %v530 = vadd.f32 %v430, %v529
      %v531 = vpop.f32.mrf.mxu0
      %v532 = vadd.f32 %v430, %v531
      %533 = vmatmul.bf16.gmra.mxu0 %v405
      %v534 = vpop.f32.mrf.mxu0
      %v535 = vadd.f32 %v430, %v534
      %v536 = vpop.f32.mrf.mxu0
      %v537 = vadd.f32 %v430, %v536
      %538 = vmatmul.bf16.gmra.mxu0 %v406
      %v539 = vpop.f32.mrf.mxu0
      %v540 = vadd.f32 %v430, %v539
      %v541 = vpop.f32.mrf.mxu0
      %v542 = vadd.f32 %v430, %v541
      %543 = vmatmul.bf16.gmra.mxu0 %v407
      %v544 = vpop.f32.mrf.mxu0
      %v545 = vadd.f32 %v430, %v544
      %v546 = vpop.f32.mrf.mxu0
      %v547 = vadd.f32 %v430, %v546
      %548 = vmatmul.bf16.gmra.mxu0 %v408
      %v549 = vpop.f32.mrf.mxu0
      %v550 = vadd.f32 %v430, %v549
      %v551 = vpop.f32.mrf.mxu0
      %v552 = vadd.f32 %v430, %v551
      %553 = vmatmul.bf16.gmra.mxu0 %v409
      %v554 = vpop.f32.mrf.mxu0
      %v555 = vadd.f32 %v430, %v554
      %v556 = vpop.f32.mrf.mxu0
      %v557 = vadd.f32 %v430, %v556
      %558 = vmatmul.bf16.gmra.mxu0 %v410
      %v559 = vpop.f32.mrf.mxu0
      %v560 = vadd.f32 %v430, %v559
      %v561 = vpop.f32.mrf.mxu0
      %v562 = vadd.f32 %v430, %v561
      %563 = vmatmul.bf16.gmra.mxu0 %v411
      %v564 = vpop.f32.mrf.mxu0
      %v565 = vadd.f32 %v430, %v564
      %v566 = vpop.f32.mrf.mxu0
      %v567 = vadd.f32 %v430, %v566
      %568 = vdwg.mxu0
      %569 = vst [vmem:[%s226] sm:$0xff] %v490
      %570 = vst [vmem:[%s226 + $0x8] sm:$0xff] %v492
      %571 = vst [vmem:[%s226 + $0x10] sm:$0xff] %v495
      %572 = vst [vmem:[%s226 + $0x18] sm:$0xff] %v497
      %573 = vst [vmem:[%s226 + $0x20] sm:$0xff] %v500
      %574 = vst [vmem:[%s226 + $0x28] sm:$0xff] %v502
      %575 = vst [vmem:[%s226 + $0x30] sm:$0xff] %v505
      %576 = vst [vmem:[%s226 + $0x38] sm:$0xff] %v507
      %577 = vst [vmem:[%s226 + $0x40] sm:$0xff] %v510
      %578 = vst [vmem:[%s226 + $0x48] sm:$0xff] %v512
      %579 = vst [vmem:[%s226 + $0x50] sm:$0xff] %v515
      %580 = vst [vmem:[%s226 + $0x58] sm:$0xff] %v517
      %581 = vst [vmem:[%s226 + $0x60] sm:$0xff] %v520
      %582 = vst [vmem:[%s226 + $0x68] sm:$0xff] %v522
      %583 = vst [vmem:[%s226 + $0x70] sm:$0xff] %v525
      %584 = vst [vmem:[%s226 + $0x78] sm:$0xff] %v527
      %585 = vst [vmem:[%s226 + $0x80] sm:$0xff] %v530
      %586 = vst [vmem:[%s226 + $0x88] sm:$0xff] %v532
      %587 = vst [vmem:[%s226 + $0x90] sm:$0xff] %v535
      %588 = vst [vmem:[%s226 + $0x98] sm:$0xff] %v537
      %589 = vst [vmem:[%s226 + $0xa0] sm:$0xff] %v540
      %590 = vst [vmem:[%s226 + $0xa8] sm:$0xff] %v542
      %591 = vst [vmem:[%s226 + $0xb0] sm:$0xff] %v545
      %592 = vst [vmem:[%s226 + $0xb8] sm:$0xff] %v547
      %593 = vst [vmem:[%s226 + $0xc0] sm:$0xff] %v550
      %594 = vst [vmem:[%s226 + $0xc8] sm:$0xff] %v552
      %595 = vst [vmem:[%s226 + $0xd0] sm:$0xff] %v555
      %596 = vst [vmem:[%s226 + $0xd8] sm:$0xff] %v557
      %597 = vst [vmem:[%s226 + $0xe0] sm:$0xff] %v560
      %598 = vst [vmem:[%s226 + $0xe8] sm:$0xff] %v562
      %599 = vst [vmem:[%s226 + $0xf0] sm:$0xff] %v565
      %600 = vst [vmem:[%s226 + $0xf8] sm:$0xff] %v567
      %s601 = smul.u32 32, %s16
      %p602 = scmp.lt.s32.totalorder %s601, 63
      %s603 = scalar_select %p602, %s601, 63
      %s604 = smul.addr %s603, 8
      %s605 = scalar_lea.vmem %s5, %s604
      // Predicated region
      $region41: #{upconv_fwd.7} parent=39 // pred_check
        %p606 = pneg %p144
      $region42: #{upconv_fwd.7} parent=39 // pred_check_branch
        %608 = sbr.rel (%p606) target = $region44
      $region43: #{upconv_fwd.7} parent=39 // pred_region
        %s609 = smul.u32 32, %s16
      $region44: #{upconv_fwd.7} parent=39 // pred_fallthru
        _
    $region40: #{upconv_fwd.7} parent=5 // pred_fallthru
      _
    %p610 = scmp.le.s32.totalorder 2, %s11
    // Predicated region
    $region45: #{upconv_fwd.7} parent=5 // pred_check
      %p611 = pneg %p610
    $region46: #{upconv_fwd.7} parent=5 // pred_check_branch
      %613 = sbr.rel (%p611) target = $region48
    $region47: #{upconv_fwd.7} parent=5 // pred_region
      %s614 = ssub.s32 %s11, 2
      // Predicated region
      $region49: #{upconv_fwd.7} parent=47 // pred_check
        %p615 = pneg %p150
      $region50: #{upconv_fwd.7} parent=47 // pred_check_branch
        %617 = sbr.rel (%p615) target = $region52
      $region51: #{upconv_fwd.7} parent=47 // pred_region
        %s618 = smul.u32 32, %s17
        %p619 = scmp.lt.s32.totalorder %s618, 63
        %s620 = scalar_select %p619, %s618, 63
        %s621 = smul.addr %s620, 8
        %s622 = scalar_lea.vmem %s5, %s621
      $region52: #{upconv_fwd.7} parent=47 // pred_fallthru
        _
    $region48: #{upconv_fwd.7} parent=5 // pred_fallthru
      _
  $region6: #{upconv_fwd.7} parent=0 // loop_footer
    %s15 = sadd.s32 1, %s11
  $region7: #{upconv_fwd.7} parent=0 // loop_footer_branch
    %10 = sbr.rel target = $region3
  $region8: #{upconv_fwd.7} parent=0 // loop_exit
    _

</llo_original>
